<compile_context>
chip_gen: v7x
topology: tpu7x:2x2x1
jax: 0.10.0
libtpu: 0.0.40
codegen_flags: <defaults>
</compile_context>

<pallas_src>
import functools

import jax
import jax.numpy as jnp
from jax.experimental import pallas as pl
from jax.experimental.pallas import tpu as pltpu

_VMEM_LIMIT = 24 * 1024 * 1024           # explicit scoped-VMEM budget, safe on v5e/v6e/v7x
_RESIDENT_SUPPORT_BUDGET = 8 * 1024 * 1024   # 2x-buffered resident support must fit here


# ----------------------------------------------------------------------------
# helpers
# ----------------------------------------------------------------------------
def _round_up(n, m):
    return ((n + m - 1) // m) * m


def _node_tile(n, max_tile):
    """Node-dimension tile: a multiple of 128; equals padded-N for small graphs."""
    assert max_tile % 128 == 0 and max_tile >= 128
    return min(max_tile, _round_up(n, 128))


def padded_num_nodes(n, max_tile=1024):
    """Padded node count so that the node tile always divides it exactly."""
    return _round_up(n, _node_tile(n, max_tile))


def pad_adjacency(adj, n_padded):
    """Zero-pad adj to (n_padded, n_padded) and cast to bf16.

    Hoist this out of the per-call path (compute once) when adj is reused
    across many forward calls — it is a full extra pass over the largest input.
    """
    n = adj.shape[0]
    return jnp.zeros((n_padded, n_padded), jnp.bfloat16).at[:n, :n].set(
        adj.astype(jnp.bfloat16))


# ----------------------------------------------------------------------------
# stage 1/3: support = x @ W   (row-tiled, bf16 operands, f32 accumulation)
# ----------------------------------------------------------------------------
def _linear_kernel(x_ref, w_ref, out_ref):
    out_ref[...] = jnp.dot(
        x_ref[...], w_ref[...], preferred_element_type=jnp.float32
    ).astype(out_ref.dtype)


def _linear(x, w, tm):
    n, fin = x.shape
    fout = w.shape[1]
    return pl.pallas_call(
        _linear_kernel,
        out_shape=jax.ShapeDtypeStruct((n, fout), jnp.bfloat16),
        grid_spec=pltpu.PrefetchScalarGridSpec(
            num_scalar_prefetch=0,
            grid=(n // tm,),
            in_specs=[
                pl.BlockSpec((tm, fin), lambda i: (i, 0)),
                pl.BlockSpec((fin, fout), lambda i: (0, 0)),
            ],
            out_specs=pl.BlockSpec((tm, fout), lambda i: (i, 0)),
        ),
        compiler_params=pltpu.CompilerParams(dimension_semantics=("parallel",)),
        cost_estimate=pl.CostEstimate(
            flops=2 * n * fin * fout,
            transcendentals=0,
            bytes_accessed=(n * fin + fin * fout + n * fout) * 2,
        ),
    )(x, w)


# ----------------------------------------------------------------------------
# stage 2: out = act(adj @ support + b)   (K-tiled reduction over adj columns)
# ----------------------------------------------------------------------------
def _gcn_aggregate_kernel(adj_ref, sup_ref, b_ref, out_ref, acc_ref, *,
                          activation, tk, support_resident):
    k = pl.program_id(1)

    @pl.when(k == 0)
    def _():
        acc_ref[...] = jnp.zeros_like(acc_ref)

    if support_resident:
        # Full support matrix lives in VMEM (fetched once); slice the k-th band.
        start = pl.multiple_of(k * tk, tk)
        sup = sup_ref[pl.ds(start, tk), :]
    else:
        sup = sup_ref[...]

    acc_ref[...] += jnp.dot(adj_ref[...], sup, preferred_element_type=jnp.float32)

    @pl.when(k == pl.num_programs(1) - 1)
    def _():
        y = acc_ref[...] + b_ref[...]
        if activation == "relu":
            y = jnp.maximum(y, 0.0)
        elif activation == "l2norm":
            sq = jnp.sum(y * y, axis=-1, keepdims=True)
            # eps guard: an all-zero embedding row would otherwise give rsqrt(0)=inf.
            y = y * jax.lax.rsqrt(jnp.maximum(sq, 1e-12))
        out_ref[...] = y.astype(out_ref.dtype)


def _gcn_aggregate(adj, sup, b, tm, tk, activation, out_dtype):
    n = adj.shape[0]
    f = sup.shape[1]

    # Keep the whole support matrix resident in VMEM when (double-buffered) it
    # fits comfortably; this removes the (n/tm)-fold support re-read.
    support_resident = 2 * n * f * sup.dtype.itemsize <= _RESIDENT_SUPPORT_BUDGET
    if support_resident:
        sup_spec = pl.BlockSpec((n, f), lambda i, k: (0, 0))
        sup_bytes = n * f * sup.dtype.itemsize
    else:
        sup_spec = pl.BlockSpec((tk, f), lambda i, k: (k, 0))
        sup_bytes = (n // tm) * n * f * sup.dtype.itemsize

    kernel = functools.partial(
        _gcn_aggregate_kernel, activation=activation, tk=tk,
        support_resident=support_resident)

    return pl.pallas_call(
        kernel,
        out_shape=jax.ShapeDtypeStruct((n, f), out_dtype),
        grid_spec=pltpu.PrefetchScalarGridSpec(
            num_scalar_prefetch=0,
            grid=(n // tm, n // tk),          # reduction axis last
            in_specs=[
                pl.BlockSpec((tm, tk), lambda i, k: (i, k)),   # adj tile
                sup_spec,                                      # support (resident or tiled)
                pl.BlockSpec((1, f), lambda i, k: (0, 0)),     # bias
            ],
            out_specs=pl.BlockSpec((tm, f), lambda i, k: (i, 0)),
            scratch_shapes=[pltpu.VMEM((tm, f), jnp.float32)],
        ),
        compiler_params=pltpu.CompilerParams(
            dimension_semantics=("parallel", "arbitrary"),
            vmem_limit_bytes=_VMEM_LIMIT),
        cost_estimate=pl.CostEstimate(
            flops=2 * n * n * f,
            transcendentals=n if activation == "l2norm" else 0,
            bytes_accessed=n * n * 2 + sup_bytes
            + n * f * jnp.dtype(out_dtype).itemsize,
        ),
    )(adj, sup, b)


# ----------------------------------------------------------------------------
# stage 3: out = sigmoid(z @ z.T)   (grid over output tiles)
# ----------------------------------------------------------------------------
# TODO(synk): exploit symmetry (compute only i<=j tiles + mirror via manual HBM
# DMA); skipped because the full N^2 matrix must still be written, so the stage
# stays write-bound and the win is marginal for the added manual-DMA complexity.
def _decoder_kernel(zi_ref, zj_ref, out_ref):
    # Contract the embedding dim of both (bf16) operands: no materialized z.T.
    logits = jax.lax.dot_general(
        zi_ref[...], zj_ref[...],
        dimension_numbers=(((1,), (1,)), ((), ())),
        preferred_element_type=jnp.float32)
    out_ref[...] = jax.nn.sigmoid(logits).astype(out_ref.dtype)


def _decoder(z, ti, tj, out_dtype):
    n, d = z.shape
    return pl.pallas_call(
        _decoder_kernel,
        out_shape=jax.ShapeDtypeStruct((n, n), out_dtype),
        grid_spec=pltpu.PrefetchScalarGridSpec(
            num_scalar_prefetch=0,
            grid=(n // ti, n // tj),
            in_specs=[
                pl.BlockSpec((ti, d), lambda i, j: (i, 0)),
                pl.BlockSpec((tj, d), lambda i, j: (j, 0)),
            ],
            out_specs=pl.BlockSpec((ti, tj), lambda i, j: (i, j)),
        ),
        compiler_params=pltpu.CompilerParams(
            dimension_semantics=("parallel", "parallel"),
            vmem_limit_bytes=_VMEM_LIMIT),
        cost_estimate=pl.CostEstimate(
            flops=2 * n * n * d,
            transcendentals=n * n,
            bytes_accessed=2 * n * d * z.dtype.itemsize
            + n * n * jnp.dtype(out_dtype).itemsize,
        ),
    )(z, z)


# ----------------------------------------------------------------------------
# full forward
# ----------------------------------------------------------------------------
def gnn_forward(x, adj, w1, b1, w2, b2, *, max_tile=1024, out_dtype=jnp.bfloat16):
    """GNN forward pass (eval mode), matching the PyTorch module semantics.

    `adj` may be either the raw (N, N) adjacency or a pre-padded (N_p, N_p)
    bf16 adjacency from pad_adjacency() (hoist the pad when adj is reused).
    """
    N, nfeat = x.shape
    nhid = w1.shape[1]
    ndim = w2.shape[1]

    tile = _node_tile(N, max_tile)
    N_p = _round_up(N, tile)               # pad to a multiple of the tile
    nfeat_p = _round_up(nfeat, 128)
    nhid_p = _round_up(nhid, 128)          # 128-wide RHS is fine: stage is HBM-bound on adj
    ndim_p = _round_up(ndim, 128)

    bf16, f32 = jnp.bfloat16, jnp.float32

    # Zero-pad to lane/sublane-dense shapes; padding is exact (contributes 0).
    x_p = jnp.zeros((N_p, nfeat_p), bf16).at[:N, :nfeat].set(x.astype(bf16))
    if adj.shape == (N_p, N_p):
        adj_p = adj.astype(bf16)           # pre-padded / hoisted path (no-op if bf16)
    else:
        adj_p = pad_adjacency(adj, N_p)
    w1_p = jnp.zeros((nfeat_p, nhid_p), bf16).at[:nfeat, :nhid].set(w1.astype(bf16))
    w2_p = jnp.zeros((nhid_p, ndim_p), bf16).at[:nhid, :ndim].set(w2.astype(bf16))
    b1_p = jnp.zeros((1, nhid_p), f32).at[:, :nhid].set(b1.astype(f32))
    b2_p = jnp.zeros((1, ndim_p), f32).at[:, :ndim].set(b2.astype(f32))

    # GraphConvolution 1: h = relu(adj @ (x @ W1) + b1)
    sup1 = _linear(x_p, w1_p, tile)                                    # [N_p, nhid_p] bf16
    h = _gcn_aggregate(adj_p, sup1, b1_p, tile, tile, "relu", bf16)    # [N_p, nhid_p] bf16
    # F.dropout(..., training=self.training) is the identity in eval mode.
    # TODO(synk): add stochastic dropout via pltpu.prng_random_bits for training mode.

    # GraphConvolution 2 + norm_embed: z = l2norm(adj @ (h @ W2) + b2), stored bf16.
    sup2 = _linear(h, w2_p, tile)                                      # [N_p, ndim_p] bf16
    z = _gcn_aggregate(adj_p, sup2, b2_p, tile, tile, "l2norm", bf16)  # [N_p, ndim_p] bf16

    # InnerProduct decoder: sigmoid(z @ z.T); bf16 output halves the N^2 write.
    out = _decoder(z, tile, tile, out_dtype)                           # [N_p, N_p]

    # Static crop back to the logical size.  Padded rows of z are b2/||b2||,
    # so the padded region of the decoder output is nonzero and must not leak.
    return out[:N, :N]


def init_gcn_params(key, in_features, out_features):
    """Mirror GraphConvolution.reset_parameters: uniform(-stdv, stdv), stdv=1/sqrt(out)."""
    stdv = 1.0 / (out_features ** 0.5)
    kw, kb = jax.random.split(key)
    w = jax.random.uniform(kw, (in_features, out_features), jnp.float32, -stdv, stdv)
    b = jax.random.uniform(kb, (1, out_features), jnp.float32, -stdv, stdv)
    return w, b


if __name__ == "__main__":
    # Small synthetic problem (multi-tile at max_tile=128: N_p=256 -> 2x2 grids).
    N, nfeat, nhid, ndim = 200, 48, 32, 16

    key = jax.random.PRNGKey(0)
    kx, kadj, k1, k2 = jax.random.split(key, 4)

    x = jax.random.normal(kx, (N, nfeat), jnp.float32)

    # Symmetric, self-looped, row-normalized adjacency (typical GCN preprocessing).
    a = (jax.random.uniform(kadj, (N, N)) > 0.9).astype(jnp.float32)
    a = jnp.clip(a + a.T + jnp.eye(N, dtype=jnp.float32), 0.0, 1.0)
    adj = a / jnp.sum(a, axis=1, keepdims=True)

    w1, b1 = init_gcn_params(k1, nfeat, nhid)
    w2, b2 = init_gcn_params(k2, nhid, ndim)

    # Hoisted adjacency preparation (done once, reused across forward calls).
    N_p = padded_num_nodes(N, max_tile=128)
    adj_p = pad_adjacency(adj, N_p)

    fwd = jax.jit(functools.partial(gnn_forward, max_tile=128))
    out = fwd(x, adj_p, w1, b1, w2, b2)
    jax.block_until_ready(out)
    assert out.shape == (N, N)
    out_f32 = out.astype(jnp.float32)

    # Reference 1: same bf16-operand / f32-accumulate math as the kernel
    # (including the bf16 storage of h and z).
    bf = jnp.bfloat16

    def mm(a_, b_, contract=(1, 0)):
        return jax.lax.dot_general(
            a_.astype(bf), b_.astype(bf),
            (((contract[0],), (contract[1],)), ((), ())),
            preferred_element_type=jnp.float32)

    sup1_r = mm(x, w1).astype(bf).astype(jnp.float32)
    h_r = jnp.maximum(mm(adj, sup1_r) + b1, 0.0).astype(bf).astype(jnp.float32)
    sup2_r = mm(h_r, w2).astype(bf).astype(jnp.float32)
    z_r = mm(adj, sup2_r) + b2
    z_r = z_r * jax.lax.rsqrt(jnp.maximum(jnp.sum(z_r * z_r, -1, keepdims=True), 1e-12))
    z_r = z_r.astype(bf).astype(jnp.float32)
    ref_bf = jax.nn.sigmoid(mm(z_r, z_r, contract=(1, 1)))

    # Reference 2: pure f32 (the original PyTorch module semantics).
    h_f = jnp.maximum(adj @ (x @ w1) + b1, 0.0)
    z_f = adj @ (h_f @ w2) + b2
    z_f = z_f / jnp.linalg.norm(z_f, axis=-1, keepdims=True)
    ref_f32 = jax.nn.sigmoid(z_f @ z_f.T)

    err_bf = float(jnp.max(jnp.abs(out_f32 - ref_bf)))
    err_f32 = float(jnp.max(jnp.abs(out_f32 - ref_f32)))
    assert err_bf < 2e-2, f"bf16-mirrored reference mismatch: {err_bf}"
    assert err_f32 < 7e-2, f"f32 reference mismatch: {err_f32}"

    print("KERNEL_OK")
</pallas_src>

<mosaic_0001>
module attributes {stable_mosaic.version = 11 : i64} {
  func.func @_linear_kernel(%arg0: i32, %arg1: memref<128x128xbf16, #tpu.memory_space<vmem>>, %arg2: memref<128x128xbf16, #tpu.memory_space<vmem>>, %arg3: memref<128x128xbf16, #tpu.memory_space<vmem>>) attributes {dimension_semantics = [#tpu.dimension_semantics<parallel>], iteration_bounds = array<i64: 2>, scalar_prefetch = 0 : i64, scratch_operands = 0 : i64, tpu.core_type = #tpu.core_type<tc>, window_params = [{transform_indices = @transform_0, window_bounds = array<i64: 128, 128>}, {pipeline_mode = #tpu.pipeline_mode<synchronous>, transform_indices = @transform_1, window_bounds = array<i64: 128, 128>}, {transform_indices = @transform_2, window_bounds = array<i64: 128, 128>}]} {
    %c0 = arith.constant 0 : index
    %c0_0 = arith.constant 0 : index
    %0 = vector.load %arg1[%c0, %c0_0] : memref<128x128xbf16, #tpu.memory_space<vmem>>, vector<128x128xbf16>
    %c0_1 = arith.constant 0 : index
    %c0_2 = arith.constant 0 : index
    %1 = vector.load %arg2[%c0_1, %c0_2] : memref<128x128xbf16, #tpu.memory_space<vmem>>, vector<128x128xbf16>
    %cst = arith.constant dense<0.000000e+00> : vector<128x128xf32>
    %2 = tpu.matmul %0, %1, %cst {dimension_numbers = #tpu.dot_dimension_numbers<[1], [0], [0], [1], [0, 0, 1, 1], [], []>} : vector<128x128xbf16>, vector<128x128xbf16>, vector<128x128xf32> -> vector<128x128xf32>
    %3 = arith.truncf %2 : vector<128x128xf32> to vector<128x128xbf16>
    %c0_3 = arith.constant 0 : index
    %c0_4 = arith.constant 0 : index
    %4 = vector.load %arg3[%c0_3, %c0_4] : memref<128x128xbf16, #tpu.memory_space<vmem>>, vector<128x128xbf16>
    tpu.vector_store %arg3[%c0_3, %c0_4], %3 {strides = array<i32>} : memref<128x128xbf16, #tpu.memory_space<vmem>>, vector<128x128xbf16>,
    return
  }
  func.func @transform_0(%arg0: i32) -> (i32, i32) {
    %c0_i32 = arith.constant 0 : i32
    %c0_i32_0 = arith.constant 0 : i32
    return %arg0, %c0_i32 : i32, i32
  }
  func.func @transform_1(%arg0: i32) -> (i32, i32) {
    %c0_i32 = arith.constant 0 : i32
    %c0_i32_0 = arith.constant 0 : i32
    %c0_i32_1 = arith.constant 0 : i32
    return %c0_i32, %c0_i32_0 : i32, i32
  }
  func.func @transform_2(%arg0: i32) -> (i32, i32) {
    %c0_i32 = arith.constant 0 : i32
    %c0_i32_0 = arith.constant 0 : i32
    return %arg0, %c0_i32 : i32, i32
  }
}

module attributes {stable_mosaic.version = 11 : i64} {
  func.func @_gcn_aggregate_kernel(%arg0: i32, %arg1: i32, %arg2: memref<128x128xbf16, #tpu.memory_space<vmem>>, %arg3: memref<256x128xbf16, #tpu.memory_space<vmem>>, %arg4: memref<1x128xf32, #tpu.memory_space<vmem>>, %arg5: memref<128x128xbf16, #tpu.memory_space<vmem>>, %arg6: memref<128x128xf32, #tpu.memory_space<vmem>>) attributes {dimension_semantics = [#tpu.dimension_semantics<parallel>, #tpu.dimension_semantics<arbitrary>], iteration_bounds = array<i64: 2, 2>, scalar_prefetch = 0 : i64, scratch_operands = 1 : i64, tpu.core_type = #tpu.core_type<tc>, window_params = [{transform_indices = @transform_0, window_bounds = array<i64: 128, 128>}, {pipeline_mode = #tpu.pipeline_mode<synchronous>, transform_indices = @transform_1, window_bounds = array<i64: 256, 128>}, {pipeline_mode = #tpu.pipeline_mode<synchronous>, transform_indices = @transform_2, window_bounds = array<i64: 1, 128>}, {transform_indices = @transform_3, window_bounds = array<i64: 128, 128>}]} {
    %c0_i32 = arith.constant 0 : i32
    %0 = arith.cmpi eq, %arg1, %c0_i32 : i32
    %1 = arith.extui %0 : i1 to i32
    %c0_i32_0 = arith.constant 0 : i32
    %2 = arith.cmpi ne, %1, %c0_i32_0 : i32
    scf.if %2 {
      %cst_8 = arith.constant 0.000000e+00 : f32
      %15 = vector.broadcast %cst_8 : f32 to vector<128x128xf32>
      %c0_9 = arith.constant 0 : index
      %c0_10 = arith.constant 0 : index
      %16 = vector.load %arg6[%c0_9, %c0_10] : memref<128x128xf32, #tpu.memory_space<vmem>>, vector<128x128xf32>
      tpu.vector_store %arg6[%c0_9, %c0_10], %15 {strides = array<i32>} : memref<128x128xf32, #tpu.memory_space<vmem>>, vector<128x128xf32>,
    } else {
    }
    %c128_i32 = arith.constant 128 : i32
    %3 = arith.muli %arg1, %c128_i32 : i32
    %4 = tpu.assume_multiple %3, 128 : i32
    %5 = arith.index_cast %4 : i32 to index
    %c0 = arith.constant 0 : index
    %6 = vector.load %arg3[%5, %c0] : memref<256x128xbf16, #tpu.memory_space<vmem>>, vector<128x128xbf16>
    %c0_1 = arith.constant 0 : index
    %c0_2 = arith.constant 0 : index
    %7 = vector.load %arg6[%c0_1, %c0_2] : memref<128x128xf32, #tpu.memory_space<vmem>>, vector<128x128xf32>
    %c0_3 = arith.constant 0 : index
    %c0_4 = arith.constant 0 : index
    %8 = vector.load %arg2[%c0_3, %c0_4] : memref<128x128xbf16, #tpu.memory_space<vmem>>, vector<128x128xbf16>
    %cst = arith.constant dense<0.000000e+00> : vector<128x128xf32>
    %9 = tpu.matmul %8, %6, %cst {dimension_numbers = #tpu.dot_dimension_numbers<[1], [0], [0], [1], [0, 0, 1, 1], [], []>} : vector<128x128xbf16>, vector<128x128xbf16>, vector<128x128xf32> -> vector<128x128xf32>
    %10 = arith.addf %7, %9 : vector<128x128xf32>
    %c0_5 = arith.constant 0 : index
    %c0_6 = arith.constant 0 : index
    %11 = vector.load %arg6[%c0_5, %c0_6] : memref<128x128xf32, #tpu.memory_space<vmem>>, vector<128x128xf32>
    tpu.vector_store %arg6[%c0_5, %c0_6], %10 {strides = array<i32>} : memref<128x128xf32, #tpu.memory_space<vmem>>, vector<128x128xf32>,
    %c1_i32 = arith.constant 1 : i32
    %12 = arith.cmpi eq, %arg1, %c1_i32 : i32
    %13 = arith.extui %12 : i1 to i32
    %c0_i32_7 = arith.constant 0 : i32
    %14 = arith.cmpi ne, %13, %c0_i32_7 : i32
    scf.if %14 {
      %c0_8 = arith.constant 0 : index
      %c0_9 = arith.constant 0 : index
      %15 = vector.load %arg6[%c0_8, %c0_9] : memref<128x128xf32, #tpu.memory_space<vmem>>, vector<128x128xf32>
      %c0_10 = arith.constant 0 : index
      %c0_11 = arith.constant 0 : index
      %16 = vector.load %arg4[%c0_10, %c0_11] : memref<1x128xf32, #tpu.memory_space<vmem>>, vector<1x128xf32>
      %17 = vector.broadcast %16 : vector<1x128xf32> to vector<128x128xf32>
      %18 = arith.addf %15, %17 : vector<128x128xf32>
      %cst_12 = arith.constant 0.000000e+00 : f32
      %19 = vector.broadcast %cst_12 : f32 to vector<128x128xf32>
      %20 = arith.maximumf %18, %19 : vector<128x128xf32>
      %21 = arith.truncf %20 : vector<128x128xf32> to vector<128x128xbf16>
      %c0_13 = arith.constant 0 : index
      %c0_14 = arith.constant 0 : index
      %22 = vector.load %arg5[%c0_13, %c0_14] : memref<128x128xbf16, #tpu.memory_space<vmem>>, vector<128x128xbf16>
      tpu.vector_store %arg5[%c0_13, %c0_14], %21 {strides = array<i32>} : memref<128x128xbf16, #tpu.memory_space<vmem>>, vector<128x128xbf16>,
    } else {
    }
    return
  }
  func.func @transform_0(%arg0: i32, %arg1: i32) -> (i32, i32) {
    %c0_i32 = arith.constant 0 : i32
    return %arg0, %arg1 : i32, i32
  }
  func.func @transform_1(%arg0: i32, %arg1: i32) -> (i32, i32) {
    %c0_i32 = arith.constant 0 : i32
    %c0_i32_0 = arith.constant 0 : i32
    %c0_i32_1 = arith.constant 0 : i32
    return %c0_i32, %c0_i32_0 : i32, i32
  }
  func.func @transform_2(%arg0: i32, %arg1: i32) -> (i32, i32) {
    %c0_i32 = arith.constant 0 : i32
    %c0_i32_0 = arith.constant 0 : i32
    %c0_i32_1 = arith.constant 0 : i32
    return %c0_i32, %c0_i32_0 : i32, i32
  }
  func.func @transform_3(%arg0: i32, %arg1: i32) -> (i32, i32) {
    %c0_i32 = arith.constant 0 : i32
    %c0_i32_0 = arith.constant 0 : i32
    return %arg0, %c0_i32 : i32, i32
  }
}

module attributes {stable_mosaic.version = 11 : i64} {
  func.func @_gcn_aggregate_kernel(%arg0: i32, %arg1: i32, %arg2: memref<128x128xbf16, #tpu.memory_space<vmem>>, %arg3: memref<256x128xbf16, #tpu.memory_space<vmem>>, %arg4: memref<1x128xf32, #tpu.memory_space<vmem>>, %arg5: memref<128x128xbf16, #tpu.memory_space<vmem>>, %arg6: memref<128x128xf32, #tpu.memory_space<vmem>>) attributes {dimension_semantics = [#tpu.dimension_semantics<parallel>, #tpu.dimension_semantics<arbitrary>], iteration_bounds = array<i64: 2, 2>, scalar_prefetch = 0 : i64, scratch_operands = 1 : i64, tpu.core_type = #tpu.core_type<tc>, window_params = [{transform_indices = @transform_0, window_bounds = array<i64: 128, 128>}, {pipeline_mode = #tpu.pipeline_mode<synchronous>, transform_indices = @transform_1, window_bounds = array<i64: 256, 128>}, {pipeline_mode = #tpu.pipeline_mode<synchronous>, transform_indices = @transform_2, window_bounds = array<i64: 1, 128>}, {transform_indices = @transform_3, window_bounds = array<i64: 128, 128>}]} {
    %c0_i32 = arith.constant 0 : i32
    %0 = arith.cmpi eq, %arg1, %c0_i32 : i32
    %1 = arith.extui %0 : i1 to i32
    %c0_i32_0 = arith.constant 0 : i32
    %2 = arith.cmpi ne, %1, %c0_i32_0 : i32
    scf.if %2 {
      %cst_8 = arith.constant 0.000000e+00 : f32
      %15 = vector.broadcast %cst_8 : f32 to vector<128x128xf32>
      %c0_9 = arith.constant 0 : index
      %c0_10 = arith.constant 0 : index
      %16 = vector.load %arg6[%c0_9, %c0_10] : memref<128x128xf32, #tpu.memory_space<vmem>>, vector<128x128xf32>
      tpu.vector_store %arg6[%c0_9, %c0_10], %15 {strides = array<i32>} : memref<128x128xf32, #tpu.memory_space<vmem>>, vector<128x128xf32>,
    } else {
    }
    %c128_i32 = arith.constant 128 : i32
    %3 = arith.muli %arg1, %c128_i32 : i32
    %4 = tpu.assume_multiple %3, 128 : i32
    %5 = arith.index_cast %4 : i32 to index
    %c0 = arith.constant 0 : index
    %6 = vector.load %arg3[%5, %c0] : memref<256x128xbf16, #tpu.memory_space<vmem>>, vector<128x128xbf16>
    %c0_1 = arith.constant 0 : index
    %c0_2 = arith.constant 0 : index
    %7 = vector.load %arg6[%c0_1, %c0_2] : memref<128x128xf32, #tpu.memory_space<vmem>>, vector<128x128xf32>
    %c0_3 = arith.constant 0 : index
    %c0_4 = arith.constant 0 : index
    %8 = vector.load %arg2[%c0_3, %c0_4] : memref<128x128xbf16, #tpu.memory_space<vmem>>, vector<128x128xbf16>
    %cst = arith.constant dense<0.000000e+00> : vector<128x128xf32>
    %9 = tpu.matmul %8, %6, %cst {dimension_numbers = #tpu.dot_dimension_numbers<[1], [0], [0], [1], [0, 0, 1, 1], [], []>} : vector<128x128xbf16>, vector<128x128xbf16>, vector<128x128xf32> -> vector<128x128xf32>
    %10 = arith.addf %7, %9 : vector<128x128xf32>
    %c0_5 = arith.constant 0 : index
    %c0_6 = arith.constant 0 : index
    %11 = vector.load %arg6[%c0_5, %c0_6] : memref<128x128xf32, #tpu.memory_space<vmem>>, vector<128x128xf32>
    tpu.vector_store %arg6[%c0_5, %c0_6], %10 {strides = array<i32>} : memref<128x128xf32, #tpu.memory_space<vmem>>, vector<128x128xf32>,
    %c1_i32 = arith.constant 1 : i32
    %12 = arith.cmpi eq, %arg1, %c1_i32 : i32
    %13 = arith.extui %12 : i1 to i32
    %c0_i32_7 = arith.constant 0 : i32
    %14 = arith.cmpi ne, %13, %c0_i32_7 : i32
    scf.if %14 {
      %c0_8 = arith.constant 0 : index
      %c0_9 = arith.constant 0 : index
      %15 = vector.load %arg6[%c0_8, %c0_9] : memref<128x128xf32, #tpu.memory_space<vmem>>, vector<128x128xf32>
      %c0_10 = arith.constant 0 : index
      %c0_11 = arith.constant 0 : index
      %16 = vector.load %arg4[%c0_10, %c0_11] : memref<1x128xf32, #tpu.memory_space<vmem>>, vector<1x128xf32>
      %17 = vector.broadcast %16 : vector<1x128xf32> to vector<128x128xf32>
      %18 = arith.addf %15, %17 : vector<128x128xf32>
      %19 = arith.mulf %18, %18 : vector<128x128xf32>
      %cst_12 = arith.constant dense<0.000000e+00> : vector<128xf32>
      %20 = vector.multi_reduction <add>, %19, %cst_12 [1] : vector<128x128xf32> to vector<128xf32>
      %21 = vector.shape_cast %20 : vector<128xf32> to vector<128x1xf32>
      %cst_13 = arith.constant 9.99999996E-13 : f32
      %22 = vector.broadcast %cst_13 : f32 to vector<128x1xf32>
      %23 = arith.maximumf %21, %22 : vector<128x1xf32>
      %24 = math.rsqrt %23 : vector<128x1xf32>
      %25 = vector.broadcast %24 : vector<128x1xf32> to vector<128x128xf32>
      %26 = arith.mulf %18, %25 : vector<128x128xf32>
      %27 = arith.truncf %26 : vector<128x128xf32> to vector<128x128xbf16>
      %c0_14 = arith.constant 0 : index
      %c0_15 = arith.constant 0 : index
      %28 = vector.load %arg5[%c0_14, %c0_15] : memref<128x128xbf16, #tpu.memory_space<vmem>>, vector<128x128xbf16>
      tpu.vector_store %arg5[%c0_14, %c0_15], %27 {strides = array<i32>} : memref<128x128xbf16, #tpu.memory_space<vmem>>, vector<128x128xbf16>,
    } else {
    }
    return
  }
  func.func @transform_0(%arg0: i32, %arg1: i32) -> (i32, i32) {
    %c0_i32 = arith.constant 0 : i32
    return %arg0, %arg1 : i32, i32
  }
  func.func @transform_1(%arg0: i32, %arg1: i32) -> (i32, i32) {
    %c0_i32 = arith.constant 0 : i32
    %c0_i32_0 = arith.constant 0 : i32
    %c0_i32_1 = arith.constant 0 : i32
    return %c0_i32, %c0_i32_0 : i32, i32
  }
  func.func @transform_2(%arg0: i32, %arg1: i32) -> (i32, i32) {
    %c0_i32 = arith.constant 0 : i32
    %c0_i32_0 = arith.constant 0 : i32
    %c0_i32_1 = arith.constant 0 : i32
    return %c0_i32, %c0_i32_0 : i32, i32
  }
  func.func @transform_3(%arg0: i32, %arg1: i32) -> (i32, i32) {
    %c0_i32 = arith.constant 0 : i32
    %c0_i32_0 = arith.constant 0 : i32
    return %arg0, %c0_i32 : i32, i32
  }
}

module attributes {stable_mosaic.version = 11 : i64} {
  func.func @_decoder_kernel(%arg0: i32, %arg1: i32, %arg2: memref<128x128xbf16, #tpu.memory_space<vmem>>, %arg3: memref<128x128xbf16, #tpu.memory_space<vmem>>, %arg4: memref<128x128xbf16, #tpu.memory_space<vmem>>) attributes {dimension_semantics = [#tpu.dimension_semantics<parallel>, #tpu.dimension_semantics<parallel>], iteration_bounds = array<i64: 2, 2>, scalar_prefetch = 0 : i64, scratch_operands = 0 : i64, tpu.core_type = #tpu.core_type<tc>, window_params = [{transform_indices = @transform_0, window_bounds = array<i64: 128, 128>}, {transform_indices = @transform_1, window_bounds = array<i64: 128, 128>}, {transform_indices = @transform_2, window_bounds = array<i64: 128, 128>}]} {
    %c0 = arith.constant 0 : index
    %c0_0 = arith.constant 0 : index
    %0 = vector.load %arg2[%c0, %c0_0] : memref<128x128xbf16, #tpu.memory_space<vmem>>, vector<128x128xbf16>
    %c0_1 = arith.constant 0 : index
    %c0_2 = arith.constant 0 : index
    %1 = vector.load %arg3[%c0_1, %c0_2] : memref<128x128xbf16, #tpu.memory_space<vmem>>, vector<128x128xbf16>
    %cst = arith.constant dense<0.000000e+00> : vector<128x128xf32>
    %2 = tpu.matmul %0, %1, %cst {dimension_numbers = #tpu.dot_dimension_numbers<[1], [1], [0], [0], [0, 0, 1, 0], [], []>} : vector<128x128xbf16>, vector<128x128xbf16>, vector<128x128xf32> -> vector<128x128xf32>
    %3 = arith.negf %2 : vector<128x128xf32>
    %4 = math.exp %3 : vector<128x128xf32>
    %cst_3 = arith.constant 1.000000e+00 : f32
    %5 = vector.broadcast %cst_3 : f32 to vector<128x128xf32>
    %6 = arith.addf %5, %4 : vector<128x128xf32>
    %7 = arith.divf %5, %6 : vector<128x128xf32>
    %8 = arith.truncf %7 : vector<128x128xf32> to vector<128x128xbf16>
    %c0_4 = arith.constant 0 : index
    %c0_5 = arith.constant 0 : index
    %9 = vector.load %arg4[%c0_4, %c0_5] : memref<128x128xbf16, #tpu.memory_space<vmem>>, vector<128x128xbf16>
    tpu.vector_store %arg4[%c0_4, %c0_5], %8 {strides = array<i32>} : memref<128x128xbf16, #tpu.memory_space<vmem>>, vector<128x128xbf16>,
    return
  }
  func.func @transform_0(%arg0: i32, %arg1: i32) -> (i32, i32) {
    %c0_i32 = arith.constant 0 : i32
    %c0_i32_0 = arith.constant 0 : i32
    return %arg0, %c0_i32 : i32, i32
  }
  func.func @transform_1(%arg0: i32, %arg1: i32) -> (i32, i32) {
    %c0_i32 = arith.constant 0 : i32
    %c0_i32_0 = arith.constant 0 : i32
    return %arg1, %c0_i32 : i32, i32
  }
  func.func @transform_2(%arg0: i32, %arg1: i32) -> (i32, i32) {
    %c0_i32 = arith.constant 0 : i32
    return %arg0, %arg1 : i32, i32
  }
}

</mosaic_0001>

<llo_original>
// kernel: gnn_forward.8
$region0: #{gnn_forward.8}
  #allocation0 [shape = 'u32[]', space=smem, size = 0x4, offset = 0x4, fixed_abs, tag = 'smem constant byte address 0x4 - core index']
  #allocation1 [shape = 'u32[144,128]{1,0:T(1,128)}', space=vmem, size = 0x12000, scoped, tag = 'internal scratch']
  #allocation2 [shape = 'f32[128,128]{1,0:T(8,128)}', space=vmem, size = 0x10000, scoped, tag = 'scratch operand']
  %s0 = inlined_call_operand.vmem [shape: bf16[256,256], index: 0, kind: input, shape index: {}]
  %s1 = inlined_call_operand.vmem [shape: bf16[256,128], index: 1, kind: input, shape index: {}]
  %s2 = inlined_call_operand.vmem [shape: f32[1,128], index: 2, kind: input, shape index: {}]
  %s3 = inlined_call_operand.vmem [shape: bf16[256,128], index: 3, kind: output, shape index: {}]
  %s4 = sld [smem:[#allocation0]]
  $region94: #{gnn_forward.8} parent=0
    _
  %s6 = ssub.s32 1, %s4
  %s7 = scalar_select 0, %s6, %s4
  $region1: #{gnn_forward.8} parent=0
    #allocation3 [shape = 'u8[65536]{0}', space=vmem, size = 0x10000, scoped, tag = 'input window, operand 0']
    loop: start=0, step=1, limit=6
    $region2: #{gnn_forward.8} parent=1 // loop_pre_header
      _
    $region3: #{gnn_forward.8} parent=1 // loop_header
      %s9 = sphi 0, %s13
      %p10 = scmp.ge.s32.totalorder %s9, 6
      %s16 = sphi 0, %s28
      %s17 = sphi 0, %s24
      %s18 = sphi 0, %s16
      %s19 = sphi 0, %s17
      %s20 = sphi 0, %s18
      %s21 = sphi 0, %s19
      %s33 = sphi 0, %s35
      %s36 = sphi 0, %s33
      %s37 = sphi 0, %s36
      %s53 = sphi 0, %s37
      %s57 = sphi 0, %s57
      %s59 = sphi 0, %s57
      %s60 = sphi 0, %s59
      %s74 = sphi 0, %s60
      %s78 = sphi 0, %s78
      %s80 = sphi 0, %s78
      %s81 = sphi 0, %s80
      %s95 = sphi 0, %s81
      %s101 = sphi 0, %s103
      %s104 = sphi 0, %s101
      %s105 = sphi 0, %s104
      %s121 = sphi 0, %s105
    $region4: #{gnn_forward.8} parent=1 // loop_header_branch
      %12 = sbr.rel (%p10) target = $region8
    $region5: #{gnn_forward.8} parent=1 // loop_body
      %s14 = ssub.s32 %s9, 1
      %s15 = ssub.s32 %s9, 2
      %s22 = sadd.s32 1, %s17
      %p23 = scmp.ge.s32.totalorder %s22, 2
      %s24 = scalar_select %p23, 0, %s22
      %s25 = sadd.s32 1, %s16
      %s26 = scalar_select %p23, %s25, %s16
      %p27 = scmp.ge.s32.totalorder %s26, 2
      %s28 = scalar_select %p27, 0, %s26
      %s29 = ssub.s32 %s16, %s28
      %s30 = ssub.s32 %s17, %s24
      %s31 = sor.u32 %s29, %s30
      %p32 = scmp.eq.s32.totalorder %s31, 0
      %s34 = sadd.s32 %s33, 1
      %s35 = scalar_select %p32, %s33, %s34
      %p38 = pneg %p32
      %p39 = scmp.eq.s32.totalorder %s9, 3
      %p40 = por %p38, %p39
      %p41 = scmp.ne.s32.totalorder %s33, %s36
      %p42 = scmp.eq.s32.totalorder %s9, 0
      %p43 = por %p41, %p42
      %p44 = scmp.ne.s32.totalorder %s33, %s36
      %p45 = scmp.eq.s32.totalorder %s14, 3
      %p46 = por %p44, %p45
      %p47 = scmp.ne.s32.totalorder %s36, %s37
      %p48 = scmp.eq.s32.totalorder %s14, 0
      %p49 = por %p47, %p48
      %p50 = scmp.ne.s32.totalorder %s36, %s37
      %p51 = scmp.eq.s32.totalorder %s15, 3
      %p52 = por %p50, %p51
      %p54 = scmp.ne.s32.totalorder %s37, %s53
      %p55 = scmp.eq.s32.totalorder %s15, 0
      %p56 = por %p54, %p55
      %s58 = sadd.s32 %s57, 1
      %p61 = scmp.eq.s32.totalorder %s9, 3
      %p62 = scmp.ne.s32.totalorder %s57, %s59
      %p63 = scmp.eq.s32.totalorder %s9, 0
      %p64 = por %p62, %p63
      %p65 = scmp.ne.s32.totalorder %s57, %s59
      %p66 = scmp.eq.s32.totalorder %s14, 3
      %p67 = por %p65, %p66
      %p68 = scmp.ne.s32.totalorder %s59, %s60
      %p69 = scmp.eq.s32.totalorder %s14, 0
      %p70 = por %p68, %p69
      %p71 = scmp.ne.s32.totalorder %s59, %s60
      %p72 = scmp.eq.s32.totalorder %s15, 3
      %p73 = por %p71, %p72
      %p75 = scmp.ne.s32.totalorder %s60, %s74
      %p76 = scmp.eq.s32.totalorder %s15, 0
      %p77 = por %p75, %p76
      %s79 = sadd.s32 %s78, 1
      %p82 = scmp.eq.s32.totalorder %s9, 3
      %p83 = scmp.ne.s32.totalorder %s78, %s80
      %p84 = scmp.eq.s32.totalorder %s9, 0
      %p85 = por %p83, %p84
      %p86 = scmp.ne.s32.totalorder %s78, %s80
      %p87 = scmp.eq.s32.totalorder %s14, 3
      %p88 = por %p86, %p87
      %p89 = scmp.ne.s32.totalorder %s80, %s81
      %p90 = scmp.eq.s32.totalorder %s14, 0
      %p91 = por %p89, %p90
      %p92 = scmp.ne.s32.totalorder %s80, %s81
      %p93 = scmp.eq.s32.totalorder %s15, 3
      %p94 = por %p92, %p93
      %p96 = scmp.ne.s32.totalorder %s81, %s95
      %p97 = scmp.eq.s32.totalorder %s15, 0
      %p98 = por %p96, %p97
      %s99 = ssub.s32 %s16, %s28
      %p100 = scmp.eq.s32.totalorder %s99, 0
      %s102 = sadd.s32 %s101, 1
      %s103 = scalar_select %p100, %s101, %s102
      %p106 = pneg %p100
      %p107 = scmp.eq.s32.totalorder %s9, 3
      %p108 = por %p106, %p107
      %p109 = scmp.ne.s32.totalorder %s101, %s104
      %p110 = scmp.eq.s32.totalorder %s9, 0
      %p111 = por %p109, %p110
      %p112 = scmp.ne.s32.totalorder %s101, %s104
      %p113 = scmp.eq.s32.totalorder %s14, 3
      %p114 = por %p112, %p113
      %p115 = scmp.ne.s32.totalorder %s104, %s105
      %p116 = scmp.eq.s32.totalorder %s14, 0
      %p117 = por %p115, %p116
      %p118 = scmp.ne.s32.totalorder %s104, %s105
      %p119 = scmp.eq.s32.totalorder %s15, 3
      %p120 = por %p118, %p119
      %p122 = scmp.ne.s32.totalorder %s105, %s121
      %p123 = scmp.eq.s32.totalorder %s15, 0
      %p124 = por %p122, %p123
      %p125 = scmp.le.s32.totalorder 1, %s9
      %p126 = scmp.lt.s32.totalorder %s9, 5
      %p127 = pnand %p125, %p126
      %p128 = pneg %p127
      // Predicated region
      $region9: #{gnn_forward.8} parent=5 // pred_check
        _
      $region10: #{gnn_forward.8} parent=5 // pred_check_branch
        %130 = sbr.rel (%p127) target = $region12
      $region11: #{gnn_forward.8} parent=5 // pred_region
        %s131 = ssub.s32 %s9, 1
        // Predicated region
        $region13: #{gnn_forward.8} parent=11 // pred_check
          %p132 = pneg %p70
        $region14: #{gnn_forward.8} parent=11 // pred_check_branch
          %134 = sbr.rel (%p132) target = $region16
        $region15: #{gnn_forward.8} parent=11 // pred_region
          _
        $region16: #{gnn_forward.8} parent=11 // pred_fallthru
          _
        // Predicated region
        $region17: #{gnn_forward.8} parent=11 // pred_check
          %p135 = pneg %p91
        $region18: #{gnn_forward.8} parent=11 // pred_check_branch
          %137 = sbr.rel (%p135) target = $region20
        $region19: #{gnn_forward.8} parent=11 // pred_region
          _
        $region20: #{gnn_forward.8} parent=11 // pred_fallthru
          _
      $region12: #{gnn_forward.8} parent=5 // pred_fallthru
        _
      %p138 = scmp.lt.s32.totalorder %s9, 4
      // Predicated region
      $region21: #{gnn_forward.8} parent=5 // pred_check
        %p139 = pneg %p138
      $region22: #{gnn_forward.8} parent=5 // pred_check_branch
        %141 = sbr.rel (%p139) target = $region24
      $region23: #{gnn_forward.8} parent=5 // pred_region
        // Predicated region
        $region25: #{gnn_forward.8} parent=23 // pred_check
          %p142 = pneg %p43
        $region26: #{gnn_forward.8} parent=23 // pred_check_branch
          %144 = sbr.rel (%p142) target = $region28
        $region27: #{gnn_forward.8} parent=23 // pred_region
          %s145 = sand.u32 %s33, 1
          %s146 = sand.u32 %s33, 1
          %s147 = smul.addr %s146, 64
          %s148 = scalar_lea.vmem [#allocation3], %s147
          %s149 = smul.u32 16, %s16
          %s150 = smul.addr %s149, 2
          %s151 = sadd.s32 %s17, %s150
          %s152 = smul.addr %s151, 4
          %s153 = scalar_lea.vmem %s0, %s152
          // Predicated region
          $region29: #{gnn_forward.8} parent=27 // pred_check
            _
          $region30: #{gnn_forward.8} parent=27 // pred_check_branch
            %155 = sbr.rel (0) target = $region32
          $region31: #{gnn_forward.8} parent=27 // pred_region
            // Predicated region
            $region33: #{gnn_forward.8} parent=31 // pred_check
              _
            $region34: #{gnn_forward.8} parent=31 // pred_check_branch
              %157 = sbr.rel target = $region36
            $region35: #{gnn_forward.8} parent=31 // pred_region
              // Predicated region
              $region48: #{gnn_forward.8} parent=35 // pred_check
                _
              $region49: #{gnn_forward.8} parent=35 // pred_check_branch
                %202 = sbr.rel (0) target = $region51
              $region50: #{gnn_forward.8} parent=35 // pred_region
                loop: start=0, step=1, limit=1
                $region52: #{gnn_forward.8} parent=50 // loop_pre_header
                  _
                $region53: #{gnn_forward.8} parent=50 // loop_header
                  %s204 = sphi 0, %s208
                  %p205 = scmp.ge.s32.totalorder %s204, 1
                  %s209 = sphi %s153, %s153
                  %s210 = sphi %s148, %s148
                $region54: #{gnn_forward.8} parent=50 // loop_header_branch
                  %207 = sbr.rel (%p205) target = $region58
                $region55: #{gnn_forward.8} parent=50 // loop_body
                  _
                $region56: #{gnn_forward.8} parent=50 // loop_footer
                  %s208 = sadd.s32 1, %s204
                $region57: #{gnn_forward.8} parent=50 // loop_footer_branch
                  %203 = sbr.rel target = $region53
                $region58: #{gnn_forward.8} parent=50 // loop_exit
                  _
                loop: start=0, step=1, limit=1
                $region59: #{gnn_forward.8} parent=50 // loop_pre_header
                  _
                $region60: #{gnn_forward.8} parent=50 // loop_header
                  %s213 = sphi 0, %s217
                  %p214 = scmp.ge.s32.totalorder %s213, 1
                  %s218 = sphi %s153, %s153
                  %s219 = sphi %s148, %s148
                $region61: #{gnn_forward.8} parent=50 // loop_header_branch
                  %216 = sbr.rel (%p214) target = $region65
                $region62: #{gnn_forward.8} parent=50 // loop_body
                  %v220 = vld [vmem:[%s218] sm:$0xf]
                  %221 = vst [vmem:[%s219] sm:$0xf] %v220
                  %v222 = vld [vmem:[%s218 + $0x8] sm:$0xf]
                  %223 = vst [vmem:[%s219 + $0x4] sm:$0xf] %v222
                  %v224 = vld [vmem:[%s218 + $0x10] sm:$0xf]
                  %225 = vst [vmem:[%s219 + $0x8] sm:$0xf] %v224
                  %v226 = vld [vmem:[%s218 + $0x18] sm:$0xf]
                  %227 = vst [vmem:[%s219 + $0xc] sm:$0xf] %v226
                  %v228 = vld [vmem:[%s218 + $0x20] sm:$0xf]
                  %229 = vst [vmem:[%s219 + $0x10] sm:$0xf] %v228
                  %v230 = vld [vmem:[%s218 + $0x28] sm:$0xf]
                  %231 = vst [vmem:[%s219 + $0x14] sm:$0xf] %v230
                  %v232 = vld [vmem:[%s218 + $0x30] sm:$0xf]
                  %233 = vst [vmem:[%s219 + $0x18] sm:$0xf] %v232
                  %v234 = vld [vmem:[%s218 + $0x38] sm:$0xf]
                  %235 = vst [vmem:[%s219 + $0x1c] sm:$0xf] %v234
                  %v236 = vld [vmem:[%s218 + $0x40] sm:$0xf]
                  %237 = vst [vmem:[%s219 + $0x20] sm:$0xf] %v236
                  %v238 = vld [vmem:[%s218 + $0x48] sm:$0xf]
                  %239 = vst [vmem:[%s219 + $0x24] sm:$0xf] %v238
                  %v240 = vld [vmem:[%s218 + $0x50] sm:$0xf]
                  %241 = vst [vmem:[%s219 + $0x28] sm:$0xf] %v240
                  %v242 = vld [vmem:[%s218 + $0x58] sm:$0xf]
                  %243 = vst [vmem:[%s219 + $0x2c] sm:$0xf] %v242
                  %v244 = vld [vmem:[%s218 + $0x60] sm:$0xf]
                  %245 = vst [vmem:[%s219 + $0x30] sm:$0xf] %v244
                  %v246 = vld [vmem:[%s218 + $0x68] sm:$0xf]
                  %247 = vst [vmem:[%s219 + $0x34] sm:$0xf] %v246
                  %v248 = vld [vmem:[%s218 + $0x70] sm:$0xf]
                  %249 = vst [vmem:[%s219 + $0x38] sm:$0xf] %v248
                  %v250 = vld [vmem:[%s218 + $0x78] sm:$0xf]
                  %251 = vst [vmem:[%s219 + $0x3c] sm:$0xf] %v250
                $region63: #{gnn_forward.8} parent=50 // loop_footer
                  %s217 = sadd.s32 1, %s213
                $region64: #{gnn_forward.8} parent=50 // loop_footer_branch
                  %212 = sbr.rel target = $region60
                $region65: #{gnn_forward.8} parent=50 // loop_exit
                  _
              $region51: #{gnn_forward.8} parent=35 // pred_fallthru
                _
            $region36: #{gnn_forward.8} parent=31 // pred_fallthru
              _
            // Predicated region
            $region37: #{gnn_forward.8} parent=31 // pred_check
              _
            $region38: #{gnn_forward.8} parent=31 // pred_check_branch
              %159 = sbr.rel (0) target = $region40
            $region39: #{gnn_forward.8} parent=31 // pred_region
              loop: start=0, step=1, limit=1
              $region41: #{gnn_forward.8} parent=39 // loop_pre_header
                _
              $region42: #{gnn_forward.8} parent=39 // loop_header
                %s162 = sphi 0, %s166
                %p163 = scmp.ge.s32.totalorder %s162, 1
                %s167 = sphi %s153, %s153
                %s168 = sphi %s148, %s148
              $region43: #{gnn_forward.8} parent=39 // loop_header_branch
                %165 = sbr.rel (%p163) target = $region47
              $region44: #{gnn_forward.8} parent=39 // loop_body
                %v169 = vld [vmem:[%s167] sm:$0xf]
                %170 = vst [vmem:[%s168] sm:$0xf] %v169
                %v171 = vld [vmem:[%s167 + $0x8] sm:$0xf]
                %172 = vst [vmem:[%s168 + $0x4] sm:$0xf] %v171
                %v173 = vld [vmem:[%s167 + $0x10] sm:$0xf]
                %174 = vst [vmem:[%s168 + $0x8] sm:$0xf] %v173
                %v175 = vld [vmem:[%s167 + $0x18] sm:$0xf]
                %176 = vst [vmem:[%s168 + $0xc] sm:$0xf] %v175
                %v177 = vld [vmem:[%s167 + $0x20] sm:$0xf]
                %178 = vst [vmem:[%s168 + $0x10] sm:$0xf] %v177
                %v179 = vld [vmem:[%s167 + $0x28] sm:$0xf]
                %180 = vst [vmem:[%s168 + $0x14] sm:$0xf] %v179
                %v181 = vld [vmem:[%s167 + $0x30] sm:$0xf]
                %182 = vst [vmem:[%s168 + $0x18] sm:$0xf] %v181
                %v183 = vld [vmem:[%s167 + $0x38] sm:$0xf]
                %184 = vst [vmem:[%s168 + $0x1c] sm:$0xf] %v183
                %v185 = vld [vmem:[%s167 + $0x40] sm:$0xf]
                %186 = vst [vmem:[%s168 + $0x20] sm:$0xf] %v185
                %v187 = vld [vmem:[%s167 + $0x48] sm:$0xf]
                %188 = vst [vmem:[%s168 + $0x24] sm:$0xf] %v187
                %v189 = vld [vmem:[%s167 + $0x50] sm:$0xf]
                %190 = vst [vmem:[%s168 + $0x28] sm:$0xf] %v189
                %v191 = vld [vmem:[%s167 + $0x58] sm:$0xf]
                %192 = vst [vmem:[%s168 + $0x2c] sm:$0xf] %v191
                %v193 = vld [vmem:[%s167 + $0x60] sm:$0xf]
                %194 = vst [vmem:[%s168 + $0x30] sm:$0xf] %v193
                %v195 = vld [vmem:[%s167 + $0x68] sm:$0xf]
                %196 = vst [vmem:[%s168 + $0x34] sm:$0xf] %v195
                %v197 = vld [vmem:[%s167 + $0x70] sm:$0xf]
                %198 = vst [vmem:[%s168 + $0x38] sm:$0xf] %v197
                %v199 = vld [vmem:[%s167 + $0x78] sm:$0xf]
                %200 = vst [vmem:[%s168 + $0x3c] sm:$0xf] %v199
              $region45: #{gnn_forward.8} parent=39 // loop_footer
                %s166 = sadd.s32 1, %s162
              $region46: #{gnn_forward.8} parent=39 // loop_footer_branch
                %161 = sbr.rel target = $region42
              $region47: #{gnn_forward.8} parent=39 // loop_exit
                _
            $region40: #{gnn_forward.8} parent=31 // pred_fallthru
              _
          $region32: #{gnn_forward.8} parent=27 // pred_fallthru
            _
          %252 = vnop
        $region28: #{gnn_forward.8} parent=23 // pred_fallthru
          _
      $region24: #{gnn_forward.8} parent=5 // pred_fallthru
        _
      %p253 = scmp.le.s32.totalorder 1, %s9
      %p254 = scmp.lt.s32.totalorder %s9, 5
      %p255 = pnand %p253, %p254
      %p256 = pneg %p255
      // Predicated region
      $region66: #{gnn_forward.8} parent=5 // pred_check
        _
      $region67: #{gnn_forward.8} parent=5 // pred_check_branch
        %258 = sbr.rel (%p255) target = $region69
      $region68: #{gnn_forward.8} parent=5 // pred_region
        %s259 = ssub.s32 %s9, 1
        %s260 = sand.u32 %s36, 1
        %s261 = sand.u32 %s36, 1
        %s262 = smul.addr %s261, 64
        %s263 = scalar_lea.vmem [#allocation3], %s262
        // Predicated region
        $region70: #{gnn_forward.8} parent=68 // pred_check
          %p264 = pneg %p49
        $region71: #{gnn_forward.8} parent=68 // pred_check_branch
          %266 = sbr.rel (%p264) target = $region73
        $region72: #{gnn_forward.8} parent=68 // pred_region
          _
        $region73: #{gnn_forward.8} parent=68 // pred_fallthru
          _
        %s267 = sand.u32 %s36, 1
        %s268 = sand.u32 %s36, 1
        %s269 = smul.addr %s268, 64
        %s270 = scalar_lea.vmem [#allocation3], %s269
        %p271 = pneg %p49
        %p272 = pneg %p46
        %p273 = pneg %p70
        %p274 = pneg %p67
        %p275 = pneg %p91
        %p276 = pneg %p88
        %p277 = pneg %p117
        %p278 = pneg %p114
        %s279 = smul.u32 16, %s18
        %p280 = scmp.lt.s32.totalorder %s279, 31
        %s281 = scalar_select %p280, %s279, 31
        %s282 = smul.addr %s281, 4
        %s283 = scalar_lea.vmem %s3, %s282
        %s284 = smul.u32 16, %s18
        %s285 = smul.u32 16, %s18
        %p286 = scmp.lt.s32.totalorder %s285, 31
        %s287 = scalar_select %p286, %s285, 31
        %s288 = smul.addr %s287, 4
        %s289 = scalar_lea.vmem %s3, %s288
        %s290 = smul.u32 16, %s18
        %p292 = scmp.eq.s32.totalorder %s19, 0
        // Predicated region
        $region74: #{gnn_forward.8} parent=68 // pred_check
          %p293 = pneg %p292
        $region75: #{gnn_forward.8} parent=68 // pred_check_branch
          %295 = sbr.rel (%p293) target = $region77
        $region76: #{gnn_forward.8} parent=68 // pred_region
          %296 = vst [vmem:[#allocation2] sm:$0xff] 0.0
          %297 = vst [vmem:[#allocation2 + $0x8] sm:$0xff] 0.0
          %298 = vst [vmem:[#allocation2 + $0x10] sm:$0xff] 0.0
          %299 = vst [vmem:[#allocation2 + $0x18] sm:$0xff] 0.0
          %300 = vst [vmem:[#allocation2 + $0x20] sm:$0xff] 0.0
          %301 = vst [vmem:[#allocation2 + $0x28] sm:$0xff] 0.0
          %302 = vst [vmem:[#allocation2 + $0x30] sm:$0xff] 0.0
          %303 = vst [vmem:[#allocation2 + $0x38] sm:$0xff] 0.0
          %304 = vst [vmem:[#allocation2 + $0x40] sm:$0xff] 0.0
          %305 = vst [vmem:[#allocation2 + $0x48] sm:$0xff] 0.0
          %306 = vst [vmem:[#allocation2 + $0x50] sm:$0xff] 0.0
          %307 = vst [vmem:[#allocation2 + $0x58] sm:$0xff] 0.0
          %308 = vst [vmem:[#allocation2 + $0x60] sm:$0xff] 0.0
          %309 = vst [vmem:[#allocation2 + $0x68] sm:$0xff] 0.0
          %310 = vst [vmem:[#allocation2 + $0x70] sm:$0xff] 0.0
          %311 = vst [vmem:[#allocation2 + $0x78] sm:$0xff] 0.0
        $region77: #{gnn_forward.8} parent=68 // pred_fallthru
          _
        %s312 = smul.u32 %s19, 128
        %s313 = sshra.s32 %s312, 3
        %s314 = sand.u32 %s312, 7
        %s315 = smul.addr %s313, 4
        %s316 = scalar_lea.vmem %s1, %s315
        %v317 = vld [vmem:[%s316] sm:$0xf]
        %v318 = vld [vmem:[%s316 + $0x4] sm:$0xf]
        %v319 = vld [vmem:[%s316 + $0x8] sm:$0xf]
        %v320 = vld [vmem:[%s316 + $0xc] sm:$0xf]
        %v321 = vld [vmem:[%s316 + $0x10] sm:$0xf]
        %v322 = vld [vmem:[%s316 + $0x14] sm:$0xf]
        %v323 = vld [vmem:[%s316 + $0x18] sm:$0xf]
        %v324 = vld [vmem:[%s316 + $0x1c] sm:$0xf]
        %v325 = vld [vmem:[%s316 + $0x20] sm:$0xf]
        %v326 = vld [vmem:[%s316 + $0x24] sm:$0xf]
        %v327 = vld [vmem:[%s316 + $0x28] sm:$0xf]
        %v328 = vld [vmem:[%s316 + $0x2c] sm:$0xf]
        %v329 = vld [vmem:[%s316 + $0x30] sm:$0xf]
        %v330 = vld [vmem:[%s316 + $0x34] sm:$0xf]
        %v331 = vld [vmem:[%s316 + $0x38] sm:$0xf]
        %v332 = vld [vmem:[%s316 + $0x3c] sm:$0xf]
        %v333 = vld [vmem:[#allocation2] sm:$0xff]
        %v334 = vld [vmem:[#allocation2 + $0x8] sm:$0xff]
        %v335 = vld [vmem:[#allocation2 + $0x10] sm:$0xff]
        %v336 = vld [vmem:[#allocation2 + $0x18] sm:$0xff]
        %v337 = vld [vmem:[#allocation2 + $0x20] sm:$0xff]
        %v338 = vld [vmem:[#allocation2 + $0x28] sm:$0xff]
        %v339 = vld [vmem:[#allocation2 + $0x30] sm:$0xff]
        %v340 = vld [vmem:[#allocation2 + $0x38] sm:$0xff]
        %v341 = vld [vmem:[#allocation2 + $0x40] sm:$0xff]
        %v342 = vld [vmem:[#allocation2 + $0x48] sm:$0xff]
        %v343 = vld [vmem:[#allocation2 + $0x50] sm:$0xff]
        %v344 = vld [vmem:[#allocation2 + $0x58] sm:$0xff]
        %v345 = vld [vmem:[#allocation2 + $0x60] sm:$0xff]
        %v346 = vld [vmem:[#allocation2 + $0x68] sm:$0xff]
        %v347 = vld [vmem:[#allocation2 + $0x70] sm:$0xff]
        %v348 = vld [vmem:[#allocation2 + $0x78] sm:$0xff]
        %v349 = vld [vmem:[%s263] sm:$0xf]
        %v350 = vld [vmem:[%s263 + $0x4] sm:$0xf]
        %v351 = vld [vmem:[%s263 + $0x8] sm:$0xf]
        %v352 = vld [vmem:[%s263 + $0xc] sm:$0xf]
        %v353 = vld [vmem:[%s263 + $0x10] sm:$0xf]
        %v354 = vld [vmem:[%s263 + $0x14] sm:$0xf]
        %v355 = vld [vmem:[%s263 + $0x18] sm:$0xf]
        %v356 = vld [vmem:[%s263 + $0x1c] sm:$0xf]
        %v357 = vld [vmem:[%s263 + $0x20] sm:$0xf]
        %v358 = vld [vmem:[%s263 + $0x24] sm:$0xf]
        %v359 = vld [vmem:[%s263 + $0x28] sm:$0xf]
        %v360 = vld [vmem:[%s263 + $0x2c] sm:$0xf]
        %v361 = vld [vmem:[%s263 + $0x30] sm:$0xf]
        %v362 = vld [vmem:[%s263 + $0x34] sm:$0xf]
        %v363 = vld [vmem:[%s263 + $0x38] sm:$0xf]
        %v364 = vld [vmem:[%s263 + $0x3c] sm:$0xf]
        %v381 = vunpack.c.l.b16 %v349
        %v382 = vunpack.c.l.b16 %v350
        %v383 = vunpack.c.l.b16 %v351
        %v384 = vunpack.c.l.b16 %v352
        %v385 = vunpack.c.l.b16 %v353
        %v386 = vunpack.c.l.b16 %v354
        %v387 = vunpack.c.l.b16 %v355
        %v388 = vunpack.c.l.b16 %v356
        %v389 = vunpack.c.l.b16 %v357
        %v390 = vunpack.c.l.b16 %v358
        %v391 = vunpack.c.l.b16 %v359
        %v392 = vunpack.c.l.b16 %v360
        %v393 = vunpack.c.l.b16 %v361
        %v394 = vunpack.c.l.b16 %v362
        %v395 = vunpack.c.l.b16 %v363
        %v396 = vunpack.c.l.b16 %v364
        %v397 = vpack.c.b16 %v382, %v381
        %v398 = vpack.c.b16 %v384, %v383
        %v399 = vpack.c.b16 %v386, %v385
        %v400 = vpack.c.b16 %v388, %v387
        %v401 = vpack.c.b16 %v390, %v389
        %v402 = vpack.c.b16 %v392, %v391
        %v403 = vpack.c.b16 %v394, %v393
        %v404 = vpack.c.b16 %v396, %v395
        %v429 = vunpack.c.l.b16 %v317
        %v430 = vunpack.c.l.b16 %v318
        %v431 = vunpack.c.l.b16 %v319
        %v432 = vunpack.c.l.b16 %v320
        %v433 = vunpack.c.l.b16 %v321
        %v434 = vunpack.c.l.b16 %v322
        %v435 = vunpack.c.l.b16 %v323
        %v436 = vunpack.c.l.b16 %v324
        %v437 = vunpack.c.l.b16 %v325
        %v438 = vunpack.c.l.b16 %v326
        %v439 = vunpack.c.l.b16 %v327
        %v440 = vunpack.c.l.b16 %v328
        %v441 = vunpack.c.l.b16 %v329
        %v442 = vunpack.c.l.b16 %v330
        %v443 = vunpack.c.l.b16 %v331
        %v444 = vunpack.c.l.b16 %v332
        %v445 = vpack.c.b16 %v430, %v429
        %v446 = vpack.c.b16 %v432, %v431
        %v447 = vpack.c.b16 %v434, %v433
        %v448 = vpack.c.b16 %v436, %v435
        %v449 = vpack.c.b16 %v438, %v437
        %v450 = vpack.c.b16 %v440, %v439
        %v451 = vpack.c.b16 %v442, %v441
        %v452 = vpack.c.b16 %v444, %v443
        %461 = vmatprep.subr.bf16.mxu0 0
        %462 = vmatpush1.bf16.msra.mxu0 %v445
        %463 = vmatprep.subr.bf16.mxu0 0
        %464 = vmatpush1.bf16.msra.mxu0 %v446
        %465 = vmatprep.subr.bf16.mxu0 0
        %466 = vmatpush1.bf16.msra.mxu0 %v447
        %467 = vmatprep.subr.bf16.mxu0 0
        %468 = vmatpush1.bf16.msra.mxu0 %v448
        %469 = vmatprep.subr.bf16.mxu0 0
        %470 = vmatpush1.bf16.msra.mxu0 %v449
        %471 = vmatprep.subr.bf16.mxu0 0
        %472 = vmatpush1.bf16.msra.mxu0 %v450
        %473 = vmatprep.subr.bf16.mxu0 0
        %474 = vmatpush1.bf16.msra.mxu0 %v451
        %475 = vmatprep.subr.bf16.mxu0 0
        %476 = vmatpush1.bf16.msra.mxu0 %v452
        %477 = vmatprep.subr.bf16.mxu0 0
        %478 = vmatpush1.bf16.msra.mxu0 0
        %479 = vmatprep.subr.bf16.mxu0 0
        %480 = vmatpush1.bf16.msra.mxu0 0
        %481 = vmatprep.subr.bf16.mxu0 0
        %482 = vmatpush1.bf16.msra.mxu0 0
        %483 = vmatprep.subr.bf16.mxu0 0
        %484 = vmatpush1.bf16.msra.mxu0 0
        %485 = vmatprep.subr.bf16.mxu0 0
        %486 = vmatpush1.bf16.msra.mxu0 0
        %487 = vmatprep.subr.bf16.mxu0 0
        %488 = vmatpush1.bf16.msra.mxu0 0
        %489 = vmatprep.subr.bf16.mxu0 0
        %490 = vmatpush1.bf16.msra.mxu0 0
        %491 = vmatprep.subr.bf16.mxu0 0
        %492 = vmatpush1.bf16.msra.mxu0 0
        %493 = vmatprep.mubr.bf16.mxu0 0
        %494 = vmatmul.mubr.bf16.gmra.mrb[0].mxu0 %v397
        %v495 = vpop.f32.mrb[0].mxu0
        %v496 = vadd.f32 0.0, %v495
        %v497 = vpop.f32.mrb[0].mxu0
        %v498 = vpop.f32.mrb[0].mxu0
        %v499 = vadd.f32 0.0, %v498
        %v500 = vpop.f32.mrb[0].mxu0
        %501 = vmatprep.mubr.bf16.mxu0 0
        %502 = vmatmul.mubr.bf16.gmra.mrb[0].mxu0 %v398
        %v503 = vpop.f32.mrb[0].mxu0
        %v504 = vadd.f32 0.0, %v503
        %v505 = vpop.f32.mrb[0].mxu0
        %v506 = vpop.f32.mrb[0].mxu0
        %v507 = vadd.f32 0.0, %v506
        %v508 = vpop.f32.mrb[0].mxu0
        %509 = vmatprep.mubr.bf16.mxu0 0
        %510 = vmatmul.mubr.bf16.gmra.mrb[0].mxu0 %v399
        %v511 = vpop.f32.mrb[0].mxu0
        %v512 = vadd.f32 0.0, %v511
        %v513 = vpop.f32.mrb[0].mxu0
        %v514 = vpop.f32.mrb[0].mxu0
        %v515 = vadd.f32 0.0, %v514
        %v516 = vpop.f32.mrb[0].mxu0
        %517 = vmatprep.mubr.bf16.mxu0 0
        %518 = vmatmul.mubr.bf16.gmra.mrb[0].mxu0 %v400
        %v519 = vpop.f32.mrb[0].mxu0
        %v520 = vadd.f32 0.0, %v519
        %v521 = vpop.f32.mrb[0].mxu0
        %v522 = vpop.f32.mrb[0].mxu0
        %v523 = vadd.f32 0.0, %v522
        %v524 = vpop.f32.mrb[0].mxu0
        %525 = vmatprep.mubr.bf16.mxu0 0
        %526 = vmatmul.mubr.bf16.gmra.mrb[0].mxu0 %v401
        %v527 = vpop.f32.mrb[0].mxu0
        %v528 = vadd.f32 0.0, %v527
        %v529 = vpop.f32.mrb[0].mxu0
        %v530 = vpop.f32.mrb[0].mxu0
        %v531 = vadd.f32 0.0, %v530
        %v532 = vpop.f32.mrb[0].mxu0
        %533 = vmatprep.mubr.bf16.mxu0 0
        %534 = vmatmul.mubr.bf16.gmra.mrb[0].mxu0 %v402
        %v535 = vpop.f32.mrb[0].mxu0
        %v536 = vadd.f32 0.0, %v535
        %v537 = vpop.f32.mrb[0].mxu0
        %v538 = vpop.f32.mrb[0].mxu0
        %v539 = vadd.f32 0.0, %v538
        %v540 = vpop.f32.mrb[0].mxu0
        %541 = vmatprep.mubr.bf16.mxu0 0
        %542 = vmatmul.mubr.bf16.gmra.mrb[0].mxu0 %v403
        %v543 = vpop.f32.mrb[0].mxu0
        %v544 = vadd.f32 0.0, %v543
        %v545 = vpop.f32.mrb[0].mxu0
        %v546 = vpop.f32.mrb[0].mxu0
        %v547 = vadd.f32 0.0, %v546
        %v548 = vpop.f32.mrb[0].mxu0
        %549 = vmatprep.mubr.bf16.mxu0 0
        %550 = vmatmul.mubr.bf16.gmra.mrb[0].mxu0 %v404
        %v551 = vpop.f32.mrb[0].mxu0
        %v552 = vadd.f32 0.0, %v551
        %v553 = vpop.f32.mrb[0].mxu0
        %v554 = vpop.f32.mrb[0].mxu0
        %v555 = vadd.f32 0.0, %v554
        %v556 = vpop.f32.mrb[0].mxu0
        %557 = vdwg.mxu0
        %v558 = vadd.f32 %v333, %v496
        %v559 = vadd.f32 %v334, %v499
        %v560 = vadd.f32 %v335, %v504
        %v561 = vadd.f32 %v336, %v507
        %v562 = vadd.f32 %v337, %v512
        %v563 = vadd.f32 %v338, %v515
        %v564 = vadd.f32 %v339, %v520
        %v565 = vadd.f32 %v340, %v523
        %v566 = vadd.f32 %v341, %v528
        %v567 = vadd.f32 %v342, %v531
        %v568 = vadd.f32 %v343, %v536
        %v569 = vadd.f32 %v344, %v539
        %v570 = vadd.f32 %v345, %v544
        %v571 = vadd.f32 %v346, %v547
        %v572 = vadd.f32 %v347, %v552
        %v573 = vadd.f32 %v348, %v555
        %574 = vst [vmem:[#allocation2] sm:$0xff] %v558
        %575 = vst [vmem:[#allocation2 + $0x8] sm:$0xff] %v559
        %576 = vst [vmem:[#allocation2 + $0x10] sm:$0xff] %v560
        %577 = vst [vmem:[#allocation2 + $0x18] sm:$0xff] %v561
        %578 = vst [vmem:[#allocation2 + $0x20] sm:$0xff] %v562
        %579 = vst [vmem:[#allocation2 + $0x28] sm:$0xff] %v563
        %580 = vst [vmem:[#allocation2 + $0x30] sm:$0xff] %v564
        %581 = vst [vmem:[#allocation2 + $0x38] sm:$0xff] %v565
        %582 = vst [vmem:[#allocation2 + $0x40] sm:$0xff] %v566
        %583 = vst [vmem:[#allocation2 + $0x48] sm:$0xff] %v567
        %584 = vst [vmem:[#allocation2 + $0x50] sm:$0xff] %v568
        %585 = vst [vmem:[#allocation2 + $0x58] sm:$0xff] %v569
        %586 = vst [vmem:[#allocation2 + $0x60] sm:$0xff] %v570
        %587 = vst [vmem:[#allocation2 + $0x68] sm:$0xff] %v571
        %588 = vst [vmem:[#allocation2 + $0x70] sm:$0xff] %v572
        %589 = vst [vmem:[#allocation2 + $0x78] sm:$0xff] %v573
        %p590 = scmp.eq.s32.totalorder %s19, 1
        // Predicated region
        $region78: #{gnn_forward.8} parent=68 // pred_check
          %p591 = pneg %p590
        $region79: #{gnn_forward.8} parent=68 // pred_check_branch
          %593 = sbr.rel (%p591) target = $region81
        $region80: #{gnn_forward.8} parent=68 // pred_region
          %v594 = vld [vmem:[#allocation2] sm:$0xff]
          %v595 = vld [vmem:[#allocation2 + $0x8] sm:$0xff]
          %v596 = vld [vmem:[#allocation2 + $0x10] sm:$0xff]
          %v597 = vld [vmem:[#allocation2 + $0x18] sm:$0xff]
          %v598 = vld [vmem:[#allocation2 + $0x20] sm:$0xff]
          %v599 = vld [vmem:[#allocation2 + $0x28] sm:$0xff]
          %v600 = vld [vmem:[#allocation2 + $0x30] sm:$0xff]
          %v601 = vld [vmem:[#allocation2 + $0x38] sm:$0xff]
          %v602 = vld [vmem:[#allocation2 + $0x40] sm:$0xff]
          %v603 = vld [vmem:[#allocation2 + $0x48] sm:$0xff]
          %v604 = vld [vmem:[#allocation2 + $0x50] sm:$0xff]
          %v605 = vld [vmem:[#allocation2 + $0x58] sm:$0xff]
          %v606 = vld [vmem:[#allocation2 + $0x60] sm:$0xff]
          %v607 = vld [vmem:[#allocation2 + $0x68] sm:$0xff]
          %v608 = vld [vmem:[#allocation2 + $0x70] sm:$0xff]
          %v609 = vld [vmem:[#allocation2 + $0x78] sm:$0xff]
          %v610 = vld [vmem:[%s2] sm:$0x1]
          %v612 = vlaneseq
          %v613 = vshrl.u32 %v612, 7
          %v614 = vsub.s32 0, %v613
          %v615 = vrot.slane %v610, %v614
          %v617 = vadd.f32 %v594, %v615
          %v618 = vadd.f32 %v595, %v615
          %v619 = vadd.f32 %v596, %v615
          %v620 = vadd.f32 %v597, %v615
          %v621 = vadd.f32 %v598, %v615
          %v622 = vadd.f32 %v599, %v615
          %v623 = vadd.f32 %v600, %v615
          %v624 = vadd.f32 %v601, %v615
          %v625 = vadd.f32 %v602, %v615
          %v626 = vadd.f32 %v603, %v615
          %v627 = vadd.f32 %v604, %v615
          %v628 = vadd.f32 %v605, %v615
          %v629 = vadd.f32 %v606, %v615
          %v630 = vadd.f32 %v607, %v615
          %v631 = vadd.f32 %v608, %v615
          %v632 = vadd.f32 %v609, %v615
          %v633 = vmul.f32 %v617, %v617
          %v634 = vmul.f32 %v618, %v618
          %v635 = vmul.f32 %v619, %v619
          %v636 = vmul.f32 %v620, %v620
          %v637 = vmul.f32 %v621, %v621
          %v638 = vmul.f32 %v622, %v622
          %v639 = vmul.f32 %v623, %v623
          %v640 = vmul.f32 %v624, %v624
          %v641 = vmul.f32 %v625, %v625
          %v642 = vmul.f32 %v626, %v626
          %v643 = vmul.f32 %v627, %v627
          %v644 = vmul.f32 %v628, %v628
          %v645 = vmul.f32 %v629, %v629
          %v646 = vmul.f32 %v630, %v630
          %v647 = vmul.f32 %v631, %v631
          %v648 = vmul.f32 %v632, %v632
          %649 = vadd.xlane.f32.xlu0 %v633
          %v650 = vpop.xlane.xlu0 %649
          %651 = vadd.xlane.f32.xlu0 %v634
          %v652 = vpop.xlane.xlu0 %651
          %653 = vadd.xlane.f32.xlu0 %v635
          %v654 = vpop.xlane.xlu0 %653
          %655 = vadd.xlane.f32.xlu0 %v636
          %v656 = vpop.xlane.xlu0 %655
          %657 = vadd.xlane.f32.xlu0 %v637
          %v658 = vpop.xlane.xlu0 %657
          %659 = vadd.xlane.f32.xlu0 %v638
          %v660 = vpop.xlane.xlu0 %659
          %661 = vadd.xlane.f32.xlu0 %v639
          %v662 = vpop.xlane.xlu0 %661
          %663 = vadd.xlane.f32.xlu0 %v640
          %v664 = vpop.xlane.xlu0 %663
          %665 = vadd.xlane.f32.xlu0 %v641
          %v666 = vpop.xlane.xlu0 %665
          %667 = vadd.xlane.f32.xlu0 %v642
          %v668 = vpop.xlane.xlu0 %667
          %669 = vadd.xlane.f32.xlu0 %v643
          %v670 = vpop.xlane.xlu0 %669
          %671 = vadd.xlane.f32.xlu0 %v644
          %v672 = vpop.xlane.xlu0 %671
          %673 = vadd.xlane.f32.xlu0 %v645
          %v674 = vpop.xlane.xlu0 %673
          %675 = vadd.xlane.f32.xlu0 %v646
          %v676 = vpop.xlane.xlu0 %675
          %677 = vadd.xlane.f32.xlu0 %v647
          %v678 = vpop.xlane.xlu0 %677
          %679 = vadd.xlane.f32.xlu0 %v648
          %v680 = vpop.xlane.xlu0 %679
          %v681 = vmax.f32 %v650, 1e-12
          %v682 = vmax.f32 %v652, 1e-12
          %v683 = vmax.f32 %v654, 1e-12
          %v684 = vmax.f32 %v656, 1e-12
          %v685 = vmax.f32 %v658, 1e-12
          %v686 = vmax.f32 %v660, 1e-12
          %v687 = vmax.f32 %v662, 1e-12
          %v688 = vmax.f32 %v664, 1e-12
          %v689 = vmax.f32 %v666, 1e-12
          %v690 = vmax.f32 %v668, 1e-12
          %v691 = vmax.f32 %v670, 1e-12
          %v692 = vmax.f32 %v672, 1e-12
          %v693 = vmax.f32 %v674, 1e-12
          %v694 = vmax.f32 %v676, 1e-12
          %v695 = vmax.f32 %v678, 1e-12
          %v696 = vmax.f32 %v680, 1e-12
          %v697 = vrsqrt.pop %v681
          %v698 = vrsqrt.pop %v682
          %v699 = vrsqrt.pop %v683
          %v700 = vrsqrt.pop %v684
          %v701 = vrsqrt.pop %v685
          %v702 = vrsqrt.pop %v686
          %v703 = vrsqrt.pop %v687
          %v704 = vrsqrt.pop %v688
          %v705 = vrsqrt.pop %v689
          %v706 = vrsqrt.pop %v690
          %v707 = vrsqrt.pop %v691
          %v708 = vrsqrt.pop %v692
          %v709 = vrsqrt.pop %v693
          %v710 = vrsqrt.pop %v694
          %v711 = vrsqrt.pop %v695
          %v712 = vrsqrt.pop %v696
          %v713 = vmul.f32 %v617, %v697
          %v714 = vmul.f32 %v618, %v698
          %v715 = vmul.f32 %v619, %v699
          %v716 = vmul.f32 %v620, %v700
          %v717 = vmul.f32 %v621, %v701
          %v718 = vmul.f32 %v622, %v702
          %v719 = vmul.f32 %v623, %v703
          %v720 = vmul.f32 %v624, %v704
          %v721 = vmul.f32 %v625, %v705
          %v722 = vmul.f32 %v626, %v706
          %v723 = vmul.f32 %v627, %v707
          %v724 = vmul.f32 %v628, %v708
          %v725 = vmul.f32 %v629, %v709
          %v726 = vmul.f32 %v630, %v710
          %v727 = vmul.f32 %v631, %v711
          %v728 = vmul.f32 %v632, %v712
          %v729 = vpack.c.bf16 %v714, %v713
          %v730 = vpack.c.bf16 %v716, %v715
          %v731 = vpack.c.bf16 %v718, %v717
          %v732 = vpack.c.bf16 %v720, %v719
          %v733 = vpack.c.bf16 %v722, %v721
          %v734 = vpack.c.bf16 %v724, %v723
          %v735 = vpack.c.bf16 %v726, %v725
          %v736 = vpack.c.bf16 %v728, %v727
          %v745 = vunpack.c.l.b16 %v729
          %v746 = vunpack.c.h.b16 %v729
          %v747 = vunpack.c.l.b16 %v730
          %v748 = vunpack.c.h.b16 %v730
          %v749 = vunpack.c.l.b16 %v731
          %v750 = vunpack.c.h.b16 %v731
          %v751 = vunpack.c.l.b16 %v732
          %v752 = vunpack.c.h.b16 %v732
          %v753 = vunpack.c.l.b16 %v733
          %v754 = vunpack.c.h.b16 %v733
          %v755 = vunpack.c.l.b16 %v734
          %v756 = vunpack.c.h.b16 %v734
          %v757 = vunpack.c.l.b16 %v735
          %v758 = vunpack.c.h.b16 %v735
          %v759 = vunpack.c.l.b16 %v736
          %v760 = vunpack.c.h.b16 %v736
          %v761 = vpack.c.b16 %v745, %v745
          %v762 = vpack.c.b16 %v746, %v746
          %v763 = vpack.c.b16 %v747, %v747
          %v764 = vpack.c.b16 %v748, %v748
          %v765 = vpack.c.b16 %v749, %v749
          %v766 = vpack.c.b16 %v750, %v750
          %v767 = vpack.c.b16 %v751, %v751
          %v768 = vpack.c.b16 %v752, %v752
          %v769 = vpack.c.b16 %v753, %v753
          %v770 = vpack.c.b16 %v754, %v754
          %v771 = vpack.c.b16 %v755, %v755
          %v772 = vpack.c.b16 %v756, %v756
          %v773 = vpack.c.b16 %v757, %v757
          %v774 = vpack.c.b16 %v758, %v758
          %v775 = vpack.c.b16 %v759, %v759
          %v776 = vpack.c.b16 %v760, %v760
          %793 = vst [vmem:[%s289] sm:$0xf] %v761
          %794 = vst [vmem:[%s289 + $0x4] sm:$0xf] %v762
          %795 = vst [vmem:[%s289 + $0x8] sm:$0xf] %v763
          %796 = vst [vmem:[%s289 + $0xc] sm:$0xf] %v764
          %797 = vst [vmem:[%s289 + $0x10] sm:$0xf] %v765
          %798 = vst [vmem:[%s289 + $0x14] sm:$0xf] %v766
          %799 = vst [vmem:[%s289 + $0x18] sm:$0xf] %v767
          %800 = vst [vmem:[%s289 + $0x1c] sm:$0xf] %v768
          %801 = vst [vmem:[%s289 + $0x20] sm:$0xf] %v769
          %802 = vst [vmem:[%s289 + $0x24] sm:$0xf] %v770
          %803 = vst [vmem:[%s289 + $0x28] sm:$0xf] %v771
          %804 = vst [vmem:[%s289 + $0x2c] sm:$0xf] %v772
          %805 = vst [vmem:[%s289 + $0x30] sm:$0xf] %v773
          %806 = vst [vmem:[%s289 + $0x34] sm:$0xf] %v774
          %807 = vst [vmem:[%s289 + $0x38] sm:$0xf] %v775
          %808 = vst [vmem:[%s289 + $0x3c] sm:$0xf] %v776
        $region81: #{gnn_forward.8} parent=68 // pred_fallthru
          _
        %s809 = smul.u32 16, %s18
        %p810 = scmp.lt.s32.totalorder %s809, 31
        %s811 = scalar_select %p810, %s809, 31
        %s812 = smul.addr %s811, 4
        %s813 = scalar_lea.vmem %s3, %s812
        // Predicated region
        $region82: #{gnn_forward.8} parent=68 // pred_check
          %p814 = pneg %p114
        $region83: #{gnn_forward.8} parent=68 // pred_check_branch
          %816 = sbr.rel (%p814) target = $region85
        $region84: #{gnn_forward.8} parent=68 // pred_region
          %s817 = smul.u32 16, %s18
        $region85: #{gnn_forward.8} parent=68 // pred_fallthru
          _
      $region69: #{gnn_forward.8} parent=5 // pred_fallthru
        _
      %p818 = scmp.le.s32.totalorder 2, %s9
      // Predicated region
      $region86: #{gnn_forward.8} parent=5 // pred_check
        %p819 = pneg %p818
      $region87: #{gnn_forward.8} parent=5 // pred_check_branch
        %821 = sbr.rel (%p819) target = $region89
      $region88: #{gnn_forward.8} parent=5 // pred_region
        %s822 = ssub.s32 %s9, 2
        // Predicated region
        $region90: #{gnn_forward.8} parent=88 // pred_check
          %p823 = pneg %p120
        $region91: #{gnn_forward.8} parent=88 // pred_check_branch
          %825 = sbr.rel (%p823) target = $region93
        $region92: #{gnn_forward.8} parent=88 // pred_region
          %s826 = smul.u32 16, %s20
          %p827 = scmp.lt.s32.totalorder %s826, 31
          %s828 = scalar_select %p827, %s826, 31
          %s829 = smul.addr %s828, 4
          %s830 = scalar_lea.vmem %s3, %s829
        $region93: #{gnn_forward.8} parent=88 // pred_fallthru
          _
      $region89: #{gnn_forward.8} parent=5 // pred_fallthru
        _
    $region6: #{gnn_forward.8} parent=1 // loop_footer
      %s13 = sadd.s32 1, %s9
    $region7: #{gnn_forward.8} parent=1 // loop_footer_branch
      %8 = sbr.rel target = $region3
    $region8: #{gnn_forward.8} parent=1 // loop_exit
      _

// kernel: gnn_forward.6
$region0: #{gnn_forward.6}
  #allocation0 [shape = 'u32[]', space=smem, size = 0x4, offset = 0x4, fixed_abs, tag = 'smem constant byte address 0x4 - core index']
  #allocation1 [shape = 'u32[144,128]{1,0:T(1,128)}', space=vmem, size = 0x12000, scoped, tag = 'internal scratch']
  #allocation2 [shape = 'f32[128,128]{1,0:T(8,128)}', space=vmem, size = 0x10000, scoped, tag = 'scratch operand']
  %s0 = inlined_call_operand.vmem [shape: bf16[256,256], index: 0, kind: input, shape index: {}]
  %s1 = inlined_call_operand.vmem [shape: bf16[256,128], index: 1, kind: input, shape index: {}]
  %s2 = inlined_call_operand.vmem [shape: f32[1,128], index: 2, kind: input, shape index: {}]
  %s3 = inlined_call_operand.vmem [shape: bf16[256,128], index: 3, kind: output, shape index: {}]
  %s4 = sld [smem:[#allocation0]]
  $region94: #{gnn_forward.6} parent=0
    _
  %s6 = ssub.s32 1, %s4
  %s7 = scalar_select 0, %s6, %s4
  $region1: #{gnn_forward.6} parent=0
    #allocation3 [shape = 'u8[65536]{0}', space=vmem, size = 0x10000, scoped, tag = 'input window, operand 0']
    loop: start=0, step=1, limit=6
    $region2: #{gnn_forward.6} parent=1 // loop_pre_header
      _
    $region3: #{gnn_forward.6} parent=1 // loop_header
      %s9 = sphi 0, %s13
      %p10 = scmp.ge.s32.totalorder %s9, 6
      %s16 = sphi 0, %s28
      %s17 = sphi 0, %s24
      %s18 = sphi 0, %s16
      %s19 = sphi 0, %s17
      %s20 = sphi 0, %s18
      %s21 = sphi 0, %s19
      %s33 = sphi 0, %s35
      %s36 = sphi 0, %s33
      %s37 = sphi 0, %s36
      %s53 = sphi 0, %s37
      %s57 = sphi 0, %s57
      %s59 = sphi 0, %s57
      %s60 = sphi 0, %s59
      %s74 = sphi 0, %s60
      %s78 = sphi 0, %s78
      %s80 = sphi 0, %s78
      %s81 = sphi 0, %s80
      %s95 = sphi 0, %s81
      %s101 = sphi 0, %s103
      %s104 = sphi 0, %s101
      %s105 = sphi 0, %s104
      %s121 = sphi 0, %s105
    $region4: #{gnn_forward.6} parent=1 // loop_header_branch
      %12 = sbr.rel (%p10) target = $region8
    $region5: #{gnn_forward.6} parent=1 // loop_body
      %s14 = ssub.s32 %s9, 1
      %s15 = ssub.s32 %s9, 2
      %s22 = sadd.s32 1, %s17
      %p23 = scmp.ge.s32.totalorder %s22, 2
      %s24 = scalar_select %p23, 0, %s22
      %s25 = sadd.s32 1, %s16
      %s26 = scalar_select %p23, %s25, %s16
      %p27 = scmp.ge.s32.totalorder %s26, 2
      %s28 = scalar_select %p27, 0, %s26
      %s29 = ssub.s32 %s16, %s28
      %s30 = ssub.s32 %s17, %s24
      %s31 = sor.u32 %s29, %s30
      %p32 = scmp.eq.s32.totalorder %s31, 0
      %s34 = sadd.s32 %s33, 1
      %s35 = scalar_select %p32, %s33, %s34
      %p38 = pneg %p32
      %p39 = scmp.eq.s32.totalorder %s9, 3
      %p40 = por %p38, %p39
      %p41 = scmp.ne.s32.totalorder %s33, %s36
      %p42 = scmp.eq.s32.totalorder %s9, 0
      %p43 = por %p41, %p42
      %p44 = scmp.ne.s32.totalorder %s33, %s36
      %p45 = scmp.eq.s32.totalorder %s14, 3
      %p46 = por %p44, %p45
      %p47 = scmp.ne.s32.totalorder %s36, %s37
      %p48 = scmp.eq.s32.totalorder %s14, 0
      %p49 = por %p47, %p48
      %p50 = scmp.ne.s32.totalorder %s36, %s37
      %p51 = scmp.eq.s32.totalorder %s15, 3
      %p52 = por %p50, %p51
      %p54 = scmp.ne.s32.totalorder %s37, %s53
      %p55 = scmp.eq.s32.totalorder %s15, 0
      %p56 = por %p54, %p55
      %s58 = sadd.s32 %s57, 1
      %p61 = scmp.eq.s32.totalorder %s9, 3
      %p62 = scmp.ne.s32.totalorder %s57, %s59
      %p63 = scmp.eq.s32.totalorder %s9, 0
      %p64 = por %p62, %p63
      %p65 = scmp.ne.s32.totalorder %s57, %s59
      %p66 = scmp.eq.s32.totalorder %s14, 3
      %p67 = por %p65, %p66
      %p68 = scmp.ne.s32.totalorder %s59, %s60
      %p69 = scmp.eq.s32.totalorder %s14, 0
      %p70 = por %p68, %p69
      %p71 = scmp.ne.s32.totalorder %s59, %s60
      %p72 = scmp.eq.s32.totalorder %s15, 3
      %p73 = por %p71, %p72
      %p75 = scmp.ne.s32.totalorder %s60, %s74
      %p76 = scmp.eq.s32.totalorder %s15, 0
      %p77 = por %p75, %p76
      %s79 = sadd.s32 %s78, 1
      %p82 = scmp.eq.s32.totalorder %s9, 3
      %p83 = scmp.ne.s32.totalorder %s78, %s80
      %p84 = scmp.eq.s32.totalorder %s9, 0
      %p85 = por %p83, %p84
      %p86 = scmp.ne.s32.totalorder %s78, %s80
      %p87 = scmp.eq.s32.totalorder %s14, 3
      %p88 = por %p86, %p87
      %p89 = scmp.ne.s32.totalorder %s80, %s81
      %p90 = scmp.eq.s32.totalorder %s14, 0
      %p91 = por %p89, %p90
      %p92 = scmp.ne.s32.totalorder %s80, %s81
      %p93 = scmp.eq.s32.totalorder %s15, 3
      %p94 = por %p92, %p93
      %p96 = scmp.ne.s32.totalorder %s81, %s95
      %p97 = scmp.eq.s32.totalorder %s15, 0
      %p98 = por %p96, %p97
      %s99 = ssub.s32 %s16, %s28
      %p100 = scmp.eq.s32.totalorder %s99, 0
      %s102 = sadd.s32 %s101, 1
      %s103 = scalar_select %p100, %s101, %s102
      %p106 = pneg %p100
      %p107 = scmp.eq.s32.totalorder %s9, 3
      %p108 = por %p106, %p107
      %p109 = scmp.ne.s32.totalorder %s101, %s104
      %p110 = scmp.eq.s32.totalorder %s9, 0
      %p111 = por %p109, %p110
      %p112 = scmp.ne.s32.totalorder %s101, %s104
      %p113 = scmp.eq.s32.totalorder %s14, 3
      %p114 = por %p112, %p113
      %p115 = scmp.ne.s32.totalorder %s104, %s105
      %p116 = scmp.eq.s32.totalorder %s14, 0
      %p117 = por %p115, %p116
      %p118 = scmp.ne.s32.totalorder %s104, %s105
      %p119 = scmp.eq.s32.totalorder %s15, 3
      %p120 = por %p118, %p119
      %p122 = scmp.ne.s32.totalorder %s105, %s121
      %p123 = scmp.eq.s32.totalorder %s15, 0
      %p124 = por %p122, %p123
      %p125 = scmp.le.s32.totalorder 1, %s9
      %p126 = scmp.lt.s32.totalorder %s9, 5
      %p127 = pnand %p125, %p126
      %p128 = pneg %p127
      // Predicated region
      $region9: #{gnn_forward.6} parent=5 // pred_check
        _
      $region10: #{gnn_forward.6} parent=5 // pred_check_branch
        %130 = sbr.rel (%p127) target = $region12
      $region11: #{gnn_forward.6} parent=5 // pred_region
        %s131 = ssub.s32 %s9, 1
        // Predicated region
        $region13: #{gnn_forward.6} parent=11 // pred_check
          %p132 = pneg %p70
        $region14: #{gnn_forward.6} parent=11 // pred_check_branch
          %134 = sbr.rel (%p132) target = $region16
        $region15: #{gnn_forward.6} parent=11 // pred_region
          _
        $region16: #{gnn_forward.6} parent=11 // pred_fallthru
          _
        // Predicated region
        $region17: #{gnn_forward.6} parent=11 // pred_check
          %p135 = pneg %p91
        $region18: #{gnn_forward.6} parent=11 // pred_check_branch
          %137 = sbr.rel (%p135) target = $region20
        $region19: #{gnn_forward.6} parent=11 // pred_region
          _
        $region20: #{gnn_forward.6} parent=11 // pred_fallthru
          _
      $region12: #{gnn_forward.6} parent=5 // pred_fallthru
        _
      %p138 = scmp.lt.s32.totalorder %s9, 4
      // Predicated region
      $region21: #{gnn_forward.6} parent=5 // pred_check
        %p139 = pneg %p138
      $region22: #{gnn_forward.6} parent=5 // pred_check_branch
        %141 = sbr.rel (%p139) target = $region24
      $region23: #{gnn_forward.6} parent=5 // pred_region
        // Predicated region
        $region25: #{gnn_forward.6} parent=23 // pred_check
          %p142 = pneg %p43
        $region26: #{gnn_forward.6} parent=23 // pred_check_branch
          %144 = sbr.rel (%p142) target = $region28
        $region27: #{gnn_forward.6} parent=23 // pred_region
          %s145 = sand.u32 %s33, 1
          %s146 = sand.u32 %s33, 1
          %s147 = smul.addr %s146, 64
          %s148 = scalar_lea.vmem [#allocation3], %s147
          %s149 = smul.u32 16, %s16
          %s150 = smul.addr %s149, 2
          %s151 = sadd.s32 %s17, %s150
          %s152 = smul.addr %s151, 4
          %s153 = scalar_lea.vmem %s0, %s152
          // Predicated region
          $region29: #{gnn_forward.6} parent=27 // pred_check
            _
          $region30: #{gnn_forward.6} parent=27 // pred_check_branch
            %155 = sbr.rel (0) target = $region32
          $region31: #{gnn_forward.6} parent=27 // pred_region
            // Predicated region
            $region33: #{gnn_forward.6} parent=31 // pred_check
              _
            $region34: #{gnn_forward.6} parent=31 // pred_check_branch
              %157 = sbr.rel target = $region36
            $region35: #{gnn_forward.6} parent=31 // pred_region
              // Predicated region
              $region48: #{gnn_forward.6} parent=35 // pred_check
                _
              $region49: #{gnn_forward.6} parent=35 // pred_check_branch
                %202 = sbr.rel (0) target = $region51
              $region50: #{gnn_forward.6} parent=35 // pred_region
                loop: start=0, step=1, limit=1
                $region52: #{gnn_forward.6} parent=50 // loop_pre_header
                  _
                $region53: #{gnn_forward.6} parent=50 // loop_header
                  %s204 = sphi 0, %s208
                  %p205 = scmp.ge.s32.totalorder %s204, 1
                  %s209 = sphi %s153, %s153
                  %s210 = sphi %s148, %s148
                $region54: #{gnn_forward.6} parent=50 // loop_header_branch
                  %207 = sbr.rel (%p205) target = $region58
                $region55: #{gnn_forward.6} parent=50 // loop_body
                  _
                $region56: #{gnn_forward.6} parent=50 // loop_footer
                  %s208 = sadd.s32 1, %s204
                $region57: #{gnn_forward.6} parent=50 // loop_footer_branch
                  %203 = sbr.rel target = $region53
                $region58: #{gnn_forward.6} parent=50 // loop_exit
                  _
                loop: start=0, step=1, limit=1
                $region59: #{gnn_forward.6} parent=50 // loop_pre_header
                  _
                $region60: #{gnn_forward.6} parent=50 // loop_header
                  %s213 = sphi 0, %s217
                  %p214 = scmp.ge.s32.totalorder %s213, 1
                  %s218 = sphi %s153, %s153
                  %s219 = sphi %s148, %s148
                $region61: #{gnn_forward.6} parent=50 // loop_header_branch
                  %216 = sbr.rel (%p214) target = $region65
                $region62: #{gnn_forward.6} parent=50 // loop_body
                  %v220 = vld [vmem:[%s218] sm:$0xf]
                  %221 = vst [vmem:[%s219] sm:$0xf] %v220
                  %v222 = vld [vmem:[%s218 + $0x8] sm:$0xf]
                  %223 = vst [vmem:[%s219 + $0x4] sm:$0xf] %v222
                  %v224 = vld [vmem:[%s218 + $0x10] sm:$0xf]
                  %225 = vst [vmem:[%s219 + $0x8] sm:$0xf] %v224
                  %v226 = vld [vmem:[%s218 + $0x18] sm:$0xf]
                  %227 = vst [vmem:[%s219 + $0xc] sm:$0xf] %v226
                  %v228 = vld [vmem:[%s218 + $0x20] sm:$0xf]
                  %229 = vst [vmem:[%s219 + $0x10] sm:$0xf] %v228
                  %v230 = vld [vmem:[%s218 + $0x28] sm:$0xf]
                  %231 = vst [vmem:[%s219 + $0x14] sm:$0xf] %v230
                  %v232 = vld [vmem:[%s218 + $0x30] sm:$0xf]
                  %233 = vst [vmem:[%s219 + $0x18] sm:$0xf] %v232
                  %v234 = vld [vmem:[%s218 + $0x38] sm:$0xf]
                  %235 = vst [vmem:[%s219 + $0x1c] sm:$0xf] %v234
                  %v236 = vld [vmem:[%s218 + $0x40] sm:$0xf]
                  %237 = vst [vmem:[%s219 + $0x20] sm:$0xf] %v236
                  %v238 = vld [vmem:[%s218 + $0x48] sm:$0xf]
                  %239 = vst [vmem:[%s219 + $0x24] sm:$0xf] %v238
                  %v240 = vld [vmem:[%s218 + $0x50] sm:$0xf]
                  %241 = vst [vmem:[%s219 + $0x28] sm:$0xf] %v240
                  %v242 = vld [vmem:[%s218 + $0x58] sm:$0xf]
                  %243 = vst [vmem:[%s219 + $0x2c] sm:$0xf] %v242
                  %v244 = vld [vmem:[%s218 + $0x60] sm:$0xf]
                  %245 = vst [vmem:[%s219 + $0x30] sm:$0xf] %v244
                  %v246 = vld [vmem:[%s218 + $0x68] sm:$0xf]
                  %247 = vst [vmem:[%s219 + $0x34] sm:$0xf] %v246
                  %v248 = vld [vmem:[%s218 + $0x70] sm:$0xf]
                  %249 = vst [vmem:[%s219 + $0x38] sm:$0xf] %v248
                  %v250 = vld [vmem:[%s218 + $0x78] sm:$0xf]
                  %251 = vst [vmem:[%s219 + $0x3c] sm:$0xf] %v250
                $region63: #{gnn_forward.6} parent=50 // loop_footer
                  %s217 = sadd.s32 1, %s213
                $region64: #{gnn_forward.6} parent=50 // loop_footer_branch
                  %212 = sbr.rel target = $region60
                $region65: #{gnn_forward.6} parent=50 // loop_exit
                  _
              $region51: #{gnn_forward.6} parent=35 // pred_fallthru
                _
            $region36: #{gnn_forward.6} parent=31 // pred_fallthru
              _
            // Predicated region
            $region37: #{gnn_forward.6} parent=31 // pred_check
              _
            $region38: #{gnn_forward.6} parent=31 // pred_check_branch
              %159 = sbr.rel (0) target = $region40
            $region39: #{gnn_forward.6} parent=31 // pred_region
              loop: start=0, step=1, limit=1
              $region41: #{gnn_forward.6} parent=39 // loop_pre_header
                _
              $region42: #{gnn_forward.6} parent=39 // loop_header
                %s162 = sphi 0, %s166
                %p163 = scmp.ge.s32.totalorder %s162, 1
                %s167 = sphi %s153, %s153
                %s168 = sphi %s148, %s148
              $region43: #{gnn_forward.6} parent=39 // loop_header_branch
                %165 = sbr.rel (%p163) target = $region47
              $region44: #{gnn_forward.6} parent=39 // loop_body
                %v169 = vld [vmem:[%s167] sm:$0xf]
                %170 = vst [vmem:[%s168] sm:$0xf] %v169
                %v171 = vld [vmem:[%s167 + $0x8] sm:$0xf]
                %172 = vst [vmem:[%s168 + $0x4] sm:$0xf] %v171
                %v173 = vld [vmem:[%s167 + $0x10] sm:$0xf]
                %174 = vst [vmem:[%s168 + $0x8] sm:$0xf] %v173
                %v175 = vld [vmem:[%s167 + $0x18] sm:$0xf]
                %176 = vst [vmem:[%s168 + $0xc] sm:$0xf] %v175
                %v177 = vld [vmem:[%s167 + $0x20] sm:$0xf]
                %178 = vst [vmem:[%s168 + $0x10] sm:$0xf] %v177
                %v179 = vld [vmem:[%s167 + $0x28] sm:$0xf]
                %180 = vst [vmem:[%s168 + $0x14] sm:$0xf] %v179
                %v181 = vld [vmem:[%s167 + $0x30] sm:$0xf]
                %182 = vst [vmem:[%s168 + $0x18] sm:$0xf] %v181
                %v183 = vld [vmem:[%s167 + $0x38] sm:$0xf]
                %184 = vst [vmem:[%s168 + $0x1c] sm:$0xf] %v183
                %v185 = vld [vmem:[%s167 + $0x40] sm:$0xf]
                %186 = vst [vmem:[%s168 + $0x20] sm:$0xf] %v185
                %v187 = vld [vmem:[%s167 + $0x48] sm:$0xf]
                %188 = vst [vmem:[%s168 + $0x24] sm:$0xf] %v187
                %v189 = vld [vmem:[%s167 + $0x50] sm:$0xf]
                %190 = vst [vmem:[%s168 + $0x28] sm:$0xf] %v189
                %v191 = vld [vmem:[%s167 + $0x58] sm:$0xf]
                %192 = vst [vmem:[%s168 + $0x2c] sm:$0xf] %v191
                %v193 = vld [vmem:[%s167 + $0x60] sm:$0xf]
                %194 = vst [vmem:[%s168 + $0x30] sm:$0xf] %v193
                %v195 = vld [vmem:[%s167 + $0x68] sm:$0xf]
                %196 = vst [vmem:[%s168 + $0x34] sm:$0xf] %v195
                %v197 = vld [vmem:[%s167 + $0x70] sm:$0xf]
                %198 = vst [vmem:[%s168 + $0x38] sm:$0xf] %v197
                %v199 = vld [vmem:[%s167 + $0x78] sm:$0xf]
                %200 = vst [vmem:[%s168 + $0x3c] sm:$0xf] %v199
              $region45: #{gnn_forward.6} parent=39 // loop_footer
                %s166 = sadd.s32 1, %s162
              $region46: #{gnn_forward.6} parent=39 // loop_footer_branch
                %161 = sbr.rel target = $region42
              $region47: #{gnn_forward.6} parent=39 // loop_exit
                _
            $region40: #{gnn_forward.6} parent=31 // pred_fallthru
              _
          $region32: #{gnn_forward.6} parent=27 // pred_fallthru
            _
          %252 = vnop
        $region28: #{gnn_forward.6} parent=23 // pred_fallthru
          _
      $region24: #{gnn_forward.6} parent=5 // pred_fallthru
        _
      %p253 = scmp.le.s32.totalorder 1, %s9
      %p254 = scmp.lt.s32.totalorder %s9, 5
      %p255 = pnand %p253, %p254
      %p256 = pneg %p255
      // Predicated region
      $region66: #{gnn_forward.6} parent=5 // pred_check
        _
      $region67: #{gnn_forward.6} parent=5 // pred_check_branch
        %258 = sbr.rel (%p255) target = $region69
      $region68: #{gnn_forward.6} parent=5 // pred_region
        %s259 = ssub.s32 %s9, 1
        %s260 = sand.u32 %s36, 1
        %s261 = sand.u32 %s36, 1
        %s262 = smul.addr %s261, 64
        %s263 = scalar_lea.vmem [#allocation3], %s262
        // Predicated region
        $region70: #{gnn_forward.6} parent=68 // pred_check
          %p264 = pneg %p49
        $region71: #{gnn_forward.6} parent=68 // pred_check_branch
          %266 = sbr.rel (%p264) target = $region73
        $region72: #{gnn_forward.6} parent=68 // pred_region
          _
        $region73: #{gnn_forward.6} parent=68 // pred_fallthru
          _
        %s267 = sand.u32 %s36, 1
        %s268 = sand.u32 %s36, 1
        %s269 = smul.addr %s268, 64
        %s270 = scalar_lea.vmem [#allocation3], %s269
        %p271 = pneg %p49
        %p272 = pneg %p46
        %p273 = pneg %p70
        %p274 = pneg %p67
        %p275 = pneg %p91
        %p276 = pneg %p88
        %p277 = pneg %p117
        %p278 = pneg %p114
        %s279 = smul.u32 16, %s18
        %p280 = scmp.lt.s32.totalorder %s279, 31
        %s281 = scalar_select %p280, %s279, 31
        %s282 = smul.addr %s281, 4
        %s283 = scalar_lea.vmem %s3, %s282
        %s284 = smul.u32 16, %s18
        %s285 = smul.u32 16, %s18
        %p286 = scmp.lt.s32.totalorder %s285, 31
        %s287 = scalar_select %p286, %s285, 31
        %s288 = smul.addr %s287, 4
        %s289 = scalar_lea.vmem %s3, %s288
        %s290 = smul.u32 16, %s18
        %p292 = scmp.eq.s32.totalorder %s19, 0
        // Predicated region
        $region74: #{gnn_forward.6} parent=68 // pred_check
          %p293 = pneg %p292
        $region75: #{gnn_forward.6} parent=68 // pred_check_branch
          %295 = sbr.rel (%p293) target = $region77
        $region76: #{gnn_forward.6} parent=68 // pred_region
          %296 = vst [vmem:[#allocation2] sm:$0xff] 0.0
          %297 = vst [vmem:[#allocation2 + $0x8] sm:$0xff] 0.0
          %298 = vst [vmem:[#allocation2 + $0x10] sm:$0xff] 0.0
          %299 = vst [vmem:[#allocation2 + $0x18] sm:$0xff] 0.0
          %300 = vst [vmem:[#allocation2 + $0x20] sm:$0xff] 0.0
          %301 = vst [vmem:[#allocation2 + $0x28] sm:$0xff] 0.0
          %302 = vst [vmem:[#allocation2 + $0x30] sm:$0xff] 0.0
          %303 = vst [vmem:[#allocation2 + $0x38] sm:$0xff] 0.0
          %304 = vst [vmem:[#allocation2 + $0x40] sm:$0xff] 0.0
          %305 = vst [vmem:[#allocation2 + $0x48] sm:$0xff] 0.0
          %306 = vst [vmem:[#allocation2 + $0x50] sm:$0xff] 0.0
          %307 = vst [vmem:[#allocation2 + $0x58] sm:$0xff] 0.0
          %308 = vst [vmem:[#allocation2 + $0x60] sm:$0xff] 0.0
          %309 = vst [vmem:[#allocation2 + $0x68] sm:$0xff] 0.0
          %310 = vst [vmem:[#allocation2 + $0x70] sm:$0xff] 0.0
          %311 = vst [vmem:[#allocation2 + $0x78] sm:$0xff] 0.0
        $region77: #{gnn_forward.6} parent=68 // pred_fallthru
          _
        %s312 = smul.u32 %s19, 128
        %s313 = sshra.s32 %s312, 3
        %s314 = sand.u32 %s312, 7
        %s315 = smul.addr %s313, 4
        %s316 = scalar_lea.vmem %s1, %s315
        %v317 = vld [vmem:[%s316] sm:$0xf]
        %v318 = vld [vmem:[%s316 + $0x4] sm:$0xf]
        %v319 = vld [vmem:[%s316 + $0x8] sm:$0xf]
        %v320 = vld [vmem:[%s316 + $0xc] sm:$0xf]
        %v321 = vld [vmem:[%s316 + $0x10] sm:$0xf]
        %v322 = vld [vmem:[%s316 + $0x14] sm:$0xf]
        %v323 = vld [vmem:[%s316 + $0x18] sm:$0xf]
        %v324 = vld [vmem:[%s316 + $0x1c] sm:$0xf]
        %v325 = vld [vmem:[%s316 + $0x20] sm:$0xf]
        %v326 = vld [vmem:[%s316 + $0x24] sm:$0xf]
        %v327 = vld [vmem:[%s316 + $0x28] sm:$0xf]
        %v328 = vld [vmem:[%s316 + $0x2c] sm:$0xf]
        %v329 = vld [vmem:[%s316 + $0x30] sm:$0xf]
        %v330 = vld [vmem:[%s316 + $0x34] sm:$0xf]
        %v331 = vld [vmem:[%s316 + $0x38] sm:$0xf]
        %v332 = vld [vmem:[%s316 + $0x3c] sm:$0xf]
        %v333 = vld [vmem:[#allocation2] sm:$0xff]
        %v334 = vld [vmem:[#allocation2 + $0x8] sm:$0xff]
        %v335 = vld [vmem:[#allocation2 + $0x10] sm:$0xff]
        %v336 = vld [vmem:[#allocation2 + $0x18] sm:$0xff]
        %v337 = vld [vmem:[#allocation2 + $0x20] sm:$0xff]
        %v338 = vld [vmem:[#allocation2 + $0x28] sm:$0xff]
        %v339 = vld [vmem:[#allocation2 + $0x30] sm:$0xff]
        %v340 = vld [vmem:[#allocation2 + $0x38] sm:$0xff]
        %v341 = vld [vmem:[#allocation2 + $0x40] sm:$0xff]
        %v342 = vld [vmem:[#allocation2 + $0x48] sm:$0xff]
        %v343 = vld [vmem:[#allocation2 + $0x50] sm:$0xff]
        %v344 = vld [vmem:[#allocation2 + $0x58] sm:$0xff]
        %v345 = vld [vmem:[#allocation2 + $0x60] sm:$0xff]
        %v346 = vld [vmem:[#allocation2 + $0x68] sm:$0xff]
        %v347 = vld [vmem:[#allocation2 + $0x70] sm:$0xff]
        %v348 = vld [vmem:[#allocation2 + $0x78] sm:$0xff]
        %v349 = vld [vmem:[%s263] sm:$0xf]
        %v350 = vld [vmem:[%s263 + $0x4] sm:$0xf]
        %v351 = vld [vmem:[%s263 + $0x8] sm:$0xf]
        %v352 = vld [vmem:[%s263 + $0xc] sm:$0xf]
        %v353 = vld [vmem:[%s263 + $0x10] sm:$0xf]
        %v354 = vld [vmem:[%s263 + $0x14] sm:$0xf]
        %v355 = vld [vmem:[%s263 + $0x18] sm:$0xf]
        %v356 = vld [vmem:[%s263 + $0x1c] sm:$0xf]
        %v357 = vld [vmem:[%s263 + $0x20] sm:$0xf]
        %v358 = vld [vmem:[%s263 + $0x24] sm:$0xf]
        %v359 = vld [vmem:[%s263 + $0x28] sm:$0xf]
        %v360 = vld [vmem:[%s263 + $0x2c] sm:$0xf]
        %v361 = vld [vmem:[%s263 + $0x30] sm:$0xf]
        %v362 = vld [vmem:[%s263 + $0x34] sm:$0xf]
        %v363 = vld [vmem:[%s263 + $0x38] sm:$0xf]
        %v364 = vld [vmem:[%s263 + $0x3c] sm:$0xf]
        %v381 = vunpack.c.l.b16 %v349
        %v382 = vunpack.c.l.b16 %v350
        %v383 = vunpack.c.l.b16 %v351
        %v384 = vunpack.c.l.b16 %v352
        %v385 = vunpack.c.l.b16 %v353
        %v386 = vunpack.c.l.b16 %v354
        %v387 = vunpack.c.l.b16 %v355
        %v388 = vunpack.c.l.b16 %v356
        %v389 = vunpack.c.l.b16 %v357
        %v390 = vunpack.c.l.b16 %v358
        %v391 = vunpack.c.l.b16 %v359
        %v392 = vunpack.c.l.b16 %v360
        %v393 = vunpack.c.l.b16 %v361
        %v394 = vunpack.c.l.b16 %v362
        %v395 = vunpack.c.l.b16 %v363
        %v396 = vunpack.c.l.b16 %v364
        %v397 = vpack.c.b16 %v382, %v381
        %v398 = vpack.c.b16 %v384, %v383
        %v399 = vpack.c.b16 %v386, %v385
        %v400 = vpack.c.b16 %v388, %v387
        %v401 = vpack.c.b16 %v390, %v389
        %v402 = vpack.c.b16 %v392, %v391
        %v403 = vpack.c.b16 %v394, %v393
        %v404 = vpack.c.b16 %v396, %v395
        %v429 = vunpack.c.l.b16 %v317
        %v430 = vunpack.c.l.b16 %v318
        %v431 = vunpack.c.l.b16 %v319
        %v432 = vunpack.c.l.b16 %v320
        %v433 = vunpack.c.l.b16 %v321
        %v434 = vunpack.c.l.b16 %v322
        %v435 = vunpack.c.l.b16 %v323
        %v436 = vunpack.c.l.b16 %v324
        %v437 = vunpack.c.l.b16 %v325
        %v438 = vunpack.c.l.b16 %v326
        %v439 = vunpack.c.l.b16 %v327
        %v440 = vunpack.c.l.b16 %v328
        %v441 = vunpack.c.l.b16 %v329
        %v442 = vunpack.c.l.b16 %v330
        %v443 = vunpack.c.l.b16 %v331
        %v444 = vunpack.c.l.b16 %v332
        %v445 = vpack.c.b16 %v430, %v429
        %v446 = vpack.c.b16 %v432, %v431
        %v447 = vpack.c.b16 %v434, %v433
        %v448 = vpack.c.b16 %v436, %v435
        %v449 = vpack.c.b16 %v438, %v437
        %v450 = vpack.c.b16 %v440, %v439
        %v451 = vpack.c.b16 %v442, %v441
        %v452 = vpack.c.b16 %v444, %v443
        %461 = vmatprep.subr.bf16.mxu0 0
        %462 = vmatpush1.bf16.msra.mxu0 %v445
        %463 = vmatprep.subr.bf16.mxu0 0
        %464 = vmatpush1.bf16.msra.mxu0 %v446
        %465 = vmatprep.subr.bf16.mxu0 0
        %466 = vmatpush1.bf16.msra.mxu0 %v447
        %467 = vmatprep.subr.bf16.mxu0 0
        %468 = vmatpush1.bf16.msra.mxu0 %v448
        %469 = vmatprep.subr.bf16.mxu0 0
        %470 = vmatpush1.bf16.msra.mxu0 %v449
        %471 = vmatprep.subr.bf16.mxu0 0
        %472 = vmatpush1.bf16.msra.mxu0 %v450
        %473 = vmatprep.subr.bf16.mxu0 0
        %474 = vmatpush1.bf16.msra.mxu0 %v451
        %475 = vmatprep.subr.bf16.mxu0 0
        %476 = vmatpush1.bf16.msra.mxu0 %v452
        %477 = vmatprep.subr.bf16.mxu0 0
        %478 = vmatpush1.bf16.msra.mxu0 0
        %479 = vmatprep.subr.bf16.mxu0 0
        %480 = vmatpush1.bf16.msra.mxu0 0
        %481 = vmatprep.subr.bf16.mxu0 0
        %482 = vmatpush1.bf16.msra.mxu0 0
        %483 = vmatprep.subr.bf16.mxu0 0
        %484 = vmatpush1.bf16.msra.mxu0 0
        %485 = vmatprep.subr.bf16.mxu0 0
        %486 = vmatpush1.bf16.msra.mxu0 0
        %487 = vmatprep.subr.bf16.mxu0 0
        %488 = vmatpush1.bf16.msra.mxu0 0
        %489 = vmatprep.subr.bf16.mxu0 0
        %490 = vmatpush1.bf16.msra.mxu0 0
        %491 = vmatprep.subr.bf16.mxu0 0
        %492 = vmatpush1.bf16.msra.mxu0 0
        %493 = vmatprep.mubr.bf16.mxu0 0
        %494 = vmatmul.mubr.bf16.gmra.mrb[0].mxu0 %v397
        %v495 = vpop.f32.mrb[0].mxu0
        %v496 = vadd.f32 0.0, %v495
        %v497 = vpop.f32.mrb[0].mxu0
        %v498 = vpop.f32.mrb[0].mxu0
        %v499 = vadd.f32 0.0, %v498
        %v500 = vpop.f32.mrb[0].mxu0
        %501 = vmatprep.mubr.bf16.mxu0 0
        %502 = vmatmul.mubr.bf16.gmra.mrb[0].mxu0 %v398
        %v503 = vpop.f32.mrb[0].mxu0
        %v504 = vadd.f32 0.0, %v503
        %v505 = vpop.f32.mrb[0].mxu0
        %v506 = vpop.f32.mrb[0].mxu0
        %v507 = vadd.f32 0.0, %v506
        %v508 = vpop.f32.mrb[0].mxu0
        %509 = vmatprep.mubr.bf16.mxu0 0
        %510 = vmatmul.mubr.bf16.gmra.mrb[0].mxu0 %v399
        %v511 = vpop.f32.mrb[0].mxu0
        %v512 = vadd.f32 0.0, %v511
        %v513 = vpop.f32.mrb[0].mxu0
        %v514 = vpop.f32.mrb[0].mxu0
        %v515 = vadd.f32 0.0, %v514
        %v516 = vpop.f32.mrb[0].mxu0
        %517 = vmatprep.mubr.bf16.mxu0 0
        %518 = vmatmul.mubr.bf16.gmra.mrb[0].mxu0 %v400
        %v519 = vpop.f32.mrb[0].mxu0
        %v520 = vadd.f32 0.0, %v519
        %v521 = vpop.f32.mrb[0].mxu0
        %v522 = vpop.f32.mrb[0].mxu0
        %v523 = vadd.f32 0.0, %v522
        %v524 = vpop.f32.mrb[0].mxu0
        %525 = vmatprep.mubr.bf16.mxu0 0
        %526 = vmatmul.mubr.bf16.gmra.mrb[0].mxu0 %v401
        %v527 = vpop.f32.mrb[0].mxu0
        %v528 = vadd.f32 0.0, %v527
        %v529 = vpop.f32.mrb[0].mxu0
        %v530 = vpop.f32.mrb[0].mxu0
        %v531 = vadd.f32 0.0, %v530
        %v532 = vpop.f32.mrb[0].mxu0
        %533 = vmatprep.mubr.bf16.mxu0 0
        %534 = vmatmul.mubr.bf16.gmra.mrb[0].mxu0 %v402
        %v535 = vpop.f32.mrb[0].mxu0
        %v536 = vadd.f32 0.0, %v535
        %v537 = vpop.f32.mrb[0].mxu0
        %v538 = vpop.f32.mrb[0].mxu0
        %v539 = vadd.f32 0.0, %v538
        %v540 = vpop.f32.mrb[0].mxu0
        %541 = vmatprep.mubr.bf16.mxu0 0
        %542 = vmatmul.mubr.bf16.gmra.mrb[0].mxu0 %v403
        %v543 = vpop.f32.mrb[0].mxu0
        %v544 = vadd.f32 0.0, %v543
        %v545 = vpop.f32.mrb[0].mxu0
        %v546 = vpop.f32.mrb[0].mxu0
        %v547 = vadd.f32 0.0, %v546
        %v548 = vpop.f32.mrb[0].mxu0
        %549 = vmatprep.mubr.bf16.mxu0 0
        %550 = vmatmul.mubr.bf16.gmra.mrb[0].mxu0 %v404
        %v551 = vpop.f32.mrb[0].mxu0
        %v552 = vadd.f32 0.0, %v551
        %v553 = vpop.f32.mrb[0].mxu0
        %v554 = vpop.f32.mrb[0].mxu0
        %v555 = vadd.f32 0.0, %v554
        %v556 = vpop.f32.mrb[0].mxu0
        %557 = vdwg.mxu0
        %v558 = vadd.f32 %v333, %v496
        %v559 = vadd.f32 %v334, %v499
        %v560 = vadd.f32 %v335, %v504
        %v561 = vadd.f32 %v336, %v507
        %v562 = vadd.f32 %v337, %v512
        %v563 = vadd.f32 %v338, %v515
        %v564 = vadd.f32 %v339, %v520
        %v565 = vadd.f32 %v340, %v523
        %v566 = vadd.f32 %v341, %v528
        %v567 = vadd.f32 %v342, %v531
        %v568 = vadd.f32 %v343, %v536
        %v569 = vadd.f32 %v344, %v539
        %v570 = vadd.f32 %v345, %v544
        %v571 = vadd.f32 %v346, %v547
        %v572 = vadd.f32 %v347, %v552
        %v573 = vadd.f32 %v348, %v555
        %574 = vst [vmem:[#allocation2] sm:$0xff] %v558
        %575 = vst [vmem:[#allocation2 + $0x8] sm:$0xff] %v559
        %576 = vst [vmem:[#allocation2 + $0x10] sm:$0xff] %v560
        %577 = vst [vmem:[#allocation2 + $0x18] sm:$0xff] %v561
        %578 = vst [vmem:[#allocation2 + $0x20] sm:$0xff] %v562
        %579 = vst [vmem:[#allocation2 + $0x28] sm:$0xff] %v563
        %580 = vst [vmem:[#allocation2 + $0x30] sm:$0xff] %v564
        %581 = vst [vmem:[#allocation2 + $0x38] sm:$0xff] %v565
        %582 = vst [vmem:[#allocation2 + $0x40] sm:$0xff] %v566
        %583 = vst [vmem:[#allocation2 + $0x48] sm:$0xff] %v567
        %584 = vst [vmem:[#allocation2 + $0x50] sm:$0xff] %v568
        %585 = vst [vmem:[#allocation2 + $0x58] sm:$0xff] %v569
        %586 = vst [vmem:[#allocation2 + $0x60] sm:$0xff] %v570
        %587 = vst [vmem:[#allocation2 + $0x68] sm:$0xff] %v571
        %588 = vst [vmem:[#allocation2 + $0x70] sm:$0xff] %v572
        %589 = vst [vmem:[#allocation2 + $0x78] sm:$0xff] %v573
        %p590 = scmp.eq.s32.totalorder %s19, 1
        // Predicated region
        $region78: #{gnn_forward.6} parent=68 // pred_check
          %p591 = pneg %p590
        $region79: #{gnn_forward.6} parent=68 // pred_check_branch
          %593 = sbr.rel (%p591) target = $region81
        $region80: #{gnn_forward.6} parent=68 // pred_region
          %v594 = vld [vmem:[#allocation2] sm:$0xff]
          %v595 = vld [vmem:[#allocation2 + $0x8] sm:$0xff]
          %v596 = vld [vmem:[#allocation2 + $0x10] sm:$0xff]
          %v597 = vld [vmem:[#allocation2 + $0x18] sm:$0xff]
          %v598 = vld [vmem:[#allocation2 + $0x20] sm:$0xff]
          %v599 = vld [vmem:[#allocation2 + $0x28] sm:$0xff]
          %v600 = vld [vmem:[#allocation2 + $0x30] sm:$0xff]
          %v601 = vld [vmem:[#allocation2 + $0x38] sm:$0xff]
          %v602 = vld [vmem:[#allocation2 + $0x40] sm:$0xff]
          %v603 = vld [vmem:[#allocation2 + $0x48] sm:$0xff]
          %v604 = vld [vmem:[#allocation2 + $0x50] sm:$0xff]
          %v605 = vld [vmem:[#allocation2 + $0x58] sm:$0xff]
          %v606 = vld [vmem:[#allocation2 + $0x60] sm:$0xff]
          %v607 = vld [vmem:[#allocation2 + $0x68] sm:$0xff]
          %v608 = vld [vmem:[#allocation2 + $0x70] sm:$0xff]
          %v609 = vld [vmem:[#allocation2 + $0x78] sm:$0xff]
          %v610 = vld [vmem:[%s2] sm:$0x1]
          %v612 = vlaneseq
          %v613 = vshrl.u32 %v612, 7
          %v614 = vsub.s32 0, %v613
          %v615 = vrot.slane %v610, %v614
          %v617 = vadd.f32 %v594, %v615
          %v618 = vadd.f32 %v595, %v615
          %v619 = vadd.f32 %v596, %v615
          %v620 = vadd.f32 %v597, %v615
          %v621 = vadd.f32 %v598, %v615
          %v622 = vadd.f32 %v599, %v615
          %v623 = vadd.f32 %v600, %v615
          %v624 = vadd.f32 %v601, %v615
          %v625 = vadd.f32 %v602, %v615
          %v626 = vadd.f32 %v603, %v615
          %v627 = vadd.f32 %v604, %v615
          %v628 = vadd.f32 %v605, %v615
          %v629 = vadd.f32 %v606, %v615
          %v630 = vadd.f32 %v607, %v615
          %v631 = vadd.f32 %v608, %v615
          %v632 = vadd.f32 %v609, %v615
          %v633 = vmax.f32 %v617, 0.0
          %v634 = vmax.f32 %v618, 0.0
          %v635 = vmax.f32 %v619, 0.0
          %v636 = vmax.f32 %v620, 0.0
          %v637 = vmax.f32 %v621, 0.0
          %v638 = vmax.f32 %v622, 0.0
          %v639 = vmax.f32 %v623, 0.0
          %v640 = vmax.f32 %v624, 0.0
          %v641 = vmax.f32 %v625, 0.0
          %v642 = vmax.f32 %v626, 0.0
          %v643 = vmax.f32 %v627, 0.0
          %v644 = vmax.f32 %v628, 0.0
          %v645 = vmax.f32 %v629, 0.0
          %v646 = vmax.f32 %v630, 0.0
          %v647 = vmax.f32 %v631, 0.0
          %v648 = vmax.f32 %v632, 0.0
          %v649 = vpack.c.bf16 %v634, %v633
          %v650 = vpack.c.bf16 %v636, %v635
          %v651 = vpack.c.bf16 %v638, %v637
          %v652 = vpack.c.bf16 %v640, %v639
          %v653 = vpack.c.bf16 %v642, %v641
          %v654 = vpack.c.bf16 %v644, %v643
          %v655 = vpack.c.bf16 %v646, %v645
          %v656 = vpack.c.bf16 %v648, %v647
          %v665 = vunpack.c.l.b16 %v649
          %v666 = vunpack.c.h.b16 %v649
          %v667 = vunpack.c.l.b16 %v650
          %v668 = vunpack.c.h.b16 %v650
          %v669 = vunpack.c.l.b16 %v651
          %v670 = vunpack.c.h.b16 %v651
          %v671 = vunpack.c.l.b16 %v652
          %v672 = vunpack.c.h.b16 %v652
          %v673 = vunpack.c.l.b16 %v653
          %v674 = vunpack.c.h.b16 %v653
          %v675 = vunpack.c.l.b16 %v654
          %v676 = vunpack.c.h.b16 %v654
          %v677 = vunpack.c.l.b16 %v655
          %v678 = vunpack.c.h.b16 %v655
          %v679 = vunpack.c.l.b16 %v656
          %v680 = vunpack.c.h.b16 %v656
          %v681 = vpack.c.b16 %v665, %v665
          %v682 = vpack.c.b16 %v666, %v666
          %v683 = vpack.c.b16 %v667, %v667
          %v684 = vpack.c.b16 %v668, %v668
          %v685 = vpack.c.b16 %v669, %v669
          %v686 = vpack.c.b16 %v670, %v670
          %v687 = vpack.c.b16 %v671, %v671
          %v688 = vpack.c.b16 %v672, %v672
          %v689 = vpack.c.b16 %v673, %v673
          %v690 = vpack.c.b16 %v674, %v674
          %v691 = vpack.c.b16 %v675, %v675
          %v692 = vpack.c.b16 %v676, %v676
          %v693 = vpack.c.b16 %v677, %v677
          %v694 = vpack.c.b16 %v678, %v678
          %v695 = vpack.c.b16 %v679, %v679
          %v696 = vpack.c.b16 %v680, %v680
          %713 = vst [vmem:[%s289] sm:$0xf] %v681
          %714 = vst [vmem:[%s289 + $0x4] sm:$0xf] %v682
          %715 = vst [vmem:[%s289 + $0x8] sm:$0xf] %v683
          %716 = vst [vmem:[%s289 + $0xc] sm:$0xf] %v684
          %717 = vst [vmem:[%s289 + $0x10] sm:$0xf] %v685
          %718 = vst [vmem:[%s289 + $0x14] sm:$0xf] %v686
          %719 = vst [vmem:[%s289 + $0x18] sm:$0xf] %v687
          %720 = vst [vmem:[%s289 + $0x1c] sm:$0xf] %v688
          %721 = vst [vmem:[%s289 + $0x20] sm:$0xf] %v689
          %722 = vst [vmem:[%s289 + $0x24] sm:$0xf] %v690
          %723 = vst [vmem:[%s289 + $0x28] sm:$0xf] %v691
          %724 = vst [vmem:[%s289 + $0x2c] sm:$0xf] %v692
          %725 = vst [vmem:[%s289 + $0x30] sm:$0xf] %v693
          %726 = vst [vmem:[%s289 + $0x34] sm:$0xf] %v694
          %727 = vst [vmem:[%s289 + $0x38] sm:$0xf] %v695
          %728 = vst [vmem:[%s289 + $0x3c] sm:$0xf] %v696
        $region81: #{gnn_forward.6} parent=68 // pred_fallthru
          _
        %s729 = smul.u32 16, %s18
        %p730 = scmp.lt.s32.totalorder %s729, 31
        %s731 = scalar_select %p730, %s729, 31
        %s732 = smul.addr %s731, 4
        %s733 = scalar_lea.vmem %s3, %s732
        // Predicated region
        $region82: #{gnn_forward.6} parent=68 // pred_check
          %p734 = pneg %p114
        $region83: #{gnn_forward.6} parent=68 // pred_check_branch
          %736 = sbr.rel (%p734) target = $region85
        $region84: #{gnn_forward.6} parent=68 // pred_region
          %s737 = smul.u32 16, %s18
        $region85: #{gnn_forward.6} parent=68 // pred_fallthru
          _
      $region69: #{gnn_forward.6} parent=5 // pred_fallthru
        _
      %p738 = scmp.le.s32.totalorder 2, %s9
      // Predicated region
      $region86: #{gnn_forward.6} parent=5 // pred_check
        %p739 = pneg %p738
      $region87: #{gnn_forward.6} parent=5 // pred_check_branch
        %741 = sbr.rel (%p739) target = $region89
      $region88: #{gnn_forward.6} parent=5 // pred_region
        %s742 = ssub.s32 %s9, 2
        // Predicated region
        $region90: #{gnn_forward.6} parent=88 // pred_check
          %p743 = pneg %p120
        $region91: #{gnn_forward.6} parent=88 // pred_check_branch
          %745 = sbr.rel (%p743) target = $region93
        $region92: #{gnn_forward.6} parent=88 // pred_region
          %s746 = smul.u32 16, %s20
          %p747 = scmp.lt.s32.totalorder %s746, 31
          %s748 = scalar_select %p747, %s746, 31
          %s749 = smul.addr %s748, 4
          %s750 = scalar_lea.vmem %s3, %s749
        $region93: #{gnn_forward.6} parent=88 // pred_fallthru
          _
      $region89: #{gnn_forward.6} parent=5 // pred_fallthru
        _
    $region6: #{gnn_forward.6} parent=1 // loop_footer
      %s13 = sadd.s32 1, %s9
    $region7: #{gnn_forward.6} parent=1 // loop_footer_branch
      %8 = sbr.rel target = $region3
    $region8: #{gnn_forward.6} parent=1 // loop_exit
      _

// kernel: gnn_forward.5
$region0: #{gnn_forward.5}
  #allocation0 [shape = 'u32[]', space=smem, size = 0x4, offset = 0x4, fixed_abs, tag = 'smem constant byte address 0x4 - core index']
  #allocation1 [shape = 'u32[144,128]{1,0:T(1,128)}', space=vmem, size = 0x12000, scoped, tag = 'internal scratch']
  %s0 = inlined_call_operand.vmem [shape: bf16[256,128], index: 0, kind: input, shape index: {}]
  %s1 = inlined_call_operand.vmem [shape: bf16[128,128], index: 1, kind: input, shape index: {}]
  %s2 = inlined_call_operand.vmem [shape: bf16[256,128], index: 2, kind: output, shape index: {}]
  %s3 = sld [smem:[#allocation0]]
  $region41: #{gnn_forward.5} parent=0
    _
  %s5 = ssub.s32 1, %s3
  %s6 = scalar_select 0, %s5, %s3
  loop: start=0, step=1, limit=4
  $region2: #{gnn_forward.5} parent=0 // loop_pre_header
    _
  $region3: #{gnn_forward.5} parent=0 // loop_header
    %s8 = sphi 0, %s12
    %p9 = scmp.ge.s32.totalorder %s8, 4
    %s18 = sphi 0, %s20
    %s21 = sphi 0, %s18
    %s22 = sphi 0, %s21
    %s38 = sphi 0, %s22
    %s42 = sphi 0, %s42
    %s44 = sphi 0, %s42
    %s45 = sphi 0, %s44
    %s59 = sphi 0, %s45
    %s65 = sphi 0, %s67
    %s68 = sphi 0, %s65
    %s69 = sphi 0, %s68
    %s85 = sphi 0, %s69
  $region4: #{gnn_forward.5} parent=0 // loop_header_branch
    %11 = sbr.rel (%p9) target = $region8
  $region5: #{gnn_forward.5} parent=0 // loop_body
    %s13 = ssub.s32 %s8, 1
    %s14 = ssub.s32 %s8, 2
    %s15 = sadd.s32 %s8, 1
    %s16 = ssub.s32 %s8, %s15
    %p17 = scmp.eq.s32.totalorder %s16, 0
    %s19 = sadd.s32 %s18, 1
    %s20 = scalar_select %p17, %s18, %s19
    %p23 = pneg %p17
    %p24 = scmp.eq.s32.totalorder %s8, 1
    %p25 = por %p23, %p24
    %p26 = scmp.ne.s32.totalorder %s18, %s21
    %p27 = scmp.eq.s32.totalorder %s8, 0
    %p28 = por %p26, %p27
    %p29 = scmp.ne.s32.totalorder %s18, %s21
    %p30 = scmp.eq.s32.totalorder %s13, 1
    %p31 = por %p29, %p30
    %p32 = scmp.ne.s32.totalorder %s21, %s22
    %p33 = scmp.eq.s32.totalorder %s13, 0
    %p34 = por %p32, %p33
    %p35 = scmp.ne.s32.totalorder %s21, %s22
    %p36 = scmp.eq.s32.totalorder %s14, 1
    %p37 = por %p35, %p36
    %p39 = scmp.ne.s32.totalorder %s22, %s38
    %p40 = scmp.eq.s32.totalorder %s14, 0
    %p41 = por %p39, %p40
    %s43 = sadd.s32 %s42, 1
    %p46 = scmp.eq.s32.totalorder %s8, 1
    %p47 = scmp.ne.s32.totalorder %s42, %s44
    %p48 = scmp.eq.s32.totalorder %s8, 0
    %p49 = por %p47, %p48
    %p50 = scmp.ne.s32.totalorder %s42, %s44
    %p51 = scmp.eq.s32.totalorder %s13, 1
    %p52 = por %p50, %p51
    %p53 = scmp.ne.s32.totalorder %s44, %s45
    %p54 = scmp.eq.s32.totalorder %s13, 0
    %p55 = por %p53, %p54
    %p56 = scmp.ne.s32.totalorder %s44, %s45
    %p57 = scmp.eq.s32.totalorder %s14, 1
    %p58 = por %p56, %p57
    %p60 = scmp.ne.s32.totalorder %s45, %s59
    %p61 = scmp.eq.s32.totalorder %s14, 0
    %p62 = por %p60, %p61
    %s63 = ssub.s32 %s8, %s15
    %p64 = scmp.eq.s32.totalorder %s63, 0
    %s66 = sadd.s32 %s65, 1
    %s67 = scalar_select %p64, %s65, %s66
    %p70 = pneg %p64
    %p71 = scmp.eq.s32.totalorder %s8, 1
    %p72 = por %p70, %p71
    %p73 = scmp.ne.s32.totalorder %s65, %s68
    %p74 = scmp.eq.s32.totalorder %s8, 0
    %p75 = por %p73, %p74
    %p76 = scmp.ne.s32.totalorder %s65, %s68
    %p77 = scmp.eq.s32.totalorder %s13, 1
    %p78 = por %p76, %p77
    %p79 = scmp.ne.s32.totalorder %s68, %s69
    %p80 = scmp.eq.s32.totalorder %s13, 0
    %p81 = por %p79, %p80
    %p82 = scmp.ne.s32.totalorder %s68, %s69
    %p83 = scmp.eq.s32.totalorder %s14, 1
    %p84 = por %p82, %p83
    %p86 = scmp.ne.s32.totalorder %s69, %s85
    %p87 = scmp.eq.s32.totalorder %s14, 0
    %p88 = por %p86, %p87
    %p89 = scmp.le.s32.totalorder 1, %s8
    %p90 = scmp.lt.s32.totalorder %s8, 3
    %p91 = pnand %p89, %p90
    %p92 = pneg %p91
    // Predicated region
    $region9: #{gnn_forward.5} parent=5 // pred_check
      _
    $region10: #{gnn_forward.5} parent=5 // pred_check_branch
      %94 = sbr.rel (%p91) target = $region12
    $region11: #{gnn_forward.5} parent=5 // pred_region
      %s95 = ssub.s32 %s8, 1
      // Predicated region
      $region13: #{gnn_forward.5} parent=11 // pred_check
        %p96 = pneg %p55
      $region14: #{gnn_forward.5} parent=11 // pred_check_branch
        %98 = sbr.rel (%p96) target = $region16
      $region15: #{gnn_forward.5} parent=11 // pred_region
        _
      $region16: #{gnn_forward.5} parent=11 // pred_fallthru
        _
    $region12: #{gnn_forward.5} parent=5 // pred_fallthru
      _
    %p99 = scmp.lt.s32.totalorder %s8, 2
    // Predicated region
    $region17: #{gnn_forward.5} parent=5 // pred_check
      %p100 = pneg %p99
    $region18: #{gnn_forward.5} parent=5 // pred_check_branch
      %102 = sbr.rel (%p100) target = $region20
    $region19: #{gnn_forward.5} parent=5 // pred_region
      // Predicated region
      $region21: #{gnn_forward.5} parent=19 // pred_check
        %p103 = pneg %p28
      $region22: #{gnn_forward.5} parent=19 // pred_check_branch
        %105 = sbr.rel (%p103) target = $region24
      $region23: #{gnn_forward.5} parent=19 // pred_region
        %s106 = smul.u32 16, %s8
        %p107 = scmp.lt.s32.totalorder %s106, 31
        %s108 = scalar_select %p107, %s106, 31
        %s109 = smul.addr %s108, 4
        %s110 = scalar_lea.vmem %s0, %s109
        %s111 = smul.u32 16, %s8
      $region24: #{gnn_forward.5} parent=19 // pred_fallthru
        _
    $region20: #{gnn_forward.5} parent=5 // pred_fallthru
      _
    %p112 = scmp.le.s32.totalorder 1, %s8
    %p113 = scmp.lt.s32.totalorder %s8, 3
    %p114 = pnand %p112, %p113
    %p115 = pneg %p114
    // Predicated region
    $region25: #{gnn_forward.5} parent=5 // pred_check
      _
    $region26: #{gnn_forward.5} parent=5 // pred_check_branch
      %117 = sbr.rel (%p114) target = $region28
    $region27: #{gnn_forward.5} parent=5 // pred_region
      %s118 = ssub.s32 %s8, 1
      %s119 = smul.u32 16, %s13
      %p120 = scmp.lt.s32.totalorder %s119, 31
      %s121 = scalar_select %p120, %s119, 31
      %s122 = smul.addr %s121, 4
      %s123 = scalar_lea.vmem %s0, %s122
      %p124 = pneg %p34
      %p125 = pneg %p31
      %p126 = pneg %p55
      %p127 = pneg %p52
      %p128 = pneg %p81
      %p129 = pneg %p78
      %s130 = smul.u32 16, %s13
      %p131 = scmp.lt.s32.totalorder %s130, 31
      %s132 = scalar_select %p131, %s130, 31
      %s133 = smul.addr %s132, 4
      %s134 = scalar_lea.vmem %s2, %s133
      %s135 = smul.u32 16, %s13
      %p136 = scmp.lt.s32.totalorder %s135, 31
      %s137 = scalar_select %p136, %s135, 31
      %s138 = smul.addr %s137, 4
      %s139 = scalar_lea.vmem %s0, %s138
      %s140 = smul.u32 16, %s13
      %s141 = smul.u32 16, %s13
      %p142 = scmp.lt.s32.totalorder %s141, 31
      %s143 = scalar_select %p142, %s141, 31
      %s144 = smul.addr %s143, 4
      %s145 = scalar_lea.vmem %s2, %s144
      %s146 = smul.u32 16, %s13
      %v148 = vld [vmem:[%s139] sm:$0xf]
      %v149 = vld [vmem:[%s139 + $0x4] sm:$0xf]
      %v150 = vld [vmem:[%s139 + $0x8] sm:$0xf]
      %v151 = vld [vmem:[%s139 + $0xc] sm:$0xf]
      %v152 = vld [vmem:[%s139 + $0x10] sm:$0xf]
      %v153 = vld [vmem:[%s139 + $0x14] sm:$0xf]
      %v154 = vld [vmem:[%s139 + $0x18] sm:$0xf]
      %v155 = vld [vmem:[%s139 + $0x1c] sm:$0xf]
      %v156 = vld [vmem:[%s139 + $0x20] sm:$0xf]
      %v157 = vld [vmem:[%s139 + $0x24] sm:$0xf]
      %v158 = vld [vmem:[%s139 + $0x28] sm:$0xf]
      %v159 = vld [vmem:[%s139 + $0x2c] sm:$0xf]
      %v160 = vld [vmem:[%s139 + $0x30] sm:$0xf]
      %v161 = vld [vmem:[%s139 + $0x34] sm:$0xf]
      %v162 = vld [vmem:[%s139 + $0x38] sm:$0xf]
      %v163 = vld [vmem:[%s139 + $0x3c] sm:$0xf]
      %v164 = vld [vmem:[%s1] sm:$0xf]
      %v165 = vld [vmem:[%s1 + $0x4] sm:$0xf]
      %v166 = vld [vmem:[%s1 + $0x8] sm:$0xf]
      %v167 = vld [vmem:[%s1 + $0xc] sm:$0xf]
      %v168 = vld [vmem:[%s1 + $0x10] sm:$0xf]
      %v169 = vld [vmem:[%s1 + $0x14] sm:$0xf]
      %v170 = vld [vmem:[%s1 + $0x18] sm:$0xf]
      %v171 = vld [vmem:[%s1 + $0x1c] sm:$0xf]
      %v172 = vld [vmem:[%s1 + $0x20] sm:$0xf]
      %v173 = vld [vmem:[%s1 + $0x24] sm:$0xf]
      %v174 = vld [vmem:[%s1 + $0x28] sm:$0xf]
      %v175 = vld [vmem:[%s1 + $0x2c] sm:$0xf]
      %v176 = vld [vmem:[%s1 + $0x30] sm:$0xf]
      %v177 = vld [vmem:[%s1 + $0x34] sm:$0xf]
      %v178 = vld [vmem:[%s1 + $0x38] sm:$0xf]
      %v179 = vld [vmem:[%s1 + $0x3c] sm:$0xf]
      %v196 = vunpack.c.l.b16 %v148
      %v197 = vunpack.c.l.b16 %v149
      %v198 = vunpack.c.l.b16 %v150
      %v199 = vunpack.c.l.b16 %v151
      %v200 = vunpack.c.l.b16 %v152
      %v201 = vunpack.c.l.b16 %v153
      %v202 = vunpack.c.l.b16 %v154
      %v203 = vunpack.c.l.b16 %v155
      %v204 = vunpack.c.l.b16 %v156
      %v205 = vunpack.c.l.b16 %v157
      %v206 = vunpack.c.l.b16 %v158
      %v207 = vunpack.c.l.b16 %v159
      %v208 = vunpack.c.l.b16 %v160
      %v209 = vunpack.c.l.b16 %v161
      %v210 = vunpack.c.l.b16 %v162
      %v211 = vunpack.c.l.b16 %v163
      %v212 = vpack.c.b16 %v197, %v196
      %v213 = vpack.c.b16 %v199, %v198
      %v214 = vpack.c.b16 %v201, %v200
      %v215 = vpack.c.b16 %v203, %v202
      %v216 = vpack.c.b16 %v205, %v204
      %v217 = vpack.c.b16 %v207, %v206
      %v218 = vpack.c.b16 %v209, %v208
      %v219 = vpack.c.b16 %v211, %v210
      %v244 = vunpack.c.l.b16 %v164
      %v245 = vunpack.c.l.b16 %v165
      %v246 = vunpack.c.l.b16 %v166
      %v247 = vunpack.c.l.b16 %v167
      %v248 = vunpack.c.l.b16 %v168
      %v249 = vunpack.c.l.b16 %v169
      %v250 = vunpack.c.l.b16 %v170
      %v251 = vunpack.c.l.b16 %v171
      %v252 = vunpack.c.l.b16 %v172
      %v253 = vunpack.c.l.b16 %v173
      %v254 = vunpack.c.l.b16 %v174
      %v255 = vunpack.c.l.b16 %v175
      %v256 = vunpack.c.l.b16 %v176
      %v257 = vunpack.c.l.b16 %v177
      %v258 = vunpack.c.l.b16 %v178
      %v259 = vunpack.c.l.b16 %v179
      %v260 = vpack.c.b16 %v245, %v244
      %v261 = vpack.c.b16 %v247, %v246
      %v262 = vpack.c.b16 %v249, %v248
      %v263 = vpack.c.b16 %v251, %v250
      %v264 = vpack.c.b16 %v253, %v252
      %v265 = vpack.c.b16 %v255, %v254
      %v266 = vpack.c.b16 %v257, %v256
      %v267 = vpack.c.b16 %v259, %v258
      %276 = vmatprep.subr.bf16.mxu0 0
      %277 = vmatpush1.bf16.msra.mxu0 %v260
      %278 = vmatprep.subr.bf16.mxu0 0
      %279 = vmatpush1.bf16.msra.mxu0 %v261
      %280 = vmatprep.subr.bf16.mxu0 0
      %281 = vmatpush1.bf16.msra.mxu0 %v262
      %282 = vmatprep.subr.bf16.mxu0 0
      %283 = vmatpush1.bf16.msra.mxu0 %v263
      %284 = vmatprep.subr.bf16.mxu0 0
      %285 = vmatpush1.bf16.msra.mxu0 %v264
      %286 = vmatprep.subr.bf16.mxu0 0
      %287 = vmatpush1.bf16.msra.mxu0 %v265
      %288 = vmatprep.subr.bf16.mxu0 0
      %289 = vmatpush1.bf16.msra.mxu0 %v266
      %290 = vmatprep.subr.bf16.mxu0 0
      %291 = vmatpush1.bf16.msra.mxu0 %v267
      %292 = vmatprep.subr.bf16.mxu0 0
      %293 = vmatpush1.bf16.msra.mxu0 0
      %294 = vmatprep.subr.bf16.mxu0 0
      %295 = vmatpush1.bf16.msra.mxu0 0
      %296 = vmatprep.subr.bf16.mxu0 0
      %297 = vmatpush1.bf16.msra.mxu0 0
      %298 = vmatprep.subr.bf16.mxu0 0
      %299 = vmatpush1.bf16.msra.mxu0 0
      %300 = vmatprep.subr.bf16.mxu0 0
      %301 = vmatpush1.bf16.msra.mxu0 0
      %302 = vmatprep.subr.bf16.mxu0 0
      %303 = vmatpush1.bf16.msra.mxu0 0
      %304 = vmatprep.subr.bf16.mxu0 0
      %305 = vmatpush1.bf16.msra.mxu0 0
      %306 = vmatprep.subr.bf16.mxu0 0
      %307 = vmatpush1.bf16.msra.mxu0 0
      %308 = vmatprep.mubr.bf16.mxu0 0
      %309 = vmatmul.mubr.bf16.gmra.mrb[0].mxu0 %v212
      %v310 = vpop.f32.mrb[0].mxu0
      %v311 = vadd.f32 0.0, %v310
      %v312 = vpop.f32.mrb[0].mxu0
      %v313 = vpop.f32.mrb[0].mxu0
      %v314 = vadd.f32 0.0, %v313
      %v315 = vpop.f32.mrb[0].mxu0
      %316 = vmatprep.mubr.bf16.mxu0 0
      %317 = vmatmul.mubr.bf16.gmra.mrb[0].mxu0 %v213
      %v318 = vpop.f32.mrb[0].mxu0
      %v319 = vadd.f32 0.0, %v318
      %v320 = vpop.f32.mrb[0].mxu0
      %v321 = vpop.f32.mrb[0].mxu0
      %v322 = vadd.f32 0.0, %v321
      %v323 = vpop.f32.mrb[0].mxu0
      %324 = vmatprep.mubr.bf16.mxu0 0
      %325 = vmatmul.mubr.bf16.gmra.mrb[0].mxu0 %v214
      %v326 = vpop.f32.mrb[0].mxu0
      %v327 = vadd.f32 0.0, %v326
      %v328 = vpop.f32.mrb[0].mxu0
      %v329 = vpop.f32.mrb[0].mxu0
      %v330 = vadd.f32 0.0, %v329
      %v331 = vpop.f32.mrb[0].mxu0
      %332 = vmatprep.mubr.bf16.mxu0 0
      %333 = vmatmul.mubr.bf16.gmra.mrb[0].mxu0 %v215
      %v334 = vpop.f32.mrb[0].mxu0
      %v335 = vadd.f32 0.0, %v334
      %v336 = vpop.f32.mrb[0].mxu0
      %v337 = vpop.f32.mrb[0].mxu0
      %v338 = vadd.f32 0.0, %v337
      %v339 = vpop.f32.mrb[0].mxu0
      %340 = vmatprep.mubr.bf16.mxu0 0
      %341 = vmatmul.mubr.bf16.gmra.mrb[0].mxu0 %v216
      %v342 = vpop.f32.mrb[0].mxu0
      %v343 = vadd.f32 0.0, %v342
      %v344 = vpop.f32.mrb[0].mxu0
      %v345 = vpop.f32.mrb[0].mxu0
      %v346 = vadd.f32 0.0, %v345
      %v347 = vpop.f32.mrb[0].mxu0
      %348 = vmatprep.mubr.bf16.mxu0 0
      %349 = vmatmul.mubr.bf16.gmra.mrb[0].mxu0 %v217
      %v350 = vpop.f32.mrb[0].mxu0
      %v351 = vadd.f32 0.0, %v350
      %v352 = vpop.f32.mrb[0].mxu0
      %v353 = vpop.f32.mrb[0].mxu0
      %v354 = vadd.f32 0.0, %v353
      %v355 = vpop.f32.mrb[0].mxu0
      %356 = vmatprep.mubr.bf16.mxu0 0
      %357 = vmatmul.mubr.bf16.gmra.mrb[0].mxu0 %v218
      %v358 = vpop.f32.mrb[0].mxu0
      %v359 = vadd.f32 0.0, %v358
      %v360 = vpop.f32.mrb[0].mxu0
      %v361 = vpop.f32.mrb[0].mxu0
      %v362 = vadd.f32 0.0, %v361
      %v363 = vpop.f32.mrb[0].mxu0
      %364 = vmatprep.mubr.bf16.mxu0 0
      %365 = vmatmul.mubr.bf16.gmra.mrb[0].mxu0 %v219
      %v366 = vpop.f32.mrb[0].mxu0
      %v367 = vadd.f32 0.0, %v366
      %v368 = vpop.f32.mrb[0].mxu0
      %v369 = vpop.f32.mrb[0].mxu0
      %v370 = vadd.f32 0.0, %v369
      %v371 = vpop.f32.mrb[0].mxu0
      %372 = vdwg.mxu0
      %v373 = vpack.c.bf16 %v314, %v311
      %v374 = vpack.c.bf16 %v322, %v319
      %v375 = vpack.c.bf16 %v330, %v327
      %v376 = vpack.c.bf16 %v338, %v335
      %v377 = vpack.c.bf16 %v346, %v343
      %v378 = vpack.c.bf16 %v354, %v351
      %v379 = vpack.c.bf16 %v362, %v359
      %v380 = vpack.c.bf16 %v370, %v367
      %v389 = vunpack.c.l.b16 %v373
      %v390 = vunpack.c.h.b16 %v373
      %v391 = vunpack.c.l.b16 %v374
      %v392 = vunpack.c.h.b16 %v374
      %v393 = vunpack.c.l.b16 %v375
      %v394 = vunpack.c.h.b16 %v375
      %v395 = vunpack.c.l.b16 %v376
      %v396 = vunpack.c.h.b16 %v376
      %v397 = vunpack.c.l.b16 %v377
      %v398 = vunpack.c.h.b16 %v377
      %v399 = vunpack.c.l.b16 %v378
      %v400 = vunpack.c.h.b16 %v378
      %v401 = vunpack.c.l.b16 %v379
      %v402 = vunpack.c.h.b16 %v379
      %v403 = vunpack.c.l.b16 %v380
      %v404 = vunpack.c.h.b16 %v380
      %v405 = vpack.c.b16 %v389, %v389
      %v406 = vpack.c.b16 %v390, %v390
      %v407 = vpack.c.b16 %v391, %v391
      %v408 = vpack.c.b16 %v392, %v392
      %v409 = vpack.c.b16 %v393, %v393
      %v410 = vpack.c.b16 %v394, %v394
      %v411 = vpack.c.b16 %v395, %v395
      %v412 = vpack.c.b16 %v396, %v396
      %v413 = vpack.c.b16 %v397, %v397
      %v414 = vpack.c.b16 %v398, %v398
      %v415 = vpack.c.b16 %v399, %v399
      %v416 = vpack.c.b16 %v400, %v400
      %v417 = vpack.c.b16 %v401, %v401
      %v418 = vpack.c.b16 %v402, %v402
      %v419 = vpack.c.b16 %v403, %v403
      %v420 = vpack.c.b16 %v404, %v404
      %437 = vst [vmem:[%s145] sm:$0xf] %v405
      %438 = vst [vmem:[%s145 + $0x4] sm:$0xf] %v406
      %439 = vst [vmem:[%s145 + $0x8] sm:$0xf] %v407
      %440 = vst [vmem:[%s145 + $0xc] sm:$0xf] %v408
      %441 = vst [vmem:[%s145 + $0x10] sm:$0xf] %v409
      %442 = vst [vmem:[%s145 + $0x14] sm:$0xf] %v410
      %443 = vst [vmem:[%s145 + $0x18] sm:$0xf] %v411
      %444 = vst [vmem:[%s145 + $0x1c] sm:$0xf] %v412
      %445 = vst [vmem:[%s145 + $0x20] sm:$0xf] %v413
      %446 = vst [vmem:[%s145 + $0x24] sm:$0xf] %v414
      %447 = vst [vmem:[%s145 + $0x28] sm:$0xf] %v415
      %448 = vst [vmem:[%s145 + $0x2c] sm:$0xf] %v416
      %449 = vst [vmem:[%s145 + $0x30] sm:$0xf] %v417
      %450 = vst [vmem:[%s145 + $0x34] sm:$0xf] %v418
      %451 = vst [vmem:[%s145 + $0x38] sm:$0xf] %v419
      %452 = vst [vmem:[%s145 + $0x3c] sm:$0xf] %v420
      %s453 = smul.u32 16, %s13
      %p454 = scmp.lt.s32.totalorder %s453, 31
      %s455 = scalar_select %p454, %s453, 31
      %s456 = smul.addr %s455, 4
      %s457 = scalar_lea.vmem %s2, %s456
      // Predicated region
      $region29: #{gnn_forward.5} parent=27 // pred_check
        %p458 = pneg %p78
      $region30: #{gnn_forward.5} parent=27 // pred_check_branch
        %460 = sbr.rel (%p458) target = $region32
      $region31: #{gnn_forward.5} parent=27 // pred_region
        %s461 = smul.u32 16, %s13
      $region32: #{gnn_forward.5} parent=27 // pred_fallthru
        _
    $region28: #{gnn_forward.5} parent=5 // pred_fallthru
      _
    %p462 = scmp.le.s32.totalorder 2, %s8
    // Predicated region
    $region33: #{gnn_forward.5} parent=5 // pred_check
      %p463 = pneg %p462
    $region34: #{gnn_forward.5} parent=5 // pred_check_branch
      %465 = sbr.rel (%p463) target = $region36
    $region35: #{gnn_forward.5} parent=5 // pred_region
      %s466 = ssub.s32 %s8, 2
      // Predicated region
      $region37: #{gnn_forward.5} parent=35 // pred_check
        %p467 = pneg %p84
      $region38: #{gnn_forward.5} parent=35 // pred_check_branch
        %469 = sbr.rel (%p467) target = $region40
      $region39: #{gnn_forward.5} parent=35 // pred_region
        %s470 = smul.u32 16, %s14
        %p471 = scmp.lt.s32.totalorder %s470, 31
        %s472 = scalar_select %p471, %s470, 31
        %s473 = smul.addr %s472, 4
        %s474 = scalar_lea.vmem %s2, %s473
      $region40: #{gnn_forward.5} parent=35 // pred_fallthru
        _
    $region36: #{gnn_forward.5} parent=5 // pred_fallthru
      _
  $region6: #{gnn_forward.5} parent=0 // loop_footer
    %s12 = sadd.s32 1, %s8
  $region7: #{gnn_forward.5} parent=0 // loop_footer_branch
    %7 = sbr.rel target = $region3
  $region8: #{gnn_forward.5} parent=0 // loop_exit
    _

// kernel: gnn_forward.9
$region0: #{gnn_forward.9}
  #allocation0 [shape = 'u32[]', space=smem, size = 0x4, offset = 0x4, fixed_abs, tag = 'smem constant byte address 0x4 - core index']
  #allocation1 [shape = 'u32[144,128]{1,0:T(1,128)}', space=vmem, size = 0x12000, scoped, tag = 'internal scratch']
  %s0 = inlined_call_operand.vmem [shape: bf16[256,128], index: 0, kind: input, shape index: {}, may-alias: {0,1}]
  %s1 = inlined_call_operand.vmem [shape: bf16[256,128], index: 1, kind: input, shape index: {}, may-alias: {0,1}]
  %s2 = inlined_call_operand.vmem [shape: bf16[256,256], index: 2, kind: output, shape index: {}]
  %s3 = sld [smem:[#allocation0]]
  $region78: #{gnn_forward.9} parent=0
    _
  %s5 = ssub.s32 1, %s3
  %s6 = scalar_select 0, %s5, %s3
  $region1: #{gnn_forward.9} parent=0
    #allocation2 [shape = 'u8[65536]{0}', space=vmem, size = 0x10000, scoped, tag = 'output window, operand 0']
    loop: start=0, step=1, limit=6
    $region2: #{gnn_forward.9} parent=1 // loop_pre_header
      _
    $region3: #{gnn_forward.9} parent=1 // loop_header
      %s8 = sphi 0, %s12
      %p9 = scmp.ge.s32.totalorder %s8, 6
      %s15 = sphi 0, %s27
      %s16 = sphi 0, %s23
      %s17 = sphi 0, %s15
      %s18 = sphi 0, %s16
      %s19 = sphi 0, %s17
      %s20 = sphi 0, %s18
      %s30 = sphi 0, %s32
      %s33 = sphi 0, %s30
      %s34 = sphi 0, %s33
      %s50 = sphi 0, %s34
      %s56 = sphi 0, %s58
      %s59 = sphi 0, %s56
      %s60 = sphi 0, %s59
      %s76 = sphi 0, %s60
      %s84 = sphi 0, %s86
      %s87 = sphi 0, %s84
      %s88 = sphi 0, %s87
      %s104 = sphi 0, %s88
    $region4: #{gnn_forward.9} parent=1 // loop_header_branch
      %11 = sbr.rel (%p9) target = $region8
    $region5: #{gnn_forward.9} parent=1 // loop_body
      %s13 = ssub.s32 %s8, 1
      %s14 = ssub.s32 %s8, 2
      %s21 = sadd.s32 1, %s16
      %p22 = scmp.ge.s32.totalorder %s21, 2
      %s23 = scalar_select %p22, 0, %s21
      %s24 = sadd.s32 1, %s15
      %s25 = scalar_select %p22, %s24, %s15
      %p26 = scmp.ge.s32.totalorder %s25, 2
      %s27 = scalar_select %p26, 0, %s25
      %s28 = ssub.s32 %s15, %s27
      %p29 = scmp.eq.s32.totalorder %s28, 0
      %s31 = sadd.s32 %s30, 1
      %s32 = scalar_select %p29, %s30, %s31
      %p35 = pneg %p29
      %p36 = scmp.eq.s32.totalorder %s8, 3
      %p37 = por %p35, %p36
      %p38 = scmp.ne.s32.totalorder %s30, %s33
      %p39 = scmp.eq.s32.totalorder %s8, 0
      %p40 = por %p38, %p39
      %p41 = scmp.ne.s32.totalorder %s30, %s33
      %p42 = scmp.eq.s32.totalorder %s13, 3
      %p43 = por %p41, %p42
      %p44 = scmp.ne.s32.totalorder %s33, %s34
      %p45 = scmp.eq.s32.totalorder %s13, 0
      %p46 = por %p44, %p45
      %p47 = scmp.ne.s32.totalorder %s33, %s34
      %p48 = scmp.eq.s32.totalorder %s14, 3
      %p49 = por %p47, %p48
      %p51 = scmp.ne.s32.totalorder %s34, %s50
      %p52 = scmp.eq.s32.totalorder %s14, 0
      %p53 = por %p51, %p52
      %s54 = ssub.s32 %s16, %s23
      %p55 = scmp.eq.s32.totalorder %s54, 0
      %s57 = sadd.s32 %s56, 1
      %s58 = scalar_select %p55, %s56, %s57
      %p61 = pneg %p55
      %p62 = scmp.eq.s32.totalorder %s8, 3
      %p63 = por %p61, %p62
      %p64 = scmp.ne.s32.totalorder %s56, %s59
      %p65 = scmp.eq.s32.totalorder %s8, 0
      %p66 = por %p64, %p65
      %p67 = scmp.ne.s32.totalorder %s56, %s59
      %p68 = scmp.eq.s32.totalorder %s13, 3
      %p69 = por %p67, %p68
      %p70 = scmp.ne.s32.totalorder %s59, %s60
      %p71 = scmp.eq.s32.totalorder %s13, 0
      %p72 = por %p70, %p71
      %p73 = scmp.ne.s32.totalorder %s59, %s60
      %p74 = scmp.eq.s32.totalorder %s14, 3
      %p75 = por %p73, %p74
      %p77 = scmp.ne.s32.totalorder %s60, %s76
      %p78 = scmp.eq.s32.totalorder %s14, 0
      %p79 = por %p77, %p78
      %s80 = ssub.s32 %s15, %s27
      %s81 = ssub.s32 %s16, %s23
      %s82 = sor.u32 %s80, %s81
      %p83 = scmp.eq.s32.totalorder %s82, 0
      %s85 = sadd.s32 %s84, 1
      %s86 = scalar_select %p83, %s84, %s85
      %p89 = pneg %p83
      %p90 = scmp.eq.s32.totalorder %s8, 3
      %p91 = por %p89, %p90
      %p92 = scmp.ne.s32.totalorder %s84, %s87
      %p93 = scmp.eq.s32.totalorder %s8, 0
      %p94 = por %p92, %p93
      %p95 = scmp.ne.s32.totalorder %s84, %s87
      %p96 = scmp.eq.s32.totalorder %s13, 3
      %p97 = por %p95, %p96
      %p98 = scmp.ne.s32.totalorder %s87, %s88
      %p99 = scmp.eq.s32.totalorder %s13, 0
      %p100 = por %p98, %p99
      %p101 = scmp.ne.s32.totalorder %s87, %s88
      %p102 = scmp.eq.s32.totalorder %s14, 3
      %p103 = por %p101, %p102
      %p105 = scmp.ne.s32.totalorder %s88, %s104
      %p106 = scmp.eq.s32.totalorder %s14, 0
      %p107 = por %p105, %p106
      %p108 = scmp.le.s32.totalorder 1, %s8
      %p109 = scmp.lt.s32.totalorder %s8, 5
      %p110 = pnand %p108, %p109
      %p111 = pneg %p110
      // Predicated region
      $region9: #{gnn_forward.9} parent=5 // pred_check
        _
      $region10: #{gnn_forward.9} parent=5 // pred_check_branch
        %113 = sbr.rel (%p110) target = $region12
      $region11: #{gnn_forward.9} parent=5 // pred_region
        %s114 = ssub.s32 %s8, 1
      $region12: #{gnn_forward.9} parent=5 // pred_fallthru
        _
      %p115 = scmp.lt.s32.totalorder %s8, 4
      // Predicated region
      $region13: #{gnn_forward.9} parent=5 // pred_check
        %p116 = pneg %p115
      $region14: #{gnn_forward.9} parent=5 // pred_check_branch
        %118 = sbr.rel (%p116) target = $region16
      $region15: #{gnn_forward.9} parent=5 // pred_region
        // Predicated region
        $region17: #{gnn_forward.9} parent=15 // pred_check
          %p119 = pneg %p40
        $region18: #{gnn_forward.9} parent=15 // pred_check_branch
          %121 = sbr.rel (%p119) target = $region20
        $region19: #{gnn_forward.9} parent=15 // pred_region
          %s122 = smul.u32 16, %s15
          %p123 = scmp.lt.s32.totalorder %s122, 31
          %s124 = scalar_select %p123, %s122, 31
          %s125 = smul.addr %s124, 4
          %s126 = scalar_lea.vmem %s0, %s125
          %s127 = smul.u32 16, %s15
        $region20: #{gnn_forward.9} parent=15 // pred_fallthru
          _
        // Predicated region
        $region21: #{gnn_forward.9} parent=15 // pred_check
          %p128 = pneg %p66
        $region22: #{gnn_forward.9} parent=15 // pred_check_branch
          %130 = sbr.rel (%p128) target = $region24
        $region23: #{gnn_forward.9} parent=15 // pred_region
          %s131 = smul.u32 16, %s16
          %p132 = scmp.lt.s32.totalorder %s131, 31
          %s133 = scalar_select %p132, %s131, 31
          %s134 = smul.addr %s133, 4
          %s135 = scalar_lea.vmem %s1, %s134
          %s136 = smul.u32 16, %s16
        $region24: #{gnn_forward.9} parent=15 // pred_fallthru
          _
      $region16: #{gnn_forward.9} parent=5 // pred_fallthru
        _
      %p137 = scmp.le.s32.totalorder 1, %s8
      %p138 = scmp.lt.s32.totalorder %s8, 5
      %p139 = pnand %p137, %p138
      %p140 = pneg %p139
      // Predicated region
      $region25: #{gnn_forward.9} parent=5 // pred_check
        _
      $region26: #{gnn_forward.9} parent=5 // pred_check_branch
        %142 = sbr.rel (%p139) target = $region28
      $region27: #{gnn_forward.9} parent=5 // pred_region
        %s143 = ssub.s32 %s8, 1
        %s144 = smul.u32 16, %s17
        %p145 = scmp.lt.s32.totalorder %s144, 31
        %s146 = scalar_select %p145, %s144, 31
        %s147 = smul.addr %s146, 4
        %s148 = scalar_lea.vmem %s0, %s147
        %p149 = pneg %p46
        %p150 = pneg %p43
        %s151 = smul.u32 16, %s18
        %p152 = scmp.lt.s32.totalorder %s151, 31
        %s153 = scalar_select %p152, %s151, 31
        %s154 = smul.addr %s153, 4
        %s155 = scalar_lea.vmem %s1, %s154
        %p156 = pneg %p72
        %p157 = pneg %p69
        %p158 = pneg %p100
        %p159 = pneg %p97
        %s160 = sand.u32 %s87, 1
        %s161 = sand.u32 %s87, 1
        %s162 = smul.addr %s161, 64
        %s163 = scalar_lea.vmem [#allocation2], %s162
        %s164 = smul.u32 16, %s17
        %p165 = scmp.lt.s32.totalorder %s164, 31
        %s166 = scalar_select %p165, %s164, 31
        %s167 = smul.addr %s166, 4
        %s168 = scalar_lea.vmem %s0, %s167
        %s169 = smul.u32 16, %s17
        %s170 = smul.u32 16, %s18
        %p171 = scmp.lt.s32.totalorder %s170, 31
        %s172 = scalar_select %p171, %s170, 31
        %s173 = smul.addr %s172, 4
        %s174 = scalar_lea.vmem %s1, %s173
        %s175 = smul.u32 16, %s18
        %s176 = smul.u32 16, %s17
        %v178 = vld [vmem:[%s168] sm:$0xf]
        %v179 = vld [vmem:[%s168 + $0x4] sm:$0xf]
        %v180 = vld [vmem:[%s168 + $0x8] sm:$0xf]
        %v181 = vld [vmem:[%s168 + $0xc] sm:$0xf]
        %v182 = vld [vmem:[%s168 + $0x10] sm:$0xf]
        %v183 = vld [vmem:[%s168 + $0x14] sm:$0xf]
        %v184 = vld [vmem:[%s168 + $0x18] sm:$0xf]
        %v185 = vld [vmem:[%s168 + $0x1c] sm:$0xf]
        %v186 = vld [vmem:[%s168 + $0x20] sm:$0xf]
        %v187 = vld [vmem:[%s168 + $0x24] sm:$0xf]
        %v188 = vld [vmem:[%s168 + $0x28] sm:$0xf]
        %v189 = vld [vmem:[%s168 + $0x2c] sm:$0xf]
        %v190 = vld [vmem:[%s168 + $0x30] sm:$0xf]
        %v191 = vld [vmem:[%s168 + $0x34] sm:$0xf]
        %v192 = vld [vmem:[%s168 + $0x38] sm:$0xf]
        %v193 = vld [vmem:[%s168 + $0x3c] sm:$0xf]
        %v194 = vld [vmem:[%s174] sm:$0xf]
        %v195 = vld [vmem:[%s174 + $0x4] sm:$0xf]
        %v196 = vld [vmem:[%s174 + $0x8] sm:$0xf]
        %v197 = vld [vmem:[%s174 + $0xc] sm:$0xf]
        %v198 = vld [vmem:[%s174 + $0x10] sm:$0xf]
        %v199 = vld [vmem:[%s174 + $0x14] sm:$0xf]
        %v200 = vld [vmem:[%s174 + $0x18] sm:$0xf]
        %v201 = vld [vmem:[%s174 + $0x1c] sm:$0xf]
        %v202 = vld [vmem:[%s174 + $0x20] sm:$0xf]
        %v203 = vld [vmem:[%s174 + $0x24] sm:$0xf]
        %v204 = vld [vmem:[%s174 + $0x28] sm:$0xf]
        %v205 = vld [vmem:[%s174 + $0x2c] sm:$0xf]
        %v206 = vld [vmem:[%s174 + $0x30] sm:$0xf]
        %v207 = vld [vmem:[%s174 + $0x34] sm:$0xf]
        %v208 = vld [vmem:[%s174 + $0x38] sm:$0xf]
        %v209 = vld [vmem:[%s174 + $0x3c] sm:$0xf]
        %v226 = vunpack.c.l.b16 %v178
        %v227 = vunpack.c.l.b16 %v179
        %v228 = vunpack.c.l.b16 %v180
        %v229 = vunpack.c.l.b16 %v181
        %v230 = vunpack.c.l.b16 %v182
        %v231 = vunpack.c.l.b16 %v183
        %v232 = vunpack.c.l.b16 %v184
        %v233 = vunpack.c.l.b16 %v185
        %v234 = vunpack.c.l.b16 %v186
        %v235 = vunpack.c.l.b16 %v187
        %v236 = vunpack.c.l.b16 %v188
        %v237 = vunpack.c.l.b16 %v189
        %v238 = vunpack.c.l.b16 %v190
        %v239 = vunpack.c.l.b16 %v191
        %v240 = vunpack.c.l.b16 %v192
        %v241 = vunpack.c.l.b16 %v193
        %v242 = vpack.c.b16 %v227, %v226
        %v243 = vpack.c.b16 %v229, %v228
        %v244 = vpack.c.b16 %v231, %v230
        %v245 = vpack.c.b16 %v233, %v232
        %v246 = vpack.c.b16 %v235, %v234
        %v247 = vpack.c.b16 %v237, %v236
        %v248 = vpack.c.b16 %v239, %v238
        %v249 = vpack.c.b16 %v241, %v240
        %v274 = vunpack.c.l.b16 %v194
        %v275 = vunpack.c.l.b16 %v195
        %v276 = vunpack.c.l.b16 %v196
        %v277 = vunpack.c.l.b16 %v197
        %v278 = vunpack.c.l.b16 %v198
        %v279 = vunpack.c.l.b16 %v199
        %v280 = vunpack.c.l.b16 %v200
        %v281 = vunpack.c.l.b16 %v201
        %v282 = vunpack.c.l.b16 %v202
        %v283 = vunpack.c.l.b16 %v203
        %v284 = vunpack.c.l.b16 %v204
        %v285 = vunpack.c.l.b16 %v205
        %v286 = vunpack.c.l.b16 %v206
        %v287 = vunpack.c.l.b16 %v207
        %v288 = vunpack.c.l.b16 %v208
        %v289 = vunpack.c.l.b16 %v209
        %v290 = vpack.c.b16 %v275, %v274
        %v291 = vpack.c.b16 %v277, %v276
        %v292 = vpack.c.b16 %v279, %v278
        %v293 = vpack.c.b16 %v281, %v280
        %v294 = vpack.c.b16 %v283, %v282
        %v295 = vpack.c.b16 %v285, %v284
        %v296 = vpack.c.b16 %v287, %v286
        %v297 = vpack.c.b16 %v289, %v288
        %306 = vmatprep.subr.bf16.mxu0 0
        %307 = vmatpush1.bf16.xpose.msra.mxu0 %v290
        %308 = vmatprep.subr.bf16.mxu0 0
        %309 = vmatpush1.bf16.xpose.msra.mxu0 %v291
        %310 = vmatprep.subr.bf16.mxu0 0
        %311 = vmatpush1.bf16.xpose.msra.mxu0 %v292
        %312 = vmatprep.subr.bf16.mxu0 0
        %313 = vmatpush1.bf16.xpose.msra.mxu0 %v293
        %314 = vmatprep.subr.bf16.mxu0 0
        %315 = vmatpush1.bf16.xpose.msra.mxu0 %v294
        %316 = vmatprep.subr.bf16.mxu0 0
        %317 = vmatpush1.bf16.xpose.msra.mxu0 %v295
        %318 = vmatprep.subr.bf16.mxu0 0
        %319 = vmatpush1.bf16.xpose.msra.mxu0 %v296
        %320 = vmatprep.subr.bf16.mxu0 0
        %321 = vmatpush1.bf16.xpose.msra.mxu0 %v297
        %322 = vmatprep.subr.bf16.mxu0 0
        %323 = vmatpush1.bf16.xpose.msra.mxu0 0
        %324 = vmatprep.subr.bf16.mxu0 0
        %325 = vmatpush1.bf16.xpose.msra.mxu0 0
        %326 = vmatprep.subr.bf16.mxu0 0
        %327 = vmatpush1.bf16.xpose.msra.mxu0 0
        %328 = vmatprep.subr.bf16.mxu0 0
        %329 = vmatpush1.bf16.xpose.msra.mxu0 0
        %330 = vmatprep.subr.bf16.mxu0 0
        %331 = vmatpush1.bf16.xpose.msra.mxu0 0
        %332 = vmatprep.subr.bf16.mxu0 0
        %333 = vmatpush1.bf16.xpose.msra.mxu0 0
        %334 = vmatprep.subr.bf16.mxu0 0
        %335 = vmatpush1.bf16.xpose.msra.mxu0 0
        %336 = vmatprep.subr.bf16.mxu0 0
        %337 = vmatpush1.bf16.xpose.msra.mxu0 0
        %338 = vmatprep.mubr.bf16.mxu0 0
        %339 = vmatmul.mubr.bf16.gmra.mrb[0].mxu0 %v242
        %v340 = vpop.f32.mrb[0].mxu0
        %v341 = vadd.f32 0.0, %v340
        %v342 = vpop.f32.mrb[0].mxu0
        %v343 = vpop.f32.mrb[0].mxu0
        %v344 = vadd.f32 0.0, %v343
        %v345 = vpop.f32.mrb[0].mxu0
        %346 = vmatprep.mubr.bf16.mxu0 0
        %347 = vmatmul.mubr.bf16.gmra.mrb[0].mxu0 %v243
        %v348 = vpop.f32.mrb[0].mxu0
        %v349 = vadd.f32 0.0, %v348
        %v350 = vpop.f32.mrb[0].mxu0
        %v351 = vpop.f32.mrb[0].mxu0
        %v352 = vadd.f32 0.0, %v351
        %v353 = vpop.f32.mrb[0].mxu0
        %354 = vmatprep.mubr.bf16.mxu0 0
        %355 = vmatmul.mubr.bf16.gmra.mrb[0].mxu0 %v244
        %v356 = vpop.f32.mrb[0].mxu0
        %v357 = vadd.f32 0.0, %v356
        %v358 = vpop.f32.mrb[0].mxu0
        %v359 = vpop.f32.mrb[0].mxu0
        %v360 = vadd.f32 0.0, %v359
        %v361 = vpop.f32.mrb[0].mxu0
        %362 = vmatprep.mubr.bf16.mxu0 0
        %363 = vmatmul.mubr.bf16.gmra.mrb[0].mxu0 %v245
        %v364 = vpop.f32.mrb[0].mxu0
        %v365 = vadd.f32 0.0, %v364
        %v366 = vpop.f32.mrb[0].mxu0
        %v367 = vpop.f32.mrb[0].mxu0
        %v368 = vadd.f32 0.0, %v367
        %v369 = vpop.f32.mrb[0].mxu0
        %370 = vmatprep.mubr.bf16.mxu0 0
        %371 = vmatmul.mubr.bf16.gmra.mrb[0].mxu0 %v246
        %v372 = vpop.f32.mrb[0].mxu0
        %v373 = vadd.f32 0.0, %v372
        %v374 = vpop.f32.mrb[0].mxu0
        %v375 = vpop.f32.mrb[0].mxu0
        %v376 = vadd.f32 0.0, %v375
        %v377 = vpop.f32.mrb[0].mxu0
        %378 = vmatprep.mubr.bf16.mxu0 0
        %379 = vmatmul.mubr.bf16.gmra.mrb[0].mxu0 %v247
        %v380 = vpop.f32.mrb[0].mxu0
        %v381 = vadd.f32 0.0, %v380
        %v382 = vpop.f32.mrb[0].mxu0
        %v383 = vpop.f32.mrb[0].mxu0
        %v384 = vadd.f32 0.0, %v383
        %v385 = vpop.f32.mrb[0].mxu0
        %386 = vmatprep.mubr.bf16.mxu0 0
        %387 = vmatmul.mubr.bf16.gmra.mrb[0].mxu0 %v248
        %v388 = vpop.f32.mrb[0].mxu0
        %v389 = vadd.f32 0.0, %v388
        %v390 = vpop.f32.mrb[0].mxu0
        %v391 = vpop.f32.mrb[0].mxu0
        %v392 = vadd.f32 0.0, %v391
        %v393 = vpop.f32.mrb[0].mxu0
        %394 = vmatprep.mubr.bf16.mxu0 0
        %395 = vmatmul.mubr.bf16.gmra.mrb[0].mxu0 %v249
        %v396 = vpop.f32.mrb[0].mxu0
        %v397 = vadd.f32 0.0, %v396
        %v398 = vpop.f32.mrb[0].mxu0
        %v399 = vpop.f32.mrb[0].mxu0
        %v400 = vadd.f32 0.0, %v399
        %v401 = vpop.f32.mrb[0].mxu0
        %402 = vdwg.mxu0
        %v403 = vxor.u32 %v341, 2147483648
        %v404 = vxor.u32 %v344, 2147483648
        %v405 = vxor.u32 %v349, 2147483648
        %v406 = vxor.u32 %v352, 2147483648
        %v407 = vxor.u32 %v357, 2147483648
        %v408 = vxor.u32 %v360, 2147483648
        %v409 = vxor.u32 %v365, 2147483648
        %v410 = vxor.u32 %v368, 2147483648
        %v411 = vxor.u32 %v373, 2147483648
        %v412 = vxor.u32 %v376, 2147483648
        %v413 = vxor.u32 %v381, 2147483648
        %v414 = vxor.u32 %v384, 2147483648
        %v415 = vxor.u32 %v389, 2147483648
        %v416 = vxor.u32 %v392, 2147483648
        %v417 = vxor.u32 %v397, 2147483648
        %v418 = vxor.u32 %v400, 2147483648
        %v419 = vmul.f32 %v403, 1.442695
        %v420 = vpow.pop %v419
        %v421 = vmul.f32 %v404, 1.442695
        %v422 = vpow.pop %v421
        %v423 = vmul.f32 %v405, 1.442695
        %v424 = vpow.pop %v423
        %v425 = vmul.f32 %v406, 1.442695
        %v426 = vpow.pop %v425
        %v427 = vmul.f32 %v407, 1.442695
        %v428 = vpow.pop %v427
        %v429 = vmul.f32 %v408, 1.442695
        %v430 = vpow.pop %v429
        %v431 = vmul.f32 %v409, 1.442695
        %v432 = vpow.pop %v431
        %v433 = vmul.f32 %v410, 1.442695
        %v434 = vpow.pop %v433
        %v435 = vmul.f32 %v411, 1.442695
        %v436 = vpow.pop %v435
        %v437 = vmul.f32 %v412, 1.442695
        %v438 = vpow.pop %v437
        %v439 = vmul.f32 %v413, 1.442695
        %v440 = vpow.pop %v439
        %v441 = vmul.f32 %v414, 1.442695
        %v442 = vpow.pop %v441
        %v443 = vmul.f32 %v415, 1.442695
        %v444 = vpow.pop %v443
        %v445 = vmul.f32 %v416, 1.442695
        %v446 = vpow.pop %v445
        %v447 = vmul.f32 %v417, 1.442695
        %v448 = vpow.pop %v447
        %v449 = vmul.f32 %v418, 1.442695
        %v450 = vpow.pop %v449
        %v451 = vadd.f32 %v420, 1.0
        %v452 = vadd.f32 %v422, 1.0
        %v453 = vadd.f32 %v424, 1.0
        %v454 = vadd.f32 %v426, 1.0
        %v455 = vadd.f32 %v428, 1.0
        %v456 = vadd.f32 %v430, 1.0
        %v457 = vadd.f32 %v432, 1.0
        %v458 = vadd.f32 %v434, 1.0
        %v459 = vadd.f32 %v436, 1.0
        %v460 = vadd.f32 %v438, 1.0
        %v461 = vadd.f32 %v440, 1.0
        %v462 = vadd.f32 %v442, 1.0
        %v463 = vadd.f32 %v444, 1.0
        %v464 = vadd.f32 %v446, 1.0
        %v465 = vadd.f32 %v448, 1.0
        %v466 = vadd.f32 %v450, 1.0
        %v467 = vrcp.pop %v451
        %v468 = vmul.f32 1.0, %v467
        %v469 = vrcp.pop %v452
        %v470 = vmul.f32 1.0, %v469
        %v471 = vrcp.pop %v453
        %v472 = vmul.f32 1.0, %v471
        %v473 = vrcp.pop %v454
        %v474 = vmul.f32 1.0, %v473
        %v475 = vrcp.pop %v455
        %v476 = vmul.f32 1.0, %v475
        %v477 = vrcp.pop %v456
        %v478 = vmul.f32 1.0, %v477
        %v479 = vrcp.pop %v457
        %v480 = vmul.f32 1.0, %v479
        %v481 = vrcp.pop %v458
        %v482 = vmul.f32 1.0, %v481
        %v483 = vrcp.pop %v459
        %v484 = vmul.f32 1.0, %v483
        %v485 = vrcp.pop %v460
        %v486 = vmul.f32 1.0, %v485
        %v487 = vrcp.pop %v461
        %v488 = vmul.f32 1.0, %v487
        %v489 = vrcp.pop %v462
        %v490 = vmul.f32 1.0, %v489
        %v491 = vrcp.pop %v463
        %v492 = vmul.f32 1.0, %v491
        %v493 = vrcp.pop %v464
        %v494 = vmul.f32 1.0, %v493
        %v495 = vrcp.pop %v465
        %v496 = vmul.f32 1.0, %v495
        %v497 = vrcp.pop %v466
        %v498 = vmul.f32 1.0, %v497
        %v499 = vpack.c.bf16 %v470, %v468
        %v500 = vpack.c.bf16 %v474, %v472
        %v501 = vpack.c.bf16 %v478, %v476
        %v502 = vpack.c.bf16 %v482, %v480
        %v503 = vpack.c.bf16 %v486, %v484
        %v504 = vpack.c.bf16 %v490, %v488
        %v505 = vpack.c.bf16 %v494, %v492
        %v506 = vpack.c.bf16 %v498, %v496
        %v515 = vunpack.c.l.b16 %v499
        %v516 = vunpack.c.h.b16 %v499
        %v517 = vunpack.c.l.b16 %v500
        %v518 = vunpack.c.h.b16 %v500
        %v519 = vunpack.c.l.b16 %v501
        %v520 = vunpack.c.h.b16 %v501
        %v521 = vunpack.c.l.b16 %v502
        %v522 = vunpack.c.h.b16 %v502
        %v523 = vunpack.c.l.b16 %v503
        %v524 = vunpack.c.h.b16 %v503
        %v525 = vunpack.c.l.b16 %v504
        %v526 = vunpack.c.h.b16 %v504
        %v527 = vunpack.c.l.b16 %v505
        %v528 = vunpack.c.h.b16 %v505
        %v529 = vunpack.c.l.b16 %v506
        %v530 = vunpack.c.h.b16 %v506
        %v531 = vpack.c.b16 %v515, %v515
        %v532 = vpack.c.b16 %v516, %v516
        %v533 = vpack.c.b16 %v517, %v517
        %v534 = vpack.c.b16 %v518, %v518
        %v535 = vpack.c.b16 %v519, %v519
        %v536 = vpack.c.b16 %v520, %v520
        %v537 = vpack.c.b16 %v521, %v521
        %v538 = vpack.c.b16 %v522, %v522
        %v539 = vpack.c.b16 %v523, %v523
        %v540 = vpack.c.b16 %v524, %v524
        %v541 = vpack.c.b16 %v525, %v525
        %v542 = vpack.c.b16 %v526, %v526
        %v543 = vpack.c.b16 %v527, %v527
        %v544 = vpack.c.b16 %v528, %v528
        %v545 = vpack.c.b16 %v529, %v529
        %v546 = vpack.c.b16 %v530, %v530
        %563 = vst [vmem:[%s163] sm:$0xf] %v531
        %564 = vst [vmem:[%s163 + $0x4] sm:$0xf] %v532
        %565 = vst [vmem:[%s163 + $0x8] sm:$0xf] %v533
        %566 = vst [vmem:[%s163 + $0xc] sm:$0xf] %v534
        %567 = vst [vmem:[%s163 + $0x10] sm:$0xf] %v535
        %568 = vst [vmem:[%s163 + $0x14] sm:$0xf] %v536
        %569 = vst [vmem:[%s163 + $0x18] sm:$0xf] %v537
        %570 = vst [vmem:[%s163 + $0x1c] sm:$0xf] %v538
        %571 = vst [vmem:[%s163 + $0x20] sm:$0xf] %v539
        %572 = vst [vmem:[%s163 + $0x24] sm:$0xf] %v540
        %573 = vst [vmem:[%s163 + $0x28] sm:$0xf] %v541
        %574 = vst [vmem:[%s163 + $0x2c] sm:$0xf] %v542
        %575 = vst [vmem:[%s163 + $0x30] sm:$0xf] %v543
        %576 = vst [vmem:[%s163 + $0x34] sm:$0xf] %v544
        %577 = vst [vmem:[%s163 + $0x38] sm:$0xf] %v545
        %578 = vst [vmem:[%s163 + $0x3c] sm:$0xf] %v546
        %s579 = sand.u32 %s87, 1
        %s580 = sand.u32 %s87, 1
        %s581 = smul.addr %s580, 64
        %s582 = scalar_lea.vmem [#allocation2], %s581
        // Predicated region
        $region29: #{gnn_forward.9} parent=27 // pred_check
          %p583 = pneg %p97
        $region30: #{gnn_forward.9} parent=27 // pred_check_branch
          %585 = sbr.rel (%p583) target = $region32
        $region31: #{gnn_forward.9} parent=27 // pred_region
          %s586 = smul.u32 16, %s17
          %s587 = smul.addr %s586, 2
          %s588 = sadd.s32 %s18, %s587
          %s589 = smul.addr %s588, 4
          %s590 = scalar_lea.vmem %s2, %s589
          // Predicated region
          $region33: #{gnn_forward.9} parent=31 // pred_check
            _
          $region34: #{gnn_forward.9} parent=31 // pred_check_branch
            %592 = sbr.rel (0) target = $region36
          $region35: #{gnn_forward.9} parent=31 // pred_region
            // Predicated region
            $region37: #{gnn_forward.9} parent=35 // pred_check
              _
            $region38: #{gnn_forward.9} parent=35 // pred_check_branch
              %594 = sbr.rel target = $region40
            $region39: #{gnn_forward.9} parent=35 // pred_region
              // Predicated region
              $region52: #{gnn_forward.9} parent=39 // pred_check
                _
              $region53: #{gnn_forward.9} parent=39 // pred_check_branch
                %639 = sbr.rel (0) target = $region55
              $region54: #{gnn_forward.9} parent=39 // pred_region
                loop: start=0, step=1, limit=1
                $region56: #{gnn_forward.9} parent=54 // loop_pre_header
                  _
                $region57: #{gnn_forward.9} parent=54 // loop_header
                  %s641 = sphi 0, %s645
                  %p642 = scmp.ge.s32.totalorder %s641, 1
                  %s646 = sphi %s582, %s582
                  %s647 = sphi %s590, %s590
                $region58: #{gnn_forward.9} parent=54 // loop_header_branch
                  %644 = sbr.rel (%p642) target = $region62
                $region59: #{gnn_forward.9} parent=54 // loop_body
                  _
                $region60: #{gnn_forward.9} parent=54 // loop_footer
                  %s645 = sadd.s32 1, %s641
                $region61: #{gnn_forward.9} parent=54 // loop_footer_branch
                  %640 = sbr.rel target = $region57
                $region62: #{gnn_forward.9} parent=54 // loop_exit
                  _
                loop: start=0, step=1, limit=1
                $region63: #{gnn_forward.9} parent=54 // loop_pre_header
                  _
                $region64: #{gnn_forward.9} parent=54 // loop_header
                  %s650 = sphi 0, %s654
                  %p651 = scmp.ge.s32.totalorder %s650, 1
                  %s655 = sphi %s582, %s582
                  %s656 = sphi %s590, %s590
                $region65: #{gnn_forward.9} parent=54 // loop_header_branch
                  %653 = sbr.rel (%p651) target = $region69
                $region66: #{gnn_forward.9} parent=54 // loop_body
                  %v657 = vld [vmem:[%s655] sm:$0xf]
                  %658 = vst [vmem:[%s656] sm:$0xf] %v657
                  %v659 = vld [vmem:[%s655 + $0x4] sm:$0xf]
                  %660 = vst [vmem:[%s656 + $0x8] sm:$0xf] %v659
                  %v661 = vld [vmem:[%s655 + $0x8] sm:$0xf]
                  %662 = vst [vmem:[%s656 + $0x10] sm:$0xf] %v661
                  %v663 = vld [vmem:[%s655 + $0xc] sm:$0xf]
                  %664 = vst [vmem:[%s656 + $0x18] sm:$0xf] %v663
                  %v665 = vld [vmem:[%s655 + $0x10] sm:$0xf]
                  %666 = vst [vmem:[%s656 + $0x20] sm:$0xf] %v665
                  %v667 = vld [vmem:[%s655 + $0x14] sm:$0xf]
                  %668 = vst [vmem:[%s656 + $0x28] sm:$0xf] %v667
                  %v669 = vld [vmem:[%s655 + $0x18] sm:$0xf]
                  %670 = vst [vmem:[%s656 + $0x30] sm:$0xf] %v669
                  %v671 = vld [vmem:[%s655 + $0x1c] sm:$0xf]
                  %672 = vst [vmem:[%s656 + $0x38] sm:$0xf] %v671
                  %v673 = vld [vmem:[%s655 + $0x20] sm:$0xf]
                  %674 = vst [vmem:[%s656 + $0x40] sm:$0xf] %v673
                  %v675 = vld [vmem:[%s655 + $0x24] sm:$0xf]
                  %676 = vst [vmem:[%s656 + $0x48] sm:$0xf] %v675
                  %v677 = vld [vmem:[%s655 + $0x28] sm:$0xf]
                  %678 = vst [vmem:[%s656 + $0x50] sm:$0xf] %v677
                  %v679 = vld [vmem:[%s655 + $0x2c] sm:$0xf]
                  %680 = vst [vmem:[%s656 + $0x58] sm:$0xf] %v679
                  %v681 = vld [vmem:[%s655 + $0x30] sm:$0xf]
                  %682 = vst [vmem:[%s656 + $0x60] sm:$0xf] %v681
                  %v683 = vld [vmem:[%s655 + $0x34] sm:$0xf]
                  %684 = vst [vmem:[%s656 + $0x68] sm:$0xf] %v683
                  %v685 = vld [vmem:[%s655 + $0x38] sm:$0xf]
                  %686 = vst [vmem:[%s656 + $0x70] sm:$0xf] %v685
                  %v687 = vld [vmem:[%s655 + $0x3c] sm:$0xf]
                  %688 = vst [vmem:[%s656 + $0x78] sm:$0xf] %v687
                $region67: #{gnn_forward.9} parent=54 // loop_footer
                  %s654 = sadd.s32 1, %s650
                $region68: #{gnn_forward.9} parent=54 // loop_footer_branch
                  %649 = sbr.rel target = $region64
                $region69: #{gnn_forward.9} parent=54 // loop_exit
                  _
              $region55: #{gnn_forward.9} parent=39 // pred_fallthru
                _
            $region40: #{gnn_forward.9} parent=35 // pred_fallthru
              _
            // Predicated region
            $region41: #{gnn_forward.9} parent=35 // pred_check
              _
            $region42: #{gnn_forward.9} parent=35 // pred_check_branch
              %596 = sbr.rel (0) target = $region44
            $region43: #{gnn_forward.9} parent=35 // pred_region
              loop: start=0, step=1, limit=1
              $region45: #{gnn_forward.9} parent=43 // loop_pre_header
                _
              $region46: #{gnn_forward.9} parent=43 // loop_header
                %s599 = sphi 0, %s603
                %p600 = scmp.ge.s32.totalorder %s599, 1
                %s604 = sphi %s582, %s582
                %s605 = sphi %s590, %s590
              $region47: #{gnn_forward.9} parent=43 // loop_header_branch
                %602 = sbr.rel (%p600) target = $region51
              $region48: #{gnn_forward.9} parent=43 // loop_body
                %v606 = vld [vmem:[%s604] sm:$0xf]
                %607 = vst [vmem:[%s605] sm:$0xf] %v606
                %v608 = vld [vmem:[%s604 + $0x4] sm:$0xf]
                %609 = vst [vmem:[%s605 + $0x8] sm:$0xf] %v608
                %v610 = vld [vmem:[%s604 + $0x8] sm:$0xf]
                %611 = vst [vmem:[%s605 + $0x10] sm:$0xf] %v610
                %v612 = vld [vmem:[%s604 + $0xc] sm:$0xf]
                %613 = vst [vmem:[%s605 + $0x18] sm:$0xf] %v612
                %v614 = vld [vmem:[%s604 + $0x10] sm:$0xf]
                %615 = vst [vmem:[%s605 + $0x20] sm:$0xf] %v614
                %v616 = vld [vmem:[%s604 + $0x14] sm:$0xf]
                %617 = vst [vmem:[%s605 + $0x28] sm:$0xf] %v616
                %v618 = vld [vmem:[%s604 + $0x18] sm:$0xf]
                %619 = vst [vmem:[%s605 + $0x30] sm:$0xf] %v618
                %v620 = vld [vmem:[%s604 + $0x1c] sm:$0xf]
                %621 = vst [vmem:[%s605 + $0x38] sm:$0xf] %v620
                %v622 = vld [vmem:[%s604 + $0x20] sm:$0xf]
                %623 = vst [vmem:[%s605 + $0x40] sm:$0xf] %v622
                %v624 = vld [vmem:[%s604 + $0x24] sm:$0xf]
                %625 = vst [vmem:[%s605 + $0x48] sm:$0xf] %v624
                %v626 = vld [vmem:[%s604 + $0x28] sm:$0xf]
                %627 = vst [vmem:[%s605 + $0x50] sm:$0xf] %v626
                %v628 = vld [vmem:[%s604 + $0x2c] sm:$0xf]
                %629 = vst [vmem:[%s605 + $0x58] sm:$0xf] %v628
                %v630 = vld [vmem:[%s604 + $0x30] sm:$0xf]
                %631 = vst [vmem:[%s605 + $0x60] sm:$0xf] %v630
                %v632 = vld [vmem:[%s604 + $0x34] sm:$0xf]
                %633 = vst [vmem:[%s605 + $0x68] sm:$0xf] %v632
                %v634 = vld [vmem:[%s604 + $0x38] sm:$0xf]
                %635 = vst [vmem:[%s605 + $0x70] sm:$0xf] %v634
                %v636 = vld [vmem:[%s604 + $0x3c] sm:$0xf]
                %637 = vst [vmem:[%s605 + $0x78] sm:$0xf] %v636
              $region49: #{gnn_forward.9} parent=43 // loop_footer
                %s603 = sadd.s32 1, %s599
              $region50: #{gnn_forward.9} parent=43 // loop_footer_branch
                %598 = sbr.rel target = $region46
              $region51: #{gnn_forward.9} parent=43 // loop_exit
                _
            $region44: #{gnn_forward.9} parent=35 // pred_fallthru
              _
          $region36: #{gnn_forward.9} parent=31 // pred_fallthru
            _
          %689 = vnop
        $region32: #{gnn_forward.9} parent=27 // pred_fallthru
          _
      $region28: #{gnn_forward.9} parent=5 // pred_fallthru
        _
      %p690 = scmp.le.s32.totalorder 2, %s8
      // Predicated region
      $region70: #{gnn_forward.9} parent=5 // pred_check
        %p691 = pneg %p690
      $region71: #{gnn_forward.9} parent=5 // pred_check_branch
        %693 = sbr.rel (%p691) target = $region73
      $region72: #{gnn_forward.9} parent=5 // pred_region
        %s694 = ssub.s32 %s8, 2
        // Predicated region
        $region74: #{gnn_forward.9} parent=72 // pred_check
          %p695 = pneg %p103
        $region75: #{gnn_forward.9} parent=72 // pred_check_branch
          %697 = sbr.rel (%p695) target = $region77
        $region76: #{gnn_forward.9} parent=72 // pred_region
          %s698 = sand.u32 %s88, 1
          %s699 = sand.u32 %s88, 1
          %s700 = smul.addr %s699, 64
          %s701 = scalar_lea.vmem [#allocation2], %s700
        $region77: #{gnn_forward.9} parent=72 // pred_fallthru
          _
      $region73: #{gnn_forward.9} parent=5 // pred_fallthru
        _
    $region6: #{gnn_forward.9} parent=1 // loop_footer
      %s12 = sadd.s32 1, %s8
    $region7: #{gnn_forward.9} parent=1 // loop_footer_branch
      %7 = sbr.rel target = $region3
    $region8: #{gnn_forward.9} parent=1 // loop_exit
      _

</llo_original>
